<compile_context>
chip_gen: v7x
topology: tpu7x:2x2x1
jax: 0.10.0
libtpu: 0.0.40
codegen_flags: <defaults>
</compile_context>

<pallas_src>
import functools
import math

import jax
import jax.numpy as jnp
from jax import lax
from jax.experimental import pallas as pl
from jax.experimental.pallas import tpu as pltpu

LANE = 128
BN_EPS = 1e-5


def _round_up(n, m):
    return (n + m - 1) // m * m


# --------------------------------------------------------------------------
# Shared compute: fc1+softplus, fc2+softplus, fused (mu | logvar) head.
# bf16 MXU operands, f32 accumulation, activations kept in f32.
# --------------------------------------------------------------------------
def _mlp_head(x, w1, b1, w2, b2, wh, bh):
    h = jnp.dot(x.astype(jnp.bfloat16), w1,
                preferred_element_type=jnp.float32) + b1
    h = jnp.logaddexp(h, 0.0)                       # softplus
    h = jnp.dot(h.astype(jnp.bfloat16), w2,
                preferred_element_type=jnp.float32) + b2
    h = jnp.logaddexp(h, 0.0)                       # softplus
    # dropout: identity in eval mode.
    # TODO(synk): training-mode dropout mask (pltpu.prng_random_bits) not emitted.
    head = jnp.dot(h.astype(jnp.bfloat16), wh,
                   preferred_element_type=jnp.float32) + bh
    return head


# --------------------------------------------------------------------------
# Pass 1 (batch-tiled): compute head tile + per-tile partial BN statistics.
# --------------------------------------------------------------------------
def _encode_stats_kernel(x_ref, w1_ref, b1_ref, w2_ref, b2_ref, wh_ref, bh_ref,
                         head_ref, sum_ref, sq_ref, *, block_rows, n_valid):
    head = _mlp_head(x_ref[...], w1_ref[...], b1_ref[...], w2_ref[...],
                     b2_ref[...], wh_ref[...], bh_ref[...])
    head_ref[...] = head

    # Partial column statistics; mask out zero-padded batch rows (they go
    # through the biases/softplus so their head values are NOT zero).
    if n_valid % block_rows == 0:
        hm = head
    else:
        row = pl.program_id(0) * block_rows + lax.broadcasted_iota(
            jnp.int32, (block_rows, 1), 0)
        hm = jnp.where(row < n_valid, head, 0.0)
    sum_ref[0] = jnp.sum(hm, axis=0, keepdims=True)
    sq_ref[0] = jnp.sum(hm * hm, axis=0, keepdims=True)


# --------------------------------------------------------------------------
# Pass 2 (batch-tiled): apply BatchNorm with the global stats, exp the logvar
# half.  Two 128-lane-aligned stores (no concatenate, no masked vst).
# --------------------------------------------------------------------------
def _normalize_kernel(head_ref, mean_ref, rstd_ref, out_ref, *, tp):
    bn = (head_ref[...] - mean_ref[...]) * rstd_ref[...]
    out_ref[:, :tp] = bn[:, :tp]
    out_ref[:, tp:] = jnp.exp(0.5 * bn[:, tp:])


# --------------------------------------------------------------------------
# Single-launch fused kernel for batches that fit in one tile (no head
# round trip through HBM, BN statistics computed in-kernel, one pass).
# --------------------------------------------------------------------------
def _encoder_fused_kernel(x_ref, w1_ref, b1_ref, w2_ref, b2_ref, wh_ref, bh_ref,
                          out_ref, *, tp, n_valid):
    head = _mlp_head(x_ref[...], w1_ref[...], b1_ref[...], w2_ref[...],
                     b2_ref[...], wh_ref[...], bh_ref[...])
    rows = head.shape[0]
    if n_valid == rows:
        hm = head
    else:
        row = lax.broadcasted_iota(jnp.int32, (rows, 1), 0)
        hm = jnp.where(row < n_valid, head, 0.0)

    inv_n = 1.0 / n_valid
    mean = jnp.sum(hm, axis=0, keepdims=True) * inv_n
    var = jnp.maximum(
        jnp.sum(hm * hm, axis=0, keepdims=True) * inv_n - mean * mean, 0.0)
    bn = (head - mean) * lax.rsqrt(var + BN_EPS)

    out_ref[:, :tp] = bn[:, :tp]
    out_ref[:, tp:] = jnp.exp(0.5 * bn[:, tp:])


# --------------------------------------------------------------------------
# Wrapper.
# --------------------------------------------------------------------------
def encoder_forward(x, params, num_topics, *, block_rows=256):
    """x: [B, G] float32. Returns (loc, scale), each [B, num_topics] float32.

    block_rows: batch tile (256-1024 recommended; sized well under the v7x
    64 MiB VMEM budget even with double-buffered x/head tiles).
    """
    B, G = x.shape
    hp = params["w1"].shape[1]           # padded hidden (multiple of 128)
    tp2 = params["wh"].shape[1]          # 2 * padded topics
    tp = tp2 // 2

    tb = min(block_rows, _round_up(B, 8))
    bp = _round_up(B, tb)
    n_tiles = bp // tb
    if bp != B:
        x = jnp.pad(x, ((0, bp - B), (0, 0)))

    args = (x, params["w1"], params["b1"], params["w2"], params["b2"],
            params["wh"], params["bh"])

    if n_tiles == 1:
        # Whole batch in one tile: single fused launch.
        vmem = pl.BlockSpec(memory_space=pltpu.MemorySpace.VMEM)
        out = pl.pallas_call(
            functools.partial(_encoder_fused_kernel, tp=tp, n_valid=B),
            out_shape=jax.ShapeDtypeStruct((bp, tp2), jnp.float32),
            in_specs=[vmem] * 7,
            out_specs=vmem,
        )(*args)
    else:
        # Pass 1: batch grid, weights resident (constant index_map), batch
        # axis "parallel" for v7x megacore sharding.
        def resident(shape):
            return pl.BlockSpec(shape, lambda i: (0,) * len(shape))

        head, sums, sqs = pl.pallas_call(
            functools.partial(_encode_stats_kernel, block_rows=tb, n_valid=B),
            grid=(n_tiles,),
            out_shape=(
                jax.ShapeDtypeStruct((bp, tp2), jnp.float32),
                jax.ShapeDtypeStruct((n_tiles, 1, tp2), jnp.float32),
                jax.ShapeDtypeStruct((n_tiles, 1, tp2), jnp.float32),
            ),
            in_specs=[
                pl.BlockSpec((tb, G), lambda i: (i, 0)),   # x streams per tile
                resident((G, hp)),                         # w1 (bf16)
                resident((1, hp)),                         # b1
                resident((hp, hp)),                        # w2 (bf16)
                resident((1, hp)),                         # b2
                resident((hp, tp2)),                       # wh (bf16, mu|lv fused)
                resident((1, tp2)),                        # bh
            ],
            out_specs=(
                pl.BlockSpec((tb, tp2), lambda i: (i, 0)),
                pl.BlockSpec((1, 1, tp2), lambda i: (i, 0, 0)),
                pl.BlockSpec((1, 1, tp2), lambda i: (i, 0, 0)),
            ),
            compiler_params=pltpu.CompilerParams(
                dimension_semantics=("parallel",)),
        )(*args)

        # Tiny cross-tile reduction of the partial statistics (plain JAX).
        inv_n = 1.0 / B
        mean = jnp.sum(sums, axis=0) * inv_n                        # (1, tp2)
        var = jnp.maximum(jnp.sum(sqs, axis=0) * inv_n - mean * mean, 0.0)
        rstd = lax.rsqrt(var + BN_EPS)

        # Pass 2: normalize + exp; stats blocks resident, batch "parallel".
        out = pl.pallas_call(
            functools.partial(_normalize_kernel, tp=tp),
            grid=(n_tiles,),
            out_shape=jax.ShapeDtypeStruct((bp, tp2), jnp.float32),
            in_specs=[
                pl.BlockSpec((tb, tp2), lambda i: (i, 0)),
                pl.BlockSpec((1, tp2), lambda i: (0, 0)),
                pl.BlockSpec((1, tp2), lambda i: (0, 0)),
            ],
            out_specs=pl.BlockSpec((tb, tp2), lambda i: (i, 0)),
            compiler_params=pltpu.CompilerParams(
                dimension_semantics=("parallel",)),
        )(head, mean, rstd)

    # Strip batch / lane padding (free wrapper-side slices).
    loc = out[:B, :num_topics]
    scale = out[:B, tp:tp + num_topics]
    return loc, scale


# --------------------------------------------------------------------------
# Parameter construction: PyTorch nn.Linear weights pre-transposed to (in, out),
# hidden / topics zero-padded to 128 lanes, fcmu|fclv fused into one head,
# matmul weights stored in bf16 (biases stay f32, added after f32 accumulation).
# Padded lanes never perturb real outputs: padded w2 / wh rows are zero, padded
# head columns are identically zero and BN-normalize to exactly 0.
# --------------------------------------------------------------------------
def init_params(key, gene_size, hidden, num_topics):
    ks = jax.random.split(key, 8)

    def lin(kw, kb, fan_in, fan_out):
        bound = 1.0 / math.sqrt(fan_in)
        w = jax.random.uniform(kw, (fan_in, fan_out), jnp.float32, -bound, bound)
        b = jax.random.uniform(kb, (fan_out,), jnp.float32, -bound, bound)
        return w, b

    w1, b1 = lin(ks[0], ks[1], gene_size, hidden)
    w2, b2 = lin(ks[2], ks[3], hidden, hidden)
    wmu, bmu = lin(ks[4], ks[5], hidden, num_topics)
    wlv, blv = lin(ks[6], ks[7], hidden, num_topics)

    hp = _round_up(hidden, LANE)
    tp = _round_up(num_topics, LANE)

    def pad_to(a, shape):
        out = jnp.zeros(shape, jnp.float32)
        return out.at[tuple(slice(0, s) for s in a.shape)].set(a)

    w1p = pad_to(w1, (gene_size, hp))
    b1p = pad_to(b1[None, :], (1, hp))
    w2p = pad_to(w2, (hp, hp))
    b2p = pad_to(b2[None, :], (1, hp))

    wh = jnp.zeros((hp, 2 * tp), jnp.float32)
    wh = wh.at[:hidden, :num_topics].set(wmu)
    wh = wh.at[:hidden, tp:tp + num_topics].set(wlv)
    bh = jnp.zeros((1, 2 * tp), jnp.float32)
    bh = bh.at[0, :num_topics].set(bmu)
    bh = bh.at[0, tp:tp + num_topics].set(blv)

    return dict(w1=w1p.astype(jnp.bfloat16), b1=b1p,
                w2=w2p.astype(jnp.bfloat16), b2=b2p,
                wh=wh.astype(jnp.bfloat16), bh=bh)


# --------------------------------------------------------------------------
# Pure-JAX reference with the SAME bf16 operand rounding as the kernel (the
# bf16 matmuls are an intentional design choice per the perf review); all other
# math (softplus, BN, exp) in f32.  Isolates kernel/tiling/statistics plumbing
# from the intended low-precision rounding, so a tight tolerance is meaningful.
# --------------------------------------------------------------------------
def encoder_reference(x, params, num_topics):
    def mm(a, w):
        return jnp.dot(a.astype(jnp.bfloat16), w,
                       preferred_element_type=jnp.float32)

    tp = params["wh"].shape[1] // 2
    h = jnp.logaddexp(mm(x, params["w1"]) + params["b1"], 0.0)
    h = jnp.logaddexp(mm(h, params["w2"]) + params["b2"], 0.0)
    head = mm(h, params["wh"]) + params["bh"]
    mean = head.mean(axis=0, keepdims=True)
    var = ((head - mean) ** 2).mean(axis=0, keepdims=True)
    bn = (head - mean) * lax.rsqrt(var + BN_EPS)
    return bn[:, :num_topics], jnp.exp(0.5 * bn[:, tp:tp + num_topics])


if __name__ == "__main__":
    # Module-consistent small shapes: gene_size=128, hidden=64, num_topics=75.
    G, H, T = 128, 64, 75

    key = jax.random.PRNGKey(0)
    k_x1, k_x2, k_p = jax.random.split(key, 3)
    params = init_params(k_p, G, H, T)

    fwd = jax.jit(encoder_forward, static_argnums=(2,),
                  static_argnames=("block_rows",))

    # 1) Batch-tiled two-pass path: 4 grid steps of 256 rows, ragged last tile.
    B1 = 1000
    x1 = jax.random.normal(k_x1, (B1, G), jnp.float32)
    loc1, scale1 = fwd(x1, params, T, block_rows=256)
    jax.block_until_ready((loc1, scale1))

    # 2) Small-batch single-launch fused path.
    B2 = 64
    x2 = jax.random.normal(k_x2, (B2, G), jnp.float32)
    loc2, scale2 = fwd(x2, params, T)
    jax.block_until_ready((loc2, scale2))

    ok = True
    for loc, scale, x, B in ((loc1, scale1, x1, B1), (loc2, scale2, x2, B2)):
        assert loc.shape == (B, T) and scale.shape == (B, T)
        assert bool(jnp.all(jnp.isfinite(loc))) and bool(jnp.all(scale > 0))
        loc_r, scale_r = encoder_reference(x, params, T)
        ok &= bool(jnp.max(jnp.abs(loc - loc_r)) < 2e-2)
        ok &= bool(jnp.max(jnp.abs(scale - scale_r)) < 2e-2)
    assert ok
    print("KERNEL_OK")
</pallas_src>

<mosaic_0001>
module attributes {stable_mosaic.version = 11 : i64} {
  func.func @_encode_stats_kernel(%arg0: i32, %arg1: memref<256x128xf32, #tpu.memory_space<vmem>>, %arg2: memref<128x128xbf16, #tpu.memory_space<vmem>>, %arg3: memref<1x128xf32, #tpu.memory_space<vmem>>, %arg4: memref<128x128xbf16, #tpu.memory_space<vmem>>, %arg5: memref<1x128xf32, #tpu.memory_space<vmem>>, %arg6: memref<128x256xbf16, #tpu.memory_space<vmem>>, %arg7: memref<1x256xf32, #tpu.memory_space<vmem>>, %arg8: memref<256x256xf32, #tpu.memory_space<vmem>>, %arg9: memref<1x1x256xf32, #tpu.memory_space<vmem>>, %arg10: memref<1x1x256xf32, #tpu.memory_space<vmem>>) attributes {dimension_semantics = [#tpu.dimension_semantics<parallel>], iteration_bounds = array<i64: 4>, scalar_prefetch = 0 : i64, scratch_operands = 0 : i64, tpu.core_type = #tpu.core_type<tc>, window_params = [{transform_indices = @transform_0, window_bounds = array<i64: 256, 128>}, {pipeline_mode = #tpu.pipeline_mode<synchronous>, transform_indices = @transform_1, window_bounds = array<i64: 128, 128>}, {pipeline_mode = #tpu.pipeline_mode<synchronous>, transform_indices = @transform_2, window_bounds = array<i64: 1, 128>}, {pipeline_mode = #tpu.pipeline_mode<synchronous>, transform_indices = @transform_3, window_bounds = array<i64: 128, 128>}, {pipeline_mode = #tpu.pipeline_mode<synchronous>, transform_indices = @transform_4, window_bounds = array<i64: 1, 128>}, {pipeline_mode = #tpu.pipeline_mode<synchronous>, transform_indices = @transform_5, window_bounds = array<i64: 128, 256>}, {pipeline_mode = #tpu.pipeline_mode<synchronous>, transform_indices = @transform_6, window_bounds = array<i64: 1, 256>}, {transform_indices = @transform_7, window_bounds = array<i64: 256, 256>}, {transform_indices = @transform_8, window_bounds = array<i64: 1, 1, 256>}, {transform_indices = @transform_9, window_bounds = array<i64: 1, 1, 256>}]} {
    %c0 = arith.constant 0 : index
    %c0_0 = arith.constant 0 : index
    %0 = vector.load %arg1[%c0, %c0_0] : memref<256x128xf32, #tpu.memory_space<vmem>>, vector<256x128xf32>
    %c0_1 = arith.constant 0 : index
    %c0_2 = arith.constant 0 : index
    %1 = vector.load %arg2[%c0_1, %c0_2] : memref<128x128xbf16, #tpu.memory_space<vmem>>, vector<128x128xbf16>
    %c0_3 = arith.constant 0 : index
    %c0_4 = arith.constant 0 : index
    %2 = vector.load %arg3[%c0_3, %c0_4] : memref<1x128xf32, #tpu.memory_space<vmem>>, vector<1x128xf32>
    %c0_5 = arith.constant 0 : index
    %c0_6 = arith.constant 0 : index
    %3 = vector.load %arg4[%c0_5, %c0_6] : memref<128x128xbf16, #tpu.memory_space<vmem>>, vector<128x128xbf16>
    %c0_7 = arith.constant 0 : index
    %c0_8 = arith.constant 0 : index
    %4 = vector.load %arg5[%c0_7, %c0_8] : memref<1x128xf32, #tpu.memory_space<vmem>>, vector<1x128xf32>
    %c0_9 = arith.constant 0 : index
    %c0_10 = arith.constant 0 : index
    %5 = vector.load %arg6[%c0_9, %c0_10] : memref<128x256xbf16, #tpu.memory_space<vmem>>, vector<128x256xbf16>
    %c0_11 = arith.constant 0 : index
    %c0_12 = arith.constant 0 : index
    %6 = vector.load %arg7[%c0_11, %c0_12] : memref<1x256xf32, #tpu.memory_space<vmem>>, vector<1x256xf32>
    %7 = arith.truncf %0 : vector<256x128xf32> to vector<256x128xbf16>
    %cst = arith.constant dense<0.000000e+00> : vector<256x128xf32>
    %8 = tpu.matmul %7, %1, %cst {dimension_numbers = #tpu.dot_dimension_numbers<[1], [0], [0], [1], [0, 0, 1, 1], [], []>} : vector<256x128xbf16>, vector<128x128xbf16>, vector<256x128xf32> -> vector<256x128xf32>
    %9 = vector.broadcast %2 : vector<1x128xf32> to vector<256x128xf32>
    %10 = arith.addf %8, %9 : vector<256x128xf32>
    %cst_13 = arith.constant 0.000000e+00 : f32
    %11 = vector.broadcast %cst_13 : f32 to vector<256x128xf32>
    %12 = arith.maximumf %10, %11 : vector<256x128xf32>
    %13 = vector.broadcast %cst_13 : f32 to vector<256x128xf32>
    %14 = arith.subf %10, %13 : vector<256x128xf32>
    %15 = arith.cmpf one, %14, %14 : vector<256x128xf32>
    %16 = vector.broadcast %cst_13 : f32 to vector<256x128xf32>
    %17 = arith.addf %10, %16 : vector<256x128xf32>
    %18 = math.absf %14 : vector<256x128xf32>
    %cst_14 = arith.constant 0.000000e+00 : f32
    %19 = vector.broadcast %cst_14 : f32 to vector<256x128xf32>
    %20 = arith.subf %19, %18 : vector<256x128xf32>
    %21 = math.exp %20 : vector<256x128xf32>
    %22 = math.log1p %21 : vector<256x128xf32>
    %23 = arith.addf %12, %22 : vector<256x128xf32>
    %24 = arith.select %15, %17, %23 : vector<256x128xi1>, vector<256x128xf32>
    %25 = arith.truncf %24 : vector<256x128xf32> to vector<256x128xbf16>
    %cst_15 = arith.constant dense<0.000000e+00> : vector<256x128xf32>
    %26 = tpu.matmul %25, %3, %cst_15 {dimension_numbers = #tpu.dot_dimension_numbers<[1], [0], [0], [1], [0, 0, 1, 1], [], []>} : vector<256x128xbf16>, vector<128x128xbf16>, vector<256x128xf32> -> vector<256x128xf32>
    %27 = vector.broadcast %4 : vector<1x128xf32> to vector<256x128xf32>
    %28 = arith.addf %26, %27 : vector<256x128xf32>
    %cst_16 = arith.constant 0.000000e+00 : f32
    %29 = vector.broadcast %cst_16 : f32 to vector<256x128xf32>
    %30 = arith.maximumf %28, %29 : vector<256x128xf32>
    %31 = vector.broadcast %cst_16 : f32 to vector<256x128xf32>
    %32 = arith.subf %28, %31 : vector<256x128xf32>
    %33 = arith.cmpf one, %32, %32 : vector<256x128xf32>
    %34 = vector.broadcast %cst_16 : f32 to vector<256x128xf32>
    %35 = arith.addf %28, %34 : vector<256x128xf32>
    %36 = math.absf %32 : vector<256x128xf32>
    %cst_17 = arith.constant 0.000000e+00 : f32
    %37 = vector.broadcast %cst_17 : f32 to vector<256x128xf32>
    %38 = arith.subf %37, %36 : vector<256x128xf32>
    %39 = math.exp %38 : vector<256x128xf32>
    %40 = math.log1p %39 : vector<256x128xf32>
    %41 = arith.addf %30, %40 : vector<256x128xf32>
    %42 = arith.select %33, %35, %41 : vector<256x128xi1>, vector<256x128xf32>
    %43 = arith.truncf %42 : vector<256x128xf32> to vector<256x128xbf16>
    %cst_18 = arith.constant dense<0.000000e+00> : vector<256x256xf32>
    %44 = tpu.matmul %43, %5, %cst_18 {dimension_numbers = #tpu.dot_dimension_numbers<[1], [0], [0], [1], [0, 0, 1, 1], [], []>} : vector<256x128xbf16>, vector<128x256xbf16>, vector<256x256xf32> -> vector<256x256xf32>
    %45 = vector.broadcast %6 : vector<1x256xf32> to vector<256x256xf32>
    %46 = arith.addf %44, %45 : vector<256x256xf32>
    %c0_19 = arith.constant 0 : index
    %c0_20 = arith.constant 0 : index
    %47 = vector.load %arg8[%c0_19, %c0_20] : memref<256x256xf32, #tpu.memory_space<vmem>>, vector<256x256xf32>
    tpu.vector_store %arg8[%c0_19, %c0_20], %46 {strides = array<i32>} : memref<256x256xf32, #tpu.memory_space<vmem>>, vector<256x256xf32>,
    %c256_i32 = arith.constant 256 : i32
    %48 = arith.muli %arg0, %c256_i32 : i32
    %49 = tpu.iota {dimensions = array<i32: 0>} : vector<256x1xi32>
    %50 = vector.broadcast %48 : i32 to vector<256x1xi32>
    %51 = arith.addi %50, %49 : vector<256x1xi32>
    %c1000_i32 = arith.constant 1000 : i32
    %52 = vector.broadcast %c1000_i32 : i32 to vector<256x1xi32>
    %53 = arith.cmpi slt, %51, %52 : vector<256x1xi32>
    %cst_21 = arith.constant 0.000000e+00 : f32
    %54 = vector.shape_cast %53 : vector<256x1xi1> to vector<256x1xi1>
    %55 = vector.broadcast %54 : vector<256x1xi1> to vector<256x256xi1>
    %56 = vector.broadcast %cst_21 : f32 to vector<256x256xf32>
    %57 = arith.select %55, %46, %56 : vector<256x256xi1>, vector<256x256xf32>
    %cst_22 = arith.constant dense<0.000000e+00> : vector<256xf32>
    %58 = vector.multi_reduction <add>, %57, %cst_22 [0] : vector<256x256xf32> to vector<256xf32>
    %59 = vector.shape_cast %58 : vector<256xf32> to vector<1x256xf32>
    %c0_23 = arith.constant 0 : index
    %c0_24 = arith.constant 0 : index
    %c0_25 = arith.constant 0 : index
    %60 = vector.load %arg9[%c0_23, %c0_24, %c0_25] : memref<1x1x256xf32, #tpu.memory_space<vmem>>, vector<1x1x256xf32>
    %61 = vector.shape_cast %60 : vector<1x1x256xf32> to vector<1x256xf32>
    %62 = vector.shape_cast %59 : vector<1x256xf32> to vector<1x1x256xf32>
    tpu.vector_store %arg9[%c0_23, %c0_24, %c0_25], %62 {strides = array<i32>} : memref<1x1x256xf32, #tpu.memory_space<vmem>>, vector<1x1x256xf32>,
    %63 = arith.mulf %57, %57 : vector<256x256xf32>
    %cst_26 = arith.constant dense<0.000000e+00> : vector<256xf32>
    %64 = vector.multi_reduction <add>, %63, %cst_26 [0] : vector<256x256xf32> to vector<256xf32>
    %65 = vector.shape_cast %64 : vector<256xf32> to vector<1x256xf32>
    %c0_27 = arith.constant 0 : index
    %c0_28 = arith.constant 0 : index
    %c0_29 = arith.constant 0 : index
    %66 = vector.load %arg10[%c0_27, %c0_28, %c0_29] : memref<1x1x256xf32, #tpu.memory_space<vmem>>, vector<1x1x256xf32>
    %67 = vector.shape_cast %66 : vector<1x1x256xf32> to vector<1x256xf32>
    %68 = vector.shape_cast %65 : vector<1x256xf32> to vector<1x1x256xf32>
    tpu.vector_store %arg10[%c0_27, %c0_28, %c0_29], %68 {strides = array<i32>} : memref<1x1x256xf32, #tpu.memory_space<vmem>>, vector<1x1x256xf32>,
    return
  }
  func.func @transform_0(%arg0: i32) -> (i32, i32) {
    %c0_i32 = arith.constant 0 : i32
    %c0_i32_0 = arith.constant 0 : i32
    return %arg0, %c0_i32 : i32, i32
  }
  func.func @transform_1(%arg0: i32) -> (i32, i32) {
    %c0_i32 = arith.constant 0 : i32
    %c0_i32_0 = arith.constant 0 : i32
    %c0_i32_1 = arith.constant 0 : i32
    return %c0_i32, %c0_i32_0 : i32, i32
  }
  func.func @transform_2(%arg0: i32) -> (i32, i32) {
    %c0_i32 = arith.constant 0 : i32
    %c0_i32_0 = arith.constant 0 : i32
    %c0_i32_1 = arith.constant 0 : i32
    return %c0_i32, %c0_i32_0 : i32, i32
  }
  func.func @transform_3(%arg0: i32) -> (i32, i32) {
    %c0_i32 = arith.constant 0 : i32
    %c0_i32_0 = arith.constant 0 : i32
    %c0_i32_1 = arith.constant 0 : i32
    return %c0_i32, %c0_i32_0 : i32, i32
  }
  func.func @transform_4(%arg0: i32) -> (i32, i32) {
    %c0_i32 = arith.constant 0 : i32
    %c0_i32_0 = arith.constant 0 : i32
    %c0_i32_1 = arith.constant 0 : i32
    return %c0_i32, %c0_i32_0 : i32, i32
  }
  func.func @transform_5(%arg0: i32) -> (i32, i32) {
    %c0_i32 = arith.constant 0 : i32
    %c0_i32_0 = arith.constant 0 : i32
    %c0_i32_1 = arith.constant 0 : i32
    return %c0_i32, %c0_i32_0 : i32, i32
  }
  func.func @transform_6(%arg0: i32) -> (i32, i32) {
    %c0_i32 = arith.constant 0 : i32
    %c0_i32_0 = arith.constant 0 : i32
    %c0_i32_1 = arith.constant 0 : i32
    return %c0_i32, %c0_i32_0 : i32, i32
  }
  func.func @transform_7(%arg0: i32) -> (i32, i32) {
    %c0_i32 = arith.constant 0 : i32
    %c0_i32_0 = arith.constant 0 : i32
    return %arg0, %c0_i32 : i32, i32
  }
  func.func @transform_8(%arg0: i32) -> (i32, i32, i32) {
    %c0_i32 = arith.constant 0 : i32
    %c0_i32_0 = arith.constant 0 : i32
    %c0_i32_1 = arith.constant 0 : i32
    return %arg0, %c0_i32, %c0_i32_0 : i32, i32, i32
  }
  func.func @transform_9(%arg0: i32) -> (i32, i32, i32) {
    %c0_i32 = arith.constant 0 : i32
    %c0_i32_0 = arith.constant 0 : i32
    %c0_i32_1 = arith.constant 0 : i32
    return %arg0, %c0_i32, %c0_i32_0 : i32, i32, i32
  }
}

module attributes {stable_mosaic.version = 11 : i64} {
  func.func @_normalize_kernel(%arg0: i32, %arg1: memref<256x256xf32, #tpu.memory_space<vmem>>, %arg2: memref<1x256xf32, #tpu.memory_space<vmem>>, %arg3: memref<1x256xf32, #tpu.memory_space<vmem>>, %arg4: memref<256x256xf32, #tpu.memory_space<vmem>>) attributes {dimension_semantics = [#tpu.dimension_semantics<parallel>], iteration_bounds = array<i64: 4>, scalar_prefetch = 0 : i64, scratch_operands = 0 : i64, tpu.core_type = #tpu.core_type<tc>, window_params = [{transform_indices = @transform_0, window_bounds = array<i64: 256, 256>}, {pipeline_mode = #tpu.pipeline_mode<synchronous>, transform_indices = @transform_1, window_bounds = array<i64: 1, 256>}, {pipeline_mode = #tpu.pipeline_mode<synchronous>, transform_indices = @transform_2, window_bounds = array<i64: 1, 256>}, {transform_indices = @transform_3, window_bounds = array<i64: 256, 256>}]} {
    %c0 = arith.constant 0 : index
    %c0_0 = arith.constant 0 : index
    %0 = vector.load %arg1[%c0, %c0_0] : memref<256x256xf32, #tpu.memory_space<vmem>>, vector<256x256xf32>
    %c0_1 = arith.constant 0 : index
    %c0_2 = arith.constant 0 : index
    %1 = vector.load %arg2[%c0_1, %c0_2] : memref<1x256xf32, #tpu.memory_space<vmem>>, vector<1x256xf32>
    %2 = vector.broadcast %1 : vector<1x256xf32> to vector<256x256xf32>
    %3 = arith.subf %0, %2 : vector<256x256xf32>
    %c0_3 = arith.constant 0 : index
    %c0_4 = arith.constant 0 : index
    %4 = vector.load %arg3[%c0_3, %c0_4] : memref<1x256xf32, #tpu.memory_space<vmem>>, vector<1x256xf32>
    %5 = vector.broadcast %4 : vector<1x256xf32> to vector<256x256xf32>
    %6 = arith.mulf %3, %5 : vector<256x256xf32>
    %7 = vector.extract_strided_slice %6 {offsets = [0, 0], sizes = [256, 128], strides = [1, 1]} : vector<256x256xf32> to vector<256x128xf32>
    %c0_5 = arith.constant 0 : index
    %c0_6 = arith.constant 0 : index
    %8 = vector.load %arg4[%c0_5, %c0_6] : memref<256x256xf32, #tpu.memory_space<vmem>>, vector<256x128xf32>
    tpu.vector_store %arg4[%c0_5, %c0_6], %7 {strides = array<i32>} : memref<256x256xf32, #tpu.memory_space<vmem>>, vector<256x128xf32>,
    %9 = vector.extract_strided_slice %6 {offsets = [0, 128], sizes = [256, 128], strides = [1, 1]} : vector<256x256xf32> to vector<256x128xf32>
    %cst = arith.constant 5.000000e-01 : f32
    %10 = vector.broadcast %cst : f32 to vector<256x128xf32>
    %11 = arith.mulf %10, %9 : vector<256x128xf32>
    %12 = math.exp %11 : vector<256x128xf32>
    %c0_7 = arith.constant 0 : index
    %c128 = arith.constant 128 : index
    %13 = vector.load %arg4[%c0_7, %c128] : memref<256x256xf32, #tpu.memory_space<vmem>>, vector<256x128xf32>
    tpu.vector_store %arg4[%c0_7, %c128], %12 {strides = array<i32>} : memref<256x256xf32, #tpu.memory_space<vmem>>, vector<256x128xf32>,
    return
  }
  func.func @transform_0(%arg0: i32) -> (i32, i32) {
    %c0_i32 = arith.constant 0 : i32
    %c0_i32_0 = arith.constant 0 : i32
    return %arg0, %c0_i32 : i32, i32
  }
  func.func @transform_1(%arg0: i32) -> (i32, i32) {
    %c0_i32 = arith.constant 0 : i32
    %c0_i32_0 = arith.constant 0 : i32
    %c0_i32_1 = arith.constant 0 : i32
    return %c0_i32, %c0_i32_0 : i32, i32
  }
  func.func @transform_2(%arg0: i32) -> (i32, i32) {
    %c0_i32 = arith.constant 0 : i32
    %c0_i32_0 = arith.constant 0 : i32
    %c0_i32_1 = arith.constant 0 : i32
    return %c0_i32, %c0_i32_0 : i32, i32
  }
  func.func @transform_3(%arg0: i32) -> (i32, i32) {
    %c0_i32 = arith.constant 0 : i32
    %c0_i32_0 = arith.constant 0 : i32
    return %arg0, %c0_i32 : i32, i32
  }
}

</mosaic_0001>

<llo_original>
// kernel: encoder_forward.3
$region0: #{encoder_forward.3}
  #allocation0 [shape = 'u32[]', space=smem, size = 0x4, offset = 0x4, fixed_abs, tag = 'smem constant byte address 0x4 - core index']
  #allocation1 [shape = 'u32[144,128]{1,0:T(1,128)}', space=vmem, size = 0x12000, scoped, tag = 'internal scratch']
  %s0 = inlined_call_operand.vmem [shape: f32[1024,256], index: 0, kind: input, shape index: {}]
  %s1 = inlined_call_operand.vmem [shape: f32[1,256], index: 1, kind: input, shape index: {}]
  %s2 = inlined_call_operand.vmem [shape: f32[1,256], index: 2, kind: input, shape index: {}]
  %s3 = inlined_call_operand.vmem [shape: f32[1024,256], index: 3, kind: output, shape index: {}]
  %s4 = sld [smem:[#allocation0]]
  $region45: #{encoder_forward.3} parent=0
    _
  %s6 = ssub.s32 1, %s4
  %s7 = scalar_select 0, %s6, %s4
  loop: start=0, step=1, limit=6
  $region2: #{encoder_forward.3} parent=0 // loop_pre_header
    _
  $region3: #{encoder_forward.3} parent=0 // loop_header
    %s9 = sphi 0, %s13
    %p10 = scmp.ge.s32.totalorder %s9, 6
    %s19 = sphi 0, %s21
    %s22 = sphi 0, %s19
    %s23 = sphi 0, %s22
    %s39 = sphi 0, %s23
    %s43 = sphi 0, %s43
    %s45 = sphi 0, %s43
    %s46 = sphi 0, %s45
    %s60 = sphi 0, %s46
    %s64 = sphi 0, %s64
    %s66 = sphi 0, %s64
    %s67 = sphi 0, %s66
    %s81 = sphi 0, %s67
    %s87 = sphi 0, %s89
    %s90 = sphi 0, %s87
    %s91 = sphi 0, %s90
    %s107 = sphi 0, %s91
  $region4: #{encoder_forward.3} parent=0 // loop_header_branch
    %12 = sbr.rel (%p10) target = $region8
  $region5: #{encoder_forward.3} parent=0 // loop_body
    %s14 = ssub.s32 %s9, 1
    %s15 = ssub.s32 %s9, 2
    %s16 = sadd.s32 %s9, 1
    %s17 = ssub.s32 %s9, %s16
    %p18 = scmp.eq.s32.totalorder %s17, 0
    %s20 = sadd.s32 %s19, 1
    %s21 = scalar_select %p18, %s19, %s20
    %p24 = pneg %p18
    %p25 = scmp.eq.s32.totalorder %s9, 3
    %p26 = por %p24, %p25
    %p27 = scmp.ne.s32.totalorder %s19, %s22
    %p28 = scmp.eq.s32.totalorder %s9, 0
    %p29 = por %p27, %p28
    %p30 = scmp.ne.s32.totalorder %s19, %s22
    %p31 = scmp.eq.s32.totalorder %s14, 3
    %p32 = por %p30, %p31
    %p33 = scmp.ne.s32.totalorder %s22, %s23
    %p34 = scmp.eq.s32.totalorder %s14, 0
    %p35 = por %p33, %p34
    %p36 = scmp.ne.s32.totalorder %s22, %s23
    %p37 = scmp.eq.s32.totalorder %s15, 3
    %p38 = por %p36, %p37
    %p40 = scmp.ne.s32.totalorder %s23, %s39
    %p41 = scmp.eq.s32.totalorder %s15, 0
    %p42 = por %p40, %p41
    %s44 = sadd.s32 %s43, 1
    %p47 = scmp.eq.s32.totalorder %s9, 3
    %p48 = scmp.ne.s32.totalorder %s43, %s45
    %p49 = scmp.eq.s32.totalorder %s9, 0
    %p50 = por %p48, %p49
    %p51 = scmp.ne.s32.totalorder %s43, %s45
    %p52 = scmp.eq.s32.totalorder %s14, 3
    %p53 = por %p51, %p52
    %p54 = scmp.ne.s32.totalorder %s45, %s46
    %p55 = scmp.eq.s32.totalorder %s14, 0
    %p56 = por %p54, %p55
    %p57 = scmp.ne.s32.totalorder %s45, %s46
    %p58 = scmp.eq.s32.totalorder %s15, 3
    %p59 = por %p57, %p58
    %p61 = scmp.ne.s32.totalorder %s46, %s60
    %p62 = scmp.eq.s32.totalorder %s15, 0
    %p63 = por %p61, %p62
    %s65 = sadd.s32 %s64, 1
    %p68 = scmp.eq.s32.totalorder %s9, 3
    %p69 = scmp.ne.s32.totalorder %s64, %s66
    %p70 = scmp.eq.s32.totalorder %s9, 0
    %p71 = por %p69, %p70
    %p72 = scmp.ne.s32.totalorder %s64, %s66
    %p73 = scmp.eq.s32.totalorder %s14, 3
    %p74 = por %p72, %p73
    %p75 = scmp.ne.s32.totalorder %s66, %s67
    %p76 = scmp.eq.s32.totalorder %s14, 0
    %p77 = por %p75, %p76
    %p78 = scmp.ne.s32.totalorder %s66, %s67
    %p79 = scmp.eq.s32.totalorder %s15, 3
    %p80 = por %p78, %p79
    %p82 = scmp.ne.s32.totalorder %s67, %s81
    %p83 = scmp.eq.s32.totalorder %s15, 0
    %p84 = por %p82, %p83
    %s85 = ssub.s32 %s9, %s16
    %p86 = scmp.eq.s32.totalorder %s85, 0
    %s88 = sadd.s32 %s87, 1
    %s89 = scalar_select %p86, %s87, %s88
    %p92 = pneg %p86
    %p93 = scmp.eq.s32.totalorder %s9, 3
    %p94 = por %p92, %p93
    %p95 = scmp.ne.s32.totalorder %s87, %s90
    %p96 = scmp.eq.s32.totalorder %s9, 0
    %p97 = por %p95, %p96
    %p98 = scmp.ne.s32.totalorder %s87, %s90
    %p99 = scmp.eq.s32.totalorder %s14, 3
    %p100 = por %p98, %p99
    %p101 = scmp.ne.s32.totalorder %s90, %s91
    %p102 = scmp.eq.s32.totalorder %s14, 0
    %p103 = por %p101, %p102
    %p104 = scmp.ne.s32.totalorder %s90, %s91
    %p105 = scmp.eq.s32.totalorder %s15, 3
    %p106 = por %p104, %p105
    %p108 = scmp.ne.s32.totalorder %s91, %s107
    %p109 = scmp.eq.s32.totalorder %s15, 0
    %p110 = por %p108, %p109
    %p111 = scmp.le.s32.totalorder 1, %s9
    %p112 = scmp.lt.s32.totalorder %s9, 5
    %p113 = pnand %p111, %p112
    %p114 = pneg %p113
    // Predicated region
    $region9: #{encoder_forward.3} parent=5 // pred_check
      _
    $region10: #{encoder_forward.3} parent=5 // pred_check_branch
      %116 = sbr.rel (%p113) target = $region12
    $region11: #{encoder_forward.3} parent=5 // pred_region
      %s117 = ssub.s32 %s9, 1
      // Predicated region
      $region13: #{encoder_forward.3} parent=11 // pred_check
        %p118 = pneg %p56
      $region14: #{encoder_forward.3} parent=11 // pred_check_branch
        %120 = sbr.rel (%p118) target = $region16
      $region15: #{encoder_forward.3} parent=11 // pred_region
        _
      $region16: #{encoder_forward.3} parent=11 // pred_fallthru
        _
      // Predicated region
      $region17: #{encoder_forward.3} parent=11 // pred_check
        %p121 = pneg %p77
      $region18: #{encoder_forward.3} parent=11 // pred_check_branch
        %123 = sbr.rel (%p121) target = $region20
      $region19: #{encoder_forward.3} parent=11 // pred_region
        _
      $region20: #{encoder_forward.3} parent=11 // pred_fallthru
        _
    $region12: #{encoder_forward.3} parent=5 // pred_fallthru
      _
    %p124 = scmp.lt.s32.totalorder %s9, 4
    // Predicated region
    $region21: #{encoder_forward.3} parent=5 // pred_check
      %p125 = pneg %p124
    $region22: #{encoder_forward.3} parent=5 // pred_check_branch
      %127 = sbr.rel (%p125) target = $region24
    $region23: #{encoder_forward.3} parent=5 // pred_region
      // Predicated region
      $region25: #{encoder_forward.3} parent=23 // pred_check
        %p128 = pneg %p29
      $region26: #{encoder_forward.3} parent=23 // pred_check_branch
        %130 = sbr.rel (%p128) target = $region28
      $region27: #{encoder_forward.3} parent=23 // pred_region
        %s131 = smul.u32 32, %s9
        %p132 = scmp.lt.s32.totalorder %s131, 127
        %s133 = scalar_select %p132, %s131, 127
        %s134 = smul.addr %s133, 2
        %s135 = smul.addr %s134, 8
        %s136 = scalar_lea.vmem %s0, %s135
        %s137 = smul.u32 32, %s9
      $region28: #{encoder_forward.3} parent=23 // pred_fallthru
        _
    $region24: #{encoder_forward.3} parent=5 // pred_fallthru
      _
    %p138 = scmp.le.s32.totalorder 1, %s9
    %p139 = scmp.lt.s32.totalorder %s9, 5
    %p140 = pnand %p138, %p139
    %p141 = pneg %p140
    // Predicated region
    $region29: #{encoder_forward.3} parent=5 // pred_check
      _
    $region30: #{encoder_forward.3} parent=5 // pred_check_branch
      %143 = sbr.rel (%p140) target = $region32
    $region31: #{encoder_forward.3} parent=5 // pred_region
      %s144 = ssub.s32 %s9, 1
      %s145 = smul.u32 32, %s14
      %p146 = scmp.lt.s32.totalorder %s145, 127
      %s147 = scalar_select %p146, %s145, 127
      %s148 = smul.addr %s147, 2
      %s149 = smul.addr %s148, 8
      %s150 = scalar_lea.vmem %s0, %s149
      %p151 = pneg %p35
      %p152 = pneg %p32
      %p153 = pneg %p56
      %p154 = pneg %p53
      %p155 = pneg %p77
      %p156 = pneg %p74
      %p157 = pneg %p103
      %p158 = pneg %p100
      %s159 = smul.u32 32, %s14
      %p160 = scmp.lt.s32.totalorder %s159, 127
      %s161 = scalar_select %p160, %s159, 127
      %s162 = smul.addr %s161, 2
      %s163 = smul.addr %s162, 8
      %s164 = scalar_lea.vmem %s3, %s163
      %s165 = smul.u32 32, %s14
      %p166 = scmp.lt.s32.totalorder %s165, 127
      %s167 = scalar_select %p166, %s165, 127
      %s168 = smul.addr %s167, 2
      %s169 = smul.addr %s168, 8
      %s170 = scalar_lea.vmem %s0, %s169
      %s171 = smul.u32 32, %s14
      %s172 = smul.u32 32, %s14
      %p173 = scmp.lt.s32.totalorder %s172, 127
      %s174 = scalar_select %p173, %s172, 127
      %s175 = smul.addr %s174, 2
      %s176 = smul.addr %s175, 8
      %s177 = scalar_lea.vmem %s3, %s176
      %s178 = smul.u32 32, %s14
      %v179 = vld [vmem:[%s170] sm:$0xff]
      %v180 = vld [vmem:[%s170 + $0x8] sm:$0xff]
      %v181 = vld [vmem:[%s170 + $0x10] sm:$0xff]
      %v182 = vld [vmem:[%s170 + $0x18] sm:$0xff]
      %v183 = vld [vmem:[%s170 + $0x20] sm:$0xff]
      %v184 = vld [vmem:[%s170 + $0x28] sm:$0xff]
      %v185 = vld [vmem:[%s170 + $0x30] sm:$0xff]
      %v186 = vld [vmem:[%s170 + $0x38] sm:$0xff]
      %v187 = vld [vmem:[%s170 + $0x40] sm:$0xff]
      %v188 = vld [vmem:[%s170 + $0x48] sm:$0xff]
      %v189 = vld [vmem:[%s170 + $0x50] sm:$0xff]
      %v190 = vld [vmem:[%s170 + $0x58] sm:$0xff]
      %v191 = vld [vmem:[%s170 + $0x60] sm:$0xff]
      %v192 = vld [vmem:[%s170 + $0x68] sm:$0xff]
      %v193 = vld [vmem:[%s170 + $0x70] sm:$0xff]
      %v194 = vld [vmem:[%s170 + $0x78] sm:$0xff]
      %v195 = vld [vmem:[%s170 + $0x80] sm:$0xff]
      %v196 = vld [vmem:[%s170 + $0x88] sm:$0xff]
      %v197 = vld [vmem:[%s170 + $0x90] sm:$0xff]
      %v198 = vld [vmem:[%s170 + $0x98] sm:$0xff]
      %v199 = vld [vmem:[%s170 + $0xa0] sm:$0xff]
      %v200 = vld [vmem:[%s170 + $0xa8] sm:$0xff]
      %v201 = vld [vmem:[%s170 + $0xb0] sm:$0xff]
      %v202 = vld [vmem:[%s170 + $0xb8] sm:$0xff]
      %v203 = vld [vmem:[%s170 + $0xc0] sm:$0xff]
      %v204 = vld [vmem:[%s170 + $0xc8] sm:$0xff]
      %v205 = vld [vmem:[%s170 + $0xd0] sm:$0xff]
      %v206 = vld [vmem:[%s170 + $0xd8] sm:$0xff]
      %v207 = vld [vmem:[%s170 + $0xe0] sm:$0xff]
      %v208 = vld [vmem:[%s170 + $0xe8] sm:$0xff]
      %v209 = vld [vmem:[%s170 + $0xf0] sm:$0xff]
      %v210 = vld [vmem:[%s170 + $0xf8] sm:$0xff]
      %v211 = vld [vmem:[%s170 + $0x100] sm:$0xff]
      %v212 = vld [vmem:[%s170 + $0x108] sm:$0xff]
      %v213 = vld [vmem:[%s170 + $0x110] sm:$0xff]
      %v214 = vld [vmem:[%s170 + $0x118] sm:$0xff]
      %v215 = vld [vmem:[%s170 + $0x120] sm:$0xff]
      %v216 = vld [vmem:[%s170 + $0x128] sm:$0xff]
      %v217 = vld [vmem:[%s170 + $0x130] sm:$0xff]
      %v218 = vld [vmem:[%s170 + $0x138] sm:$0xff]
      %v219 = vld [vmem:[%s170 + $0x140] sm:$0xff]
      %v220 = vld [vmem:[%s170 + $0x148] sm:$0xff]
      %v221 = vld [vmem:[%s170 + $0x150] sm:$0xff]
      %v222 = vld [vmem:[%s170 + $0x158] sm:$0xff]
      %v223 = vld [vmem:[%s170 + $0x160] sm:$0xff]
      %v224 = vld [vmem:[%s170 + $0x168] sm:$0xff]
      %v225 = vld [vmem:[%s170 + $0x170] sm:$0xff]
      %v226 = vld [vmem:[%s170 + $0x178] sm:$0xff]
      %v227 = vld [vmem:[%s170 + $0x180] sm:$0xff]
      %v228 = vld [vmem:[%s170 + $0x188] sm:$0xff]
      %v229 = vld [vmem:[%s170 + $0x190] sm:$0xff]
      %v230 = vld [vmem:[%s170 + $0x198] sm:$0xff]
      %v231 = vld [vmem:[%s170 + $0x1a0] sm:$0xff]
      %v232 = vld [vmem:[%s170 + $0x1a8] sm:$0xff]
      %v233 = vld [vmem:[%s170 + $0x1b0] sm:$0xff]
      %v234 = vld [vmem:[%s170 + $0x1b8] sm:$0xff]
      %v235 = vld [vmem:[%s170 + $0x1c0] sm:$0xff]
      %v236 = vld [vmem:[%s170 + $0x1c8] sm:$0xff]
      %v237 = vld [vmem:[%s170 + $0x1d0] sm:$0xff]
      %v238 = vld [vmem:[%s170 + $0x1d8] sm:$0xff]
      %v239 = vld [vmem:[%s170 + $0x1e0] sm:$0xff]
      %v240 = vld [vmem:[%s170 + $0x1e8] sm:$0xff]
      %v241 = vld [vmem:[%s170 + $0x1f0] sm:$0xff]
      %v242 = vld [vmem:[%s170 + $0x1f8] sm:$0xff]
      %v243 = vld [vmem:[%s1] sm:$0x3]
      %v245 = vlaneseq
      %v246 = vshrl.u32 %v245, 7
      %v247 = vsub.s32 0, %v246
      %v248 = vrot.slane %v243, %v247
      %v249 = vlaneseq
      %v250 = vshrl.u32 %v249, 7
      %v251 = vsub.s32 1, %v250
      %v252 = vrot.slane %v243, %v251
      %v255 = vsub.f32 %v179, %v248
      %v256 = vsub.f32 %v180, %v252
      %v257 = vsub.f32 %v181, %v248
      %v258 = vsub.f32 %v182, %v252
      %v259 = vsub.f32 %v183, %v248
      %v260 = vsub.f32 %v184, %v252
      %v261 = vsub.f32 %v185, %v248
      %v262 = vsub.f32 %v186, %v252
      %v263 = vsub.f32 %v187, %v248
      %v264 = vsub.f32 %v188, %v252
      %v265 = vsub.f32 %v189, %v248
      %v266 = vsub.f32 %v190, %v252
      %v267 = vsub.f32 %v191, %v248
      %v268 = vsub.f32 %v192, %v252
      %v269 = vsub.f32 %v193, %v248
      %v270 = vsub.f32 %v194, %v252
      %v271 = vsub.f32 %v195, %v248
      %v272 = vsub.f32 %v196, %v252
      %v273 = vsub.f32 %v197, %v248
      %v274 = vsub.f32 %v198, %v252
      %v275 = vsub.f32 %v199, %v248
      %v276 = vsub.f32 %v200, %v252
      %v277 = vsub.f32 %v201, %v248
      %v278 = vsub.f32 %v202, %v252
      %v279 = vsub.f32 %v203, %v248
      %v280 = vsub.f32 %v204, %v252
      %v281 = vsub.f32 %v205, %v248
      %v282 = vsub.f32 %v206, %v252
      %v283 = vsub.f32 %v207, %v248
      %v284 = vsub.f32 %v208, %v252
      %v285 = vsub.f32 %v209, %v248
      %v286 = vsub.f32 %v210, %v252
      %v287 = vsub.f32 %v211, %v248
      %v288 = vsub.f32 %v212, %v252
      %v289 = vsub.f32 %v213, %v248
      %v290 = vsub.f32 %v214, %v252
      %v291 = vsub.f32 %v215, %v248
      %v292 = vsub.f32 %v216, %v252
      %v293 = vsub.f32 %v217, %v248
      %v294 = vsub.f32 %v218, %v252
      %v295 = vsub.f32 %v219, %v248
      %v296 = vsub.f32 %v220, %v252
      %v297 = vsub.f32 %v221, %v248
      %v298 = vsub.f32 %v222, %v252
      %v299 = vsub.f32 %v223, %v248
      %v300 = vsub.f32 %v224, %v252
      %v301 = vsub.f32 %v225, %v248
      %v302 = vsub.f32 %v226, %v252
      %v303 = vsub.f32 %v227, %v248
      %v304 = vsub.f32 %v228, %v252
      %v305 = vsub.f32 %v229, %v248
      %v306 = vsub.f32 %v230, %v252
      %v307 = vsub.f32 %v231, %v248
      %v308 = vsub.f32 %v232, %v252
      %v309 = vsub.f32 %v233, %v248
      %v310 = vsub.f32 %v234, %v252
      %v311 = vsub.f32 %v235, %v248
      %v312 = vsub.f32 %v236, %v252
      %v313 = vsub.f32 %v237, %v248
      %v314 = vsub.f32 %v238, %v252
      %v315 = vsub.f32 %v239, %v248
      %v316 = vsub.f32 %v240, %v252
      %v317 = vsub.f32 %v241, %v248
      %v318 = vsub.f32 %v242, %v252
      %v319 = vld [vmem:[%s2] sm:$0x3]
      %v321 = vlaneseq
      %v322 = vshrl.u32 %v321, 7
      %v323 = vsub.s32 0, %v322
      %v324 = vrot.slane %v319, %v323
      %v325 = vlaneseq
      %v326 = vshrl.u32 %v325, 7
      %v327 = vsub.s32 1, %v326
      %v328 = vrot.slane %v319, %v327
      %v331 = vmul.f32 %v255, %v324
      %v332 = vmul.f32 %v256, %v328
      %v333 = vmul.f32 %v257, %v324
      %v334 = vmul.f32 %v258, %v328
      %v335 = vmul.f32 %v259, %v324
      %v336 = vmul.f32 %v260, %v328
      %v337 = vmul.f32 %v261, %v324
      %v338 = vmul.f32 %v262, %v328
      %v339 = vmul.f32 %v263, %v324
      %v340 = vmul.f32 %v264, %v328
      %v341 = vmul.f32 %v265, %v324
      %v342 = vmul.f32 %v266, %v328
      %v343 = vmul.f32 %v267, %v324
      %v344 = vmul.f32 %v268, %v328
      %v345 = vmul.f32 %v269, %v324
      %v346 = vmul.f32 %v270, %v328
      %v347 = vmul.f32 %v271, %v324
      %v348 = vmul.f32 %v272, %v328
      %v349 = vmul.f32 %v273, %v324
      %v350 = vmul.f32 %v274, %v328
      %v351 = vmul.f32 %v275, %v324
      %v352 = vmul.f32 %v276, %v328
      %v353 = vmul.f32 %v277, %v324
      %v354 = vmul.f32 %v278, %v328
      %v355 = vmul.f32 %v279, %v324
      %v356 = vmul.f32 %v280, %v328
      %v357 = vmul.f32 %v281, %v324
      %v358 = vmul.f32 %v282, %v328
      %v359 = vmul.f32 %v283, %v324
      %v360 = vmul.f32 %v284, %v328
      %v361 = vmul.f32 %v285, %v324
      %v362 = vmul.f32 %v286, %v328
      %v363 = vmul.f32 %v287, %v324
      %v364 = vmul.f32 %v288, %v328
      %v365 = vmul.f32 %v289, %v324
      %v366 = vmul.f32 %v290, %v328
      %v367 = vmul.f32 %v291, %v324
      %v368 = vmul.f32 %v292, %v328
      %v369 = vmul.f32 %v293, %v324
      %v370 = vmul.f32 %v294, %v328
      %v371 = vmul.f32 %v295, %v324
      %v372 = vmul.f32 %v296, %v328
      %v373 = vmul.f32 %v297, %v324
      %v374 = vmul.f32 %v298, %v328
      %v375 = vmul.f32 %v299, %v324
      %v376 = vmul.f32 %v300, %v328
      %v377 = vmul.f32 %v301, %v324
      %v378 = vmul.f32 %v302, %v328
      %v379 = vmul.f32 %v303, %v324
      %v380 = vmul.f32 %v304, %v328
      %v381 = vmul.f32 %v305, %v324
      %v382 = vmul.f32 %v306, %v328
      %v383 = vmul.f32 %v307, %v324
      %v384 = vmul.f32 %v308, %v328
      %v385 = vmul.f32 %v309, %v324
      %v386 = vmul.f32 %v310, %v328
      %v387 = vmul.f32 %v311, %v324
      %v388 = vmul.f32 %v312, %v328
      %v389 = vmul.f32 %v313, %v324
      %v390 = vmul.f32 %v314, %v328
      %v391 = vmul.f32 %v315, %v324
      %v392 = vmul.f32 %v316, %v328
      %v393 = vmul.f32 %v317, %v324
      %v394 = vmul.f32 %v318, %v328
      %395 = vst [vmem:[%s177] sm:$0xff] %v331
      %396 = vst [vmem:[%s177 + $0x10] sm:$0xff] %v333
      %397 = vst [vmem:[%s177 + $0x20] sm:$0xff] %v335
      %398 = vst [vmem:[%s177 + $0x30] sm:$0xff] %v337
      %399 = vst [vmem:[%s177 + $0x40] sm:$0xff] %v339
      %400 = vst [vmem:[%s177 + $0x50] sm:$0xff] %v341
      %401 = vst [vmem:[%s177 + $0x60] sm:$0xff] %v343
      %402 = vst [vmem:[%s177 + $0x70] sm:$0xff] %v345
      %403 = vst [vmem:[%s177 + $0x80] sm:$0xff] %v347
      %404 = vst [vmem:[%s177 + $0x90] sm:$0xff] %v349
      %405 = vst [vmem:[%s177 + $0xa0] sm:$0xff] %v351
      %406 = vst [vmem:[%s177 + $0xb0] sm:$0xff] %v353
      %407 = vst [vmem:[%s177 + $0xc0] sm:$0xff] %v355
      %408 = vst [vmem:[%s177 + $0xd0] sm:$0xff] %v357
      %409 = vst [vmem:[%s177 + $0xe0] sm:$0xff] %v359
      %410 = vst [vmem:[%s177 + $0xf0] sm:$0xff] %v361
      %411 = vst [vmem:[%s177 + $0x100] sm:$0xff] %v363
      %412 = vst [vmem:[%s177 + $0x110] sm:$0xff] %v365
      %413 = vst [vmem:[%s177 + $0x120] sm:$0xff] %v367
      %414 = vst [vmem:[%s177 + $0x130] sm:$0xff] %v369
      %415 = vst [vmem:[%s177 + $0x140] sm:$0xff] %v371
      %416 = vst [vmem:[%s177 + $0x150] sm:$0xff] %v373
      %417 = vst [vmem:[%s177 + $0x160] sm:$0xff] %v375
      %418 = vst [vmem:[%s177 + $0x170] sm:$0xff] %v377
      %419 = vst [vmem:[%s177 + $0x180] sm:$0xff] %v379
      %420 = vst [vmem:[%s177 + $0x190] sm:$0xff] %v381
      %421 = vst [vmem:[%s177 + $0x1a0] sm:$0xff] %v383
      %422 = vst [vmem:[%s177 + $0x1b0] sm:$0xff] %v385
      %423 = vst [vmem:[%s177 + $0x1c0] sm:$0xff] %v387
      %424 = vst [vmem:[%s177 + $0x1d0] sm:$0xff] %v389
      %425 = vst [vmem:[%s177 + $0x1e0] sm:$0xff] %v391
      %426 = vst [vmem:[%s177 + $0x1f0] sm:$0xff] %v393
      %v427 = vmul.f32 %v332, 0.5
      %v428 = vmul.f32 %v334, 0.5
      %v429 = vmul.f32 %v336, 0.5
      %v430 = vmul.f32 %v338, 0.5
      %v431 = vmul.f32 %v340, 0.5
      %v432 = vmul.f32 %v342, 0.5
      %v433 = vmul.f32 %v344, 0.5
      %v434 = vmul.f32 %v346, 0.5
      %v435 = vmul.f32 %v348, 0.5
      %v436 = vmul.f32 %v350, 0.5
      %v437 = vmul.f32 %v352, 0.5
      %v438 = vmul.f32 %v354, 0.5
      %v439 = vmul.f32 %v356, 0.5
      %v440 = vmul.f32 %v358, 0.5
      %v441 = vmul.f32 %v360, 0.5
      %v442 = vmul.f32 %v362, 0.5
      %v443 = vmul.f32 %v364, 0.5
      %v444 = vmul.f32 %v366, 0.5
      %v445 = vmul.f32 %v368, 0.5
      %v446 = vmul.f32 %v370, 0.5
      %v447 = vmul.f32 %v372, 0.5
      %v448 = vmul.f32 %v374, 0.5
      %v449 = vmul.f32 %v376, 0.5
      %v450 = vmul.f32 %v378, 0.5
      %v451 = vmul.f32 %v380, 0.5
      %v452 = vmul.f32 %v382, 0.5
      %v453 = vmul.f32 %v384, 0.5
      %v454 = vmul.f32 %v386, 0.5
      %v455 = vmul.f32 %v388, 0.5
      %v456 = vmul.f32 %v390, 0.5
      %v457 = vmul.f32 %v392, 0.5
      %v458 = vmul.f32 %v394, 0.5
      %v459 = vmul.f32 %v427, 1.442695
      %v460 = vpow.pop %v459
      %v461 = vmul.f32 %v428, 1.442695
      %v462 = vpow.pop %v461
      %v463 = vmul.f32 %v429, 1.442695
      %v464 = vpow.pop %v463
      %v465 = vmul.f32 %v430, 1.442695
      %v466 = vpow.pop %v465
      %v467 = vmul.f32 %v431, 1.442695
      %v468 = vpow.pop %v467
      %v469 = vmul.f32 %v432, 1.442695
      %v470 = vpow.pop %v469
      %v471 = vmul.f32 %v433, 1.442695
      %v472 = vpow.pop %v471
      %v473 = vmul.f32 %v434, 1.442695
      %v474 = vpow.pop %v473
      %v475 = vmul.f32 %v435, 1.442695
      %v476 = vpow.pop %v475
      %v477 = vmul.f32 %v436, 1.442695
      %v478 = vpow.pop %v477
      %v479 = vmul.f32 %v437, 1.442695
      %v480 = vpow.pop %v479
      %v481 = vmul.f32 %v438, 1.442695
      %v482 = vpow.pop %v481
      %v483 = vmul.f32 %v439, 1.442695
      %v484 = vpow.pop %v483
      %v485 = vmul.f32 %v440, 1.442695
      %v486 = vpow.pop %v485
      %v487 = vmul.f32 %v441, 1.442695
      %v488 = vpow.pop %v487
      %v489 = vmul.f32 %v442, 1.442695
      %v490 = vpow.pop %v489
      %v491 = vmul.f32 %v443, 1.442695
      %v492 = vpow.pop %v491
      %v493 = vmul.f32 %v444, 1.442695
      %v494 = vpow.pop %v493
      %v495 = vmul.f32 %v445, 1.442695
      %v496 = vpow.pop %v495
      %v497 = vmul.f32 %v446, 1.442695
      %v498 = vpow.pop %v497
      %v499 = vmul.f32 %v447, 1.442695
      %v500 = vpow.pop %v499
      %v501 = vmul.f32 %v448, 1.442695
      %v502 = vpow.pop %v501
      %v503 = vmul.f32 %v449, 1.442695
      %v504 = vpow.pop %v503
      %v505 = vmul.f32 %v450, 1.442695
      %v506 = vpow.pop %v505
      %v507 = vmul.f32 %v451, 1.442695
      %v508 = vpow.pop %v507
      %v509 = vmul.f32 %v452, 1.442695
      %v510 = vpow.pop %v509
      %v511 = vmul.f32 %v453, 1.442695
      %v512 = vpow.pop %v511
      %v513 = vmul.f32 %v454, 1.442695
      %v514 = vpow.pop %v513
      %v515 = vmul.f32 %v455, 1.442695
      %v516 = vpow.pop %v515
      %v517 = vmul.f32 %v456, 1.442695
      %v518 = vpow.pop %v517
      %v519 = vmul.f32 %v457, 1.442695
      %v520 = vpow.pop %v519
      %v521 = vmul.f32 %v458, 1.442695
      %v522 = vpow.pop %v521
      %523 = vst [vmem:[%s177 + $0x8] sm:$0xff] %v460
      %524 = vst [vmem:[%s177 + $0x18] sm:$0xff] %v462
      %525 = vst [vmem:[%s177 + $0x28] sm:$0xff] %v464
      %526 = vst [vmem:[%s177 + $0x38] sm:$0xff] %v466
      %527 = vst [vmem:[%s177 + $0x48] sm:$0xff] %v468
      %528 = vst [vmem:[%s177 + $0x58] sm:$0xff] %v470
      %529 = vst [vmem:[%s177 + $0x68] sm:$0xff] %v472
      %530 = vst [vmem:[%s177 + $0x78] sm:$0xff] %v474
      %531 = vst [vmem:[%s177 + $0x88] sm:$0xff] %v476
      %532 = vst [vmem:[%s177 + $0x98] sm:$0xff] %v478
      %533 = vst [vmem:[%s177 + $0xa8] sm:$0xff] %v480
      %534 = vst [vmem:[%s177 + $0xb8] sm:$0xff] %v482
      %535 = vst [vmem:[%s177 + $0xc8] sm:$0xff] %v484
      %536 = vst [vmem:[%s177 + $0xd8] sm:$0xff] %v486
      %537 = vst [vmem:[%s177 + $0xe8] sm:$0xff] %v488
      %538 = vst [vmem:[%s177 + $0xf8] sm:$0xff] %v490
      %539 = vst [vmem:[%s177 + $0x108] sm:$0xff] %v492
      %540 = vst [vmem:[%s177 + $0x118] sm:$0xff] %v494
      %541 = vst [vmem:[%s177 + $0x128] sm:$0xff] %v496
      %542 = vst [vmem:[%s177 + $0x138] sm:$0xff] %v498
      %543 = vst [vmem:[%s177 + $0x148] sm:$0xff] %v500
      %544 = vst [vmem:[%s177 + $0x158] sm:$0xff] %v502
      %545 = vst [vmem:[%s177 + $0x168] sm:$0xff] %v504
      %546 = vst [vmem:[%s177 + $0x178] sm:$0xff] %v506
      %547 = vst [vmem:[%s177 + $0x188] sm:$0xff] %v508
      %548 = vst [vmem:[%s177 + $0x198] sm:$0xff] %v510
      %549 = vst [vmem:[%s177 + $0x1a8] sm:$0xff] %v512
      %550 = vst [vmem:[%s177 + $0x1b8] sm:$0xff] %v514
      %551 = vst [vmem:[%s177 + $0x1c8] sm:$0xff] %v516
      %552 = vst [vmem:[%s177 + $0x1d8] sm:$0xff] %v518
      %553 = vst [vmem:[%s177 + $0x1e8] sm:$0xff] %v520
      %554 = vst [vmem:[%s177 + $0x1f8] sm:$0xff] %v522
      %s555 = smul.u32 32, %s14
      %p556 = scmp.lt.s32.totalorder %s555, 127
      %s557 = scalar_select %p556, %s555, 127
      %s558 = smul.addr %s557, 2
      %s559 = smul.addr %s558, 8
      %s560 = scalar_lea.vmem %s3, %s559
      // Predicated region
      $region33: #{encoder_forward.3} parent=31 // pred_check
        %p561 = pneg %p100
      $region34: #{encoder_forward.3} parent=31 // pred_check_branch
        %563 = sbr.rel (%p561) target = $region36
      $region35: #{encoder_forward.3} parent=31 // pred_region
        %s564 = smul.u32 32, %s14
      $region36: #{encoder_forward.3} parent=31 // pred_fallthru
        _
    $region32: #{encoder_forward.3} parent=5 // pred_fallthru
      _
    %p565 = scmp.le.s32.totalorder 2, %s9
    // Predicated region
    $region37: #{encoder_forward.3} parent=5 // pred_check
      %p566 = pneg %p565
    $region38: #{encoder_forward.3} parent=5 // pred_check_branch
      %568 = sbr.rel (%p566) target = $region40
    $region39: #{encoder_forward.3} parent=5 // pred_region
      %s569 = ssub.s32 %s9, 2
      // Predicated region
      $region41: #{encoder_forward.3} parent=39 // pred_check
        %p570 = pneg %p106
      $region42: #{encoder_forward.3} parent=39 // pred_check_branch
        %572 = sbr.rel (%p570) target = $region44
      $region43: #{encoder_forward.3} parent=39 // pred_region
        %s573 = smul.u32 32, %s15
        %p574 = scmp.lt.s32.totalorder %s573, 127
        %s575 = scalar_select %p574, %s573, 127
        %s576 = smul.addr %s575, 2
        %s577 = smul.addr %s576, 8
        %s578 = scalar_lea.vmem %s3, %s577
      $region44: #{encoder_forward.3} parent=39 // pred_fallthru
        _
    $region40: #{encoder_forward.3} parent=5 // pred_fallthru
      _
  $region6: #{encoder_forward.3} parent=0 // loop_footer
    %s13 = sadd.s32 1, %s9
  $region7: #{encoder_forward.3} parent=0 // loop_footer_branch
    %8 = sbr.rel target = $region3
  $region8: #{encoder_forward.3} parent=0 // loop_exit
    _

// kernel: encoder_forward.2
$region0: #{encoder_forward.2}
  #allocation0 [shape = 'u32[]', space=smem, size = 0x4, offset = 0x4, fixed_abs, tag = 'smem constant byte address 0x4 - core index']
  #allocation1 [shape = 'u32[144,128]{1,0:T(1,128)}', space=vmem, size = 0x12000, scoped, tag = 'internal scratch']
  %s0 = inlined_call_operand.vmem [shape: f32[1024,128], index: 0, kind: input, shape index: {}]
  %s1 = inlined_call_operand.vmem [shape: bf16[128,128], index: 1, kind: input, shape index: {}]
  %s2 = inlined_call_operand.vmem [shape: f32[1,128], index: 2, kind: input, shape index: {}]
  %s3 = inlined_call_operand.vmem [shape: bf16[128,128], index: 3, kind: input, shape index: {}]
  %s4 = inlined_call_operand.vmem [shape: f32[1,128], index: 4, kind: input, shape index: {}]
  %s5 = inlined_call_operand.vmem [shape: bf16[128,256], index: 5, kind: input, shape index: {}]
  %s6 = inlined_call_operand.vmem [shape: f32[1,256], index: 6, kind: input, shape index: {}]
  %s7 = inlined_call_operand.vmem [shape: f32[1024,256], index: 7, kind: output, shape index: {0}]
  %s8 = inlined_call_operand.vmem [shape: f32[4,1,256], index: 8, kind: output, shape index: {1}]
  %s9 = inlined_call_operand.vmem [shape: f32[4,1,256], index: 9, kind: output, shape index: {2}]
  %10 = xla_tuple %s7, %s8, %s9
  %s11 = sld [smem:[#allocation0]]
  $region77: #{encoder_forward.2} parent=0
    _
  %s13 = ssub.s32 1, %s11
  %s14 = scalar_select 0, %s13, %s11
  loop: start=0, step=1, limit=6
  $region2: #{encoder_forward.2} parent=0 // loop_pre_header
    _
  $region3: #{encoder_forward.2} parent=0 // loop_header
    %s16 = sphi 0, %s20
    %p17 = scmp.ge.s32.totalorder %s16, 6
    %s26 = sphi 0, %s28
    %s29 = sphi 0, %s26
    %s30 = sphi 0, %s29
    %s46 = sphi 0, %s30
    %s50 = sphi 0, %s50
    %s52 = sphi 0, %s50
    %s53 = sphi 0, %s52
    %s67 = sphi 0, %s53
    %s71 = sphi 0, %s71
    %s73 = sphi 0, %s71
    %s74 = sphi 0, %s73
    %s88 = sphi 0, %s74
    %s92 = sphi 0, %s92
    %s94 = sphi 0, %s92
    %s95 = sphi 0, %s94
    %s109 = sphi 0, %s95
    %s113 = sphi 0, %s113
    %s115 = sphi 0, %s113
    %s116 = sphi 0, %s115
    %s130 = sphi 0, %s116
    %s134 = sphi 0, %s134
    %s136 = sphi 0, %s134
    %s137 = sphi 0, %s136
    %s151 = sphi 0, %s137
    %s155 = sphi 0, %s155
    %s157 = sphi 0, %s155
    %s158 = sphi 0, %s157
    %s172 = sphi 0, %s158
    %s178 = sphi 0, %s180
    %s181 = sphi 0, %s178
    %s182 = sphi 0, %s181
    %s198 = sphi 0, %s182
    %s204 = sphi 0, %s206
    %s207 = sphi 0, %s204
    %s208 = sphi 0, %s207
    %s224 = sphi 0, %s208
    %s230 = sphi 0, %s232
    %s233 = sphi 0, %s230
    %s234 = sphi 0, %s233
    %s250 = sphi 0, %s234
  $region4: #{encoder_forward.2} parent=0 // loop_header_branch
    %19 = sbr.rel (%p17) target = $region8
  $region5: #{encoder_forward.2} parent=0 // loop_body
    %s21 = ssub.s32 %s16, 1
    %s22 = ssub.s32 %s16, 2
    %s23 = sadd.s32 %s16, 1
    %s24 = ssub.s32 %s16, %s23
    %p25 = scmp.eq.s32.totalorder %s24, 0
    %s27 = sadd.s32 %s26, 1
    %s28 = scalar_select %p25, %s26, %s27
    %p31 = pneg %p25
    %p32 = scmp.eq.s32.totalorder %s16, 3
    %p33 = por %p31, %p32
    %p34 = scmp.ne.s32.totalorder %s26, %s29
    %p35 = scmp.eq.s32.totalorder %s16, 0
    %p36 = por %p34, %p35
    %p37 = scmp.ne.s32.totalorder %s26, %s29
    %p38 = scmp.eq.s32.totalorder %s21, 3
    %p39 = por %p37, %p38
    %p40 = scmp.ne.s32.totalorder %s29, %s30
    %p41 = scmp.eq.s32.totalorder %s21, 0
    %p42 = por %p40, %p41
    %p43 = scmp.ne.s32.totalorder %s29, %s30
    %p44 = scmp.eq.s32.totalorder %s22, 3
    %p45 = por %p43, %p44
    %p47 = scmp.ne.s32.totalorder %s30, %s46
    %p48 = scmp.eq.s32.totalorder %s22, 0
    %p49 = por %p47, %p48
    %s51 = sadd.s32 %s50, 1
    %p54 = scmp.eq.s32.totalorder %s16, 3
    %p55 = scmp.ne.s32.totalorder %s50, %s52
    %p56 = scmp.eq.s32.totalorder %s16, 0
    %p57 = por %p55, %p56
    %p58 = scmp.ne.s32.totalorder %s50, %s52
    %p59 = scmp.eq.s32.totalorder %s21, 3
    %p60 = por %p58, %p59
    %p61 = scmp.ne.s32.totalorder %s52, %s53
    %p62 = scmp.eq.s32.totalorder %s21, 0
    %p63 = por %p61, %p62
    %p64 = scmp.ne.s32.totalorder %s52, %s53
    %p65 = scmp.eq.s32.totalorder %s22, 3
    %p66 = por %p64, %p65
    %p68 = scmp.ne.s32.totalorder %s53, %s67
    %p69 = scmp.eq.s32.totalorder %s22, 0
    %p70 = por %p68, %p69
    %s72 = sadd.s32 %s71, 1
    %p75 = scmp.eq.s32.totalorder %s16, 3
    %p76 = scmp.ne.s32.totalorder %s71, %s73
    %p77 = scmp.eq.s32.totalorder %s16, 0
    %p78 = por %p76, %p77
    %p79 = scmp.ne.s32.totalorder %s71, %s73
    %p80 = scmp.eq.s32.totalorder %s21, 3
    %p81 = por %p79, %p80
    %p82 = scmp.ne.s32.totalorder %s73, %s74
    %p83 = scmp.eq.s32.totalorder %s21, 0
    %p84 = por %p82, %p83
    %p85 = scmp.ne.s32.totalorder %s73, %s74
    %p86 = scmp.eq.s32.totalorder %s22, 3
    %p87 = por %p85, %p86
    %p89 = scmp.ne.s32.totalorder %s74, %s88
    %p90 = scmp.eq.s32.totalorder %s22, 0
    %p91 = por %p89, %p90
    %s93 = sadd.s32 %s92, 1
    %p96 = scmp.eq.s32.totalorder %s16, 3
    %p97 = scmp.ne.s32.totalorder %s92, %s94
    %p98 = scmp.eq.s32.totalorder %s16, 0
    %p99 = por %p97, %p98
    %p100 = scmp.ne.s32.totalorder %s92, %s94
    %p101 = scmp.eq.s32.totalorder %s21, 3
    %p102 = por %p100, %p101
    %p103 = scmp.ne.s32.totalorder %s94, %s95
    %p104 = scmp.eq.s32.totalorder %s21, 0
    %p105 = por %p103, %p104
    %p106 = scmp.ne.s32.totalorder %s94, %s95
    %p107 = scmp.eq.s32.totalorder %s22, 3
    %p108 = por %p106, %p107
    %p110 = scmp.ne.s32.totalorder %s95, %s109
    %p111 = scmp.eq.s32.totalorder %s22, 0
    %p112 = por %p110, %p111
    %s114 = sadd.s32 %s113, 1
    %p117 = scmp.eq.s32.totalorder %s16, 3
    %p118 = scmp.ne.s32.totalorder %s113, %s115
    %p119 = scmp.eq.s32.totalorder %s16, 0
    %p120 = por %p118, %p119
    %p121 = scmp.ne.s32.totalorder %s113, %s115
    %p122 = scmp.eq.s32.totalorder %s21, 3
    %p123 = por %p121, %p122
    %p124 = scmp.ne.s32.totalorder %s115, %s116
    %p125 = scmp.eq.s32.totalorder %s21, 0
    %p126 = por %p124, %p125
    %p127 = scmp.ne.s32.totalorder %s115, %s116
    %p128 = scmp.eq.s32.totalorder %s22, 3
    %p129 = por %p127, %p128
    %p131 = scmp.ne.s32.totalorder %s116, %s130
    %p132 = scmp.eq.s32.totalorder %s22, 0
    %p133 = por %p131, %p132
    %s135 = sadd.s32 %s134, 1
    %p138 = scmp.eq.s32.totalorder %s16, 3
    %p139 = scmp.ne.s32.totalorder %s134, %s136
    %p140 = scmp.eq.s32.totalorder %s16, 0
    %p141 = por %p139, %p140
    %p142 = scmp.ne.s32.totalorder %s134, %s136
    %p143 = scmp.eq.s32.totalorder %s21, 3
    %p144 = por %p142, %p143
    %p145 = scmp.ne.s32.totalorder %s136, %s137
    %p146 = scmp.eq.s32.totalorder %s21, 0
    %p147 = por %p145, %p146
    %p148 = scmp.ne.s32.totalorder %s136, %s137
    %p149 = scmp.eq.s32.totalorder %s22, 3
    %p150 = por %p148, %p149
    %p152 = scmp.ne.s32.totalorder %s137, %s151
    %p153 = scmp.eq.s32.totalorder %s22, 0
    %p154 = por %p152, %p153
    %s156 = sadd.s32 %s155, 1
    %p159 = scmp.eq.s32.totalorder %s16, 3
    %p160 = scmp.ne.s32.totalorder %s155, %s157
    %p161 = scmp.eq.s32.totalorder %s16, 0
    %p162 = por %p160, %p161
    %p163 = scmp.ne.s32.totalorder %s155, %s157
    %p164 = scmp.eq.s32.totalorder %s21, 3
    %p165 = por %p163, %p164
    %p166 = scmp.ne.s32.totalorder %s157, %s158
    %p167 = scmp.eq.s32.totalorder %s21, 0
    %p168 = por %p166, %p167
    %p169 = scmp.ne.s32.totalorder %s157, %s158
    %p170 = scmp.eq.s32.totalorder %s22, 3
    %p171 = por %p169, %p170
    %p173 = scmp.ne.s32.totalorder %s158, %s172
    %p174 = scmp.eq.s32.totalorder %s22, 0
    %p175 = por %p173, %p174
    %s176 = ssub.s32 %s16, %s23
    %p177 = scmp.eq.s32.totalorder %s176, 0
    %s179 = sadd.s32 %s178, 1
    %s180 = scalar_select %p177, %s178, %s179
    %p183 = pneg %p177
    %p184 = scmp.eq.s32.totalorder %s16, 3
    %p185 = por %p183, %p184
    %p186 = scmp.ne.s32.totalorder %s178, %s181
    %p187 = scmp.eq.s32.totalorder %s16, 0
    %p188 = por %p186, %p187
    %p189 = scmp.ne.s32.totalorder %s178, %s181
    %p190 = scmp.eq.s32.totalorder %s21, 3
    %p191 = por %p189, %p190
    %p192 = scmp.ne.s32.totalorder %s181, %s182
    %p193 = scmp.eq.s32.totalorder %s21, 0
    %p194 = por %p192, %p193
    %p195 = scmp.ne.s32.totalorder %s181, %s182
    %p196 = scmp.eq.s32.totalorder %s22, 3
    %p197 = por %p195, %p196
    %p199 = scmp.ne.s32.totalorder %s182, %s198
    %p200 = scmp.eq.s32.totalorder %s22, 0
    %p201 = por %p199, %p200
    %s202 = ssub.s32 %s16, %s23
    %p203 = scmp.eq.s32.totalorder %s202, 0
    %s205 = sadd.s32 %s204, 1
    %s206 = scalar_select %p203, %s204, %s205
    %p209 = pneg %p203
    %p210 = scmp.eq.s32.totalorder %s16, 3
    %p211 = por %p209, %p210
    %p212 = scmp.ne.s32.totalorder %s204, %s207
    %p213 = scmp.eq.s32.totalorder %s16, 0
    %p214 = por %p212, %p213
    %p215 = scmp.ne.s32.totalorder %s204, %s207
    %p216 = scmp.eq.s32.totalorder %s21, 3
    %p217 = por %p215, %p216
    %p218 = scmp.ne.s32.totalorder %s207, %s208
    %p219 = scmp.eq.s32.totalorder %s21, 0
    %p220 = por %p218, %p219
    %p221 = scmp.ne.s32.totalorder %s207, %s208
    %p222 = scmp.eq.s32.totalorder %s22, 3
    %p223 = por %p221, %p222
    %p225 = scmp.ne.s32.totalorder %s208, %s224
    %p226 = scmp.eq.s32.totalorder %s22, 0
    %p227 = por %p225, %p226
    %s228 = ssub.s32 %s16, %s23
    %p229 = scmp.eq.s32.totalorder %s228, 0
    %s231 = sadd.s32 %s230, 1
    %s232 = scalar_select %p229, %s230, %s231
    %p235 = pneg %p229
    %p236 = scmp.eq.s32.totalorder %s16, 3
    %p237 = por %p235, %p236
    %p238 = scmp.ne.s32.totalorder %s230, %s233
    %p239 = scmp.eq.s32.totalorder %s16, 0
    %p240 = por %p238, %p239
    %p241 = scmp.ne.s32.totalorder %s230, %s233
    %p242 = scmp.eq.s32.totalorder %s21, 3
    %p243 = por %p241, %p242
    %p244 = scmp.ne.s32.totalorder %s233, %s234
    %p245 = scmp.eq.s32.totalorder %s21, 0
    %p246 = por %p244, %p245
    %p247 = scmp.ne.s32.totalorder %s233, %s234
    %p248 = scmp.eq.s32.totalorder %s22, 3
    %p249 = por %p247, %p248
    %p251 = scmp.ne.s32.totalorder %s234, %s250
    %p252 = scmp.eq.s32.totalorder %s22, 0
    %p253 = por %p251, %p252
    %p254 = scmp.le.s32.totalorder 1, %s16
    %p255 = scmp.lt.s32.totalorder %s16, 5
    %p256 = pnand %p254, %p255
    %p257 = pneg %p256
    // Predicated region
    $region9: #{encoder_forward.2} parent=5 // pred_check
      _
    $region10: #{encoder_forward.2} parent=5 // pred_check_branch
      %259 = sbr.rel (%p256) target = $region12
    $region11: #{encoder_forward.2} parent=5 // pred_region
      %s260 = ssub.s32 %s16, 1
      // Predicated region
      $region13: #{encoder_forward.2} parent=11 // pred_check
        %p261 = pneg %p63
      $region14: #{encoder_forward.2} parent=11 // pred_check_branch
        %263 = sbr.rel (%p261) target = $region16
      $region15: #{encoder_forward.2} parent=11 // pred_region
        _
      $region16: #{encoder_forward.2} parent=11 // pred_fallthru
        _
      // Predicated region
      $region17: #{encoder_forward.2} parent=11 // pred_check
        %p264 = pneg %p84
      $region18: #{encoder_forward.2} parent=11 // pred_check_branch
        %266 = sbr.rel (%p264) target = $region20
      $region19: #{encoder_forward.2} parent=11 // pred_region
        _
      $region20: #{encoder_forward.2} parent=11 // pred_fallthru
        _
      // Predicated region
      $region21: #{encoder_forward.2} parent=11 // pred_check
        %p267 = pneg %p105
      $region22: #{encoder_forward.2} parent=11 // pred_check_branch
        %269 = sbr.rel (%p267) target = $region24
      $region23: #{encoder_forward.2} parent=11 // pred_region
        _
      $region24: #{encoder_forward.2} parent=11 // pred_fallthru
        _
      // Predicated region
      $region25: #{encoder_forward.2} parent=11 // pred_check
        %p270 = pneg %p126
      $region26: #{encoder_forward.2} parent=11 // pred_check_branch
        %272 = sbr.rel (%p270) target = $region28
      $region27: #{encoder_forward.2} parent=11 // pred_region
        _
      $region28: #{encoder_forward.2} parent=11 // pred_fallthru
        _
      // Predicated region
      $region29: #{encoder_forward.2} parent=11 // pred_check
        %p273 = pneg %p147
      $region30: #{encoder_forward.2} parent=11 // pred_check_branch
        %275 = sbr.rel (%p273) target = $region32
      $region31: #{encoder_forward.2} parent=11 // pred_region
        _
      $region32: #{encoder_forward.2} parent=11 // pred_fallthru
        _
      // Predicated region
      $region33: #{encoder_forward.2} parent=11 // pred_check
        %p276 = pneg %p168
      $region34: #{encoder_forward.2} parent=11 // pred_check_branch
        %278 = sbr.rel (%p276) target = $region36
      $region35: #{encoder_forward.2} parent=11 // pred_region
        _
      $region36: #{encoder_forward.2} parent=11 // pred_fallthru
        _
    $region12: #{encoder_forward.2} parent=5 // pred_fallthru
      _
    %p279 = scmp.lt.s32.totalorder %s16, 4
    // Predicated region
    $region37: #{encoder_forward.2} parent=5 // pred_check
      %p280 = pneg %p279
    $region38: #{encoder_forward.2} parent=5 // pred_check_branch
      %282 = sbr.rel (%p280) target = $region40
    $region39: #{encoder_forward.2} parent=5 // pred_region
      // Predicated region
      $region41: #{encoder_forward.2} parent=39 // pred_check
        %p283 = pneg %p36
      $region42: #{encoder_forward.2} parent=39 // pred_check_branch
        %285 = sbr.rel (%p283) target = $region44
      $region43: #{encoder_forward.2} parent=39 // pred_region
        %s286 = smul.u32 32, %s16
        %p287 = scmp.lt.s32.totalorder %s286, 127
        %s288 = scalar_select %p287, %s286, 127
        %s289 = smul.addr %s288, 8
        %s290 = scalar_lea.vmem %s0, %s289
        %s291 = smul.u32 32, %s16
      $region44: #{encoder_forward.2} parent=39 // pred_fallthru
        _
    $region40: #{encoder_forward.2} parent=5 // pred_fallthru
      _
    %p292 = scmp.le.s32.totalorder 1, %s16
    %p293 = scmp.lt.s32.totalorder %s16, 5
    %p294 = pnand %p292, %p293
    %p295 = pneg %p294
    // Predicated region
    $region45: #{encoder_forward.2} parent=5 // pred_check
      _
    $region46: #{encoder_forward.2} parent=5 // pred_check_branch
      %297 = sbr.rel (%p294) target = $region48
    $region47: #{encoder_forward.2} parent=5 // pred_region
      %s298 = ssub.s32 %s16, 1
      %s299 = smul.u32 32, %s21
      %p300 = scmp.lt.s32.totalorder %s299, 127
      %s301 = scalar_select %p300, %s299, 127
      %s302 = smul.addr %s301, 8
      %s303 = scalar_lea.vmem %s0, %s302
      %p304 = pneg %p42
      %p305 = pneg %p39
      %p306 = pneg %p63
      %p307 = pneg %p60
      %p308 = pneg %p84
      %p309 = pneg %p81
      %p310 = pneg %p105
      %p311 = pneg %p102
      %p312 = pneg %p126
      %p313 = pneg %p123
      %p314 = pneg %p147
      %p315 = pneg %p144
      %p316 = pneg %p168
      %p317 = pneg %p165
      %p318 = pneg %p194
      %p319 = pneg %p191
      %s320 = smul.u32 32, %s21
      %p321 = scmp.lt.s32.totalorder %s320, 127
      %s322 = scalar_select %p321, %s320, 127
      %s323 = smul.addr %s322, 2
      %s324 = smul.addr %s323, 8
      %s325 = scalar_lea.vmem %s7, %s324
      %p326 = pneg %p220
      %p327 = pneg %p217
      %p328 = scmp.lt.s32.totalorder %s21, 3
      %s329 = scalar_select %p328, %s21, 3
      %s330 = smul.addr %s329, 2
      %s331 = scalar_lea.vmem %s8, %s330
      %p332 = pneg %p246
      %p333 = pneg %p243
      %p334 = scmp.lt.s32.totalorder %s21, 3
      %s335 = scalar_select %p334, %s21, 3
      %s336 = smul.addr %s335, 2
      %s337 = scalar_lea.vmem %s9, %s336
      %s338 = smul.u32 32, %s21
      %p339 = scmp.lt.s32.totalorder %s338, 127
      %s340 = scalar_select %p339, %s338, 127
      %s341 = smul.addr %s340, 8
      %s342 = scalar_lea.vmem %s0, %s341
      %s343 = smul.u32 32, %s21
      %s344 = smul.u32 32, %s21
      %p345 = scmp.lt.s32.totalorder %s344, 127
      %s346 = scalar_select %p345, %s344, 127
      %s347 = smul.addr %s346, 2
      %s348 = smul.addr %s347, 8
      %s349 = scalar_lea.vmem %s7, %s348
      %s350 = smul.u32 32, %s21
      %p351 = scmp.lt.s32.totalorder %s21, 3
      %s352 = scalar_select %p351, %s21, 3
      %s353 = smul.addr %s352, 2
      %s354 = scalar_lea.vmem %s8, %s353
      %p355 = scmp.lt.s32.totalorder %s21, 3
      %s356 = scalar_select %p355, %s21, 3
      %s357 = smul.addr %s356, 2
      %s358 = scalar_lea.vmem %s9, %s357
      %v360 = vld [vmem:[%s342] sm:$0xff]
      %v361 = vld [vmem:[%s342 + $0x8] sm:$0xff]
      %v362 = vld [vmem:[%s342 + $0x10] sm:$0xff]
      %v363 = vld [vmem:[%s342 + $0x18] sm:$0xff]
      %v364 = vld [vmem:[%s342 + $0x20] sm:$0xff]
      %v365 = vld [vmem:[%s342 + $0x28] sm:$0xff]
      %v366 = vld [vmem:[%s342 + $0x30] sm:$0xff]
      %v367 = vld [vmem:[%s342 + $0x38] sm:$0xff]
      %v368 = vld [vmem:[%s342 + $0x40] sm:$0xff]
      %v369 = vld [vmem:[%s342 + $0x48] sm:$0xff]
      %v370 = vld [vmem:[%s342 + $0x50] sm:$0xff]
      %v371 = vld [vmem:[%s342 + $0x58] sm:$0xff]
      %v372 = vld [vmem:[%s342 + $0x60] sm:$0xff]
      %v373 = vld [vmem:[%s342 + $0x68] sm:$0xff]
      %v374 = vld [vmem:[%s342 + $0x70] sm:$0xff]
      %v375 = vld [vmem:[%s342 + $0x78] sm:$0xff]
      %v376 = vld [vmem:[%s342 + $0x80] sm:$0xff]
      %v377 = vld [vmem:[%s342 + $0x88] sm:$0xff]
      %v378 = vld [vmem:[%s342 + $0x90] sm:$0xff]
      %v379 = vld [vmem:[%s342 + $0x98] sm:$0xff]
      %v380 = vld [vmem:[%s342 + $0xa0] sm:$0xff]
      %v381 = vld [vmem:[%s342 + $0xa8] sm:$0xff]
      %v382 = vld [vmem:[%s342 + $0xb0] sm:$0xff]
      %v383 = vld [vmem:[%s342 + $0xb8] sm:$0xff]
      %v384 = vld [vmem:[%s342 + $0xc0] sm:$0xff]
      %v385 = vld [vmem:[%s342 + $0xc8] sm:$0xff]
      %v386 = vld [vmem:[%s342 + $0xd0] sm:$0xff]
      %v387 = vld [vmem:[%s342 + $0xd8] sm:$0xff]
      %v388 = vld [vmem:[%s342 + $0xe0] sm:$0xff]
      %v389 = vld [vmem:[%s342 + $0xe8] sm:$0xff]
      %v390 = vld [vmem:[%s342 + $0xf0] sm:$0xff]
      %v391 = vld [vmem:[%s342 + $0xf8] sm:$0xff]
      %v392 = vld [vmem:[%s1] sm:$0xf]
      %v393 = vld [vmem:[%s1 + $0x4] sm:$0xf]
      %v394 = vld [vmem:[%s1 + $0x8] sm:$0xf]
      %v395 = vld [vmem:[%s1 + $0xc] sm:$0xf]
      %v396 = vld [vmem:[%s1 + $0x10] sm:$0xf]
      %v397 = vld [vmem:[%s1 + $0x14] sm:$0xf]
      %v398 = vld [vmem:[%s1 + $0x18] sm:$0xf]
      %v399 = vld [vmem:[%s1 + $0x1c] sm:$0xf]
      %v400 = vld [vmem:[%s1 + $0x20] sm:$0xf]
      %v401 = vld [vmem:[%s1 + $0x24] sm:$0xf]
      %v402 = vld [vmem:[%s1 + $0x28] sm:$0xf]
      %v403 = vld [vmem:[%s1 + $0x2c] sm:$0xf]
      %v404 = vld [vmem:[%s1 + $0x30] sm:$0xf]
      %v405 = vld [vmem:[%s1 + $0x34] sm:$0xf]
      %v406 = vld [vmem:[%s1 + $0x38] sm:$0xf]
      %v407 = vld [vmem:[%s1 + $0x3c] sm:$0xf]
      %v408 = vld [vmem:[%s2] sm:$0x1]
      %v409 = vld [vmem:[%s3] sm:$0xf]
      %v410 = vld [vmem:[%s3 + $0x4] sm:$0xf]
      %v411 = vld [vmem:[%s3 + $0x8] sm:$0xf]
      %v412 = vld [vmem:[%s3 + $0xc] sm:$0xf]
      %v413 = vld [vmem:[%s3 + $0x10] sm:$0xf]
      %v414 = vld [vmem:[%s3 + $0x14] sm:$0xf]
      %v415 = vld [vmem:[%s3 + $0x18] sm:$0xf]
      %v416 = vld [vmem:[%s3 + $0x1c] sm:$0xf]
      %v417 = vld [vmem:[%s3 + $0x20] sm:$0xf]
      %v418 = vld [vmem:[%s3 + $0x24] sm:$0xf]
      %v419 = vld [vmem:[%s3 + $0x28] sm:$0xf]
      %v420 = vld [vmem:[%s3 + $0x2c] sm:$0xf]
      %v421 = vld [vmem:[%s3 + $0x30] sm:$0xf]
      %v422 = vld [vmem:[%s3 + $0x34] sm:$0xf]
      %v423 = vld [vmem:[%s3 + $0x38] sm:$0xf]
      %v424 = vld [vmem:[%s3 + $0x3c] sm:$0xf]
      %v425 = vld [vmem:[%s4] sm:$0x1]
      %v426 = vld [vmem:[%s5] sm:$0xff]
      %v427 = vld [vmem:[%s5 + $0x8] sm:$0xff]
      %v428 = vld [vmem:[%s5 + $0x10] sm:$0xff]
      %v429 = vld [vmem:[%s5 + $0x18] sm:$0xff]
      %v430 = vld [vmem:[%s5 + $0x20] sm:$0xff]
      %v431 = vld [vmem:[%s5 + $0x28] sm:$0xff]
      %v432 = vld [vmem:[%s5 + $0x30] sm:$0xff]
      %v433 = vld [vmem:[%s5 + $0x38] sm:$0xff]
      %v434 = vld [vmem:[%s5 + $0x40] sm:$0xff]
      %v435 = vld [vmem:[%s5 + $0x48] sm:$0xff]
      %v436 = vld [vmem:[%s5 + $0x50] sm:$0xff]
      %v437 = vld [vmem:[%s5 + $0x58] sm:$0xff]
      %v438 = vld [vmem:[%s5 + $0x60] sm:$0xff]
      %v439 = vld [vmem:[%s5 + $0x68] sm:$0xff]
      %v440 = vld [vmem:[%s5 + $0x70] sm:$0xff]
      %v441 = vld [vmem:[%s5 + $0x78] sm:$0xff]
      %v442 = vld [vmem:[%s6] sm:$0x3]
      %v443 = vpack.c.bf16 %v361, %v360
      %v444 = vpack.c.bf16 %v363, %v362
      %v445 = vpack.c.bf16 %v365, %v364
      %v446 = vpack.c.bf16 %v367, %v366
      %v447 = vpack.c.bf16 %v369, %v368
      %v448 = vpack.c.bf16 %v371, %v370
      %v449 = vpack.c.bf16 %v373, %v372
      %v450 = vpack.c.bf16 %v375, %v374
      %v451 = vpack.c.bf16 %v377, %v376
      %v452 = vpack.c.bf16 %v379, %v378
      %v453 = vpack.c.bf16 %v381, %v380
      %v454 = vpack.c.bf16 %v383, %v382
      %v455 = vpack.c.bf16 %v385, %v384
      %v456 = vpack.c.bf16 %v387, %v386
      %v457 = vpack.c.bf16 %v389, %v388
      %v458 = vpack.c.bf16 %v391, %v390
      %v460 = vlaneseq
      %v461 = vshrl.u32 %v460, 7
      %v462 = vsub.s32 0, %v461
      %v463 = vrot.slane %v408, %v462
      %v481 = vunpack.c.l.b16 %v392
      %v482 = vunpack.c.l.b16 %v393
      %v483 = vunpack.c.l.b16 %v394
      %v484 = vunpack.c.l.b16 %v395
      %v485 = vunpack.c.l.b16 %v396
      %v486 = vunpack.c.l.b16 %v397
      %v487 = vunpack.c.l.b16 %v398
      %v488 = vunpack.c.l.b16 %v399
      %v489 = vunpack.c.l.b16 %v400
      %v490 = vunpack.c.l.b16 %v401
      %v491 = vunpack.c.l.b16 %v402
      %v492 = vunpack.c.l.b16 %v403
      %v493 = vunpack.c.l.b16 %v404
      %v494 = vunpack.c.l.b16 %v405
      %v495 = vunpack.c.l.b16 %v406
      %v496 = vunpack.c.l.b16 %v407
      %v497 = vpack.c.b16 %v482, %v481
      %v498 = vpack.c.b16 %v484, %v483
      %v499 = vpack.c.b16 %v486, %v485
      %v500 = vpack.c.b16 %v488, %v487
      %v501 = vpack.c.b16 %v490, %v489
      %v502 = vpack.c.b16 %v492, %v491
      %v503 = vpack.c.b16 %v494, %v493
      %v504 = vpack.c.b16 %v496, %v495
      %513 = vmatprep.subr.bf16.mxu0 0
      %514 = vmatpush1.bf16.msra.mxu0 %v497
      %515 = vmatprep.subr.bf16.mxu0 0
      %516 = vmatpush1.bf16.msra.mxu0 %v498
      %517 = vmatprep.subr.bf16.mxu0 0
      %518 = vmatpush1.bf16.msra.mxu0 %v499
      %519 = vmatprep.subr.bf16.mxu0 0
      %520 = vmatpush1.bf16.msra.mxu0 %v500
      %521 = vmatprep.subr.bf16.mxu0 0
      %522 = vmatpush1.bf16.msra.mxu0 %v501
      %523 = vmatprep.subr.bf16.mxu0 0
      %524 = vmatpush1.bf16.msra.mxu0 %v502
      %525 = vmatprep.subr.bf16.mxu0 0
      %526 = vmatpush1.bf16.msra.mxu0 %v503
      %527 = vmatprep.subr.bf16.mxu0 0
      %528 = vmatpush1.bf16.msra.mxu0 %v504
      %529 = vmatprep.subr.bf16.mxu0 0
      %530 = vmatpush1.bf16.msra.mxu0 0
      %531 = vmatprep.subr.bf16.mxu0 0
      %532 = vmatpush1.bf16.msra.mxu0 0
      %533 = vmatprep.subr.bf16.mxu0 0
      %534 = vmatpush1.bf16.msra.mxu0 0
      %535 = vmatprep.subr.bf16.mxu0 0
      %536 = vmatpush1.bf16.msra.mxu0 0
      %537 = vmatprep.subr.bf16.mxu0 0
      %538 = vmatpush1.bf16.msra.mxu0 0
      %539 = vmatprep.subr.bf16.mxu0 0
      %540 = vmatpush1.bf16.msra.mxu0 0
      %541 = vmatprep.subr.bf16.mxu0 0
      %542 = vmatpush1.bf16.msra.mxu0 0
      %543 = vmatprep.subr.bf16.mxu0 0
      %544 = vmatpush1.bf16.msra.mxu0 0
      %545 = vmatprep.mubr.bf16.mxu0 0
      %546 = vmatmul.mubr.bf16.gmra.mrb[0].mxu0 %v443
      %v547 = vpop.f32.mrb[0].mxu0
      %v548 = vadd.f32 %v463, %v547
      %v549 = vpop.f32.mrb[0].mxu0
      %v550 = vpop.f32.mrb[0].mxu0
      %v551 = vadd.f32 %v463, %v550
      %v552 = vpop.f32.mrb[0].mxu0
      %553 = vmatprep.mubr.bf16.mxu0 0
      %554 = vmatmul.mubr.bf16.gmra.mrb[0].mxu0 %v444
      %v555 = vpop.f32.mrb[0].mxu0
      %v556 = vadd.f32 %v463, %v555
      %v557 = vpop.f32.mrb[0].mxu0
      %v558 = vpop.f32.mrb[0].mxu0
      %v559 = vadd.f32 %v463, %v558
      %v560 = vpop.f32.mrb[0].mxu0
      %561 = vmatprep.mubr.bf16.mxu0 0
      %562 = vmatmul.mubr.bf16.gmra.mrb[0].mxu0 %v445
      %v563 = vpop.f32.mrb[0].mxu0
      %v564 = vadd.f32 %v463, %v563
      %v565 = vpop.f32.mrb[0].mxu0
      %v566 = vpop.f32.mrb[0].mxu0
      %v567 = vadd.f32 %v463, %v566
      %v568 = vpop.f32.mrb[0].mxu0
      %569 = vmatprep.mubr.bf16.mxu0 0
      %570 = vmatmul.mubr.bf16.gmra.mrb[0].mxu0 %v446
      %v571 = vpop.f32.mrb[0].mxu0
      %v572 = vadd.f32 %v463, %v571
      %v573 = vpop.f32.mrb[0].mxu0
      %v574 = vpop.f32.mrb[0].mxu0
      %v575 = vadd.f32 %v463, %v574
      %v576 = vpop.f32.mrb[0].mxu0
      %577 = vmatprep.mubr.bf16.mxu0 0
      %578 = vmatmul.mubr.bf16.gmra.mrb[0].mxu0 %v447
      %v579 = vpop.f32.mrb[0].mxu0
      %v580 = vadd.f32 %v463, %v579
      %v581 = vpop.f32.mrb[0].mxu0
      %v582 = vpop.f32.mrb[0].mxu0
      %v583 = vadd.f32 %v463, %v582
      %v584 = vpop.f32.mrb[0].mxu0
      %585 = vmatprep.mubr.bf16.mxu0 0
      %586 = vmatmul.mubr.bf16.gmra.mrb[0].mxu0 %v448
      %v587 = vpop.f32.mrb[0].mxu0
      %v588 = vadd.f32 %v463, %v587
      %v589 = vpop.f32.mrb[0].mxu0
      %v590 = vpop.f32.mrb[0].mxu0
      %v591 = vadd.f32 %v463, %v590
      %v592 = vpop.f32.mrb[0].mxu0
      %593 = vmatprep.mubr.bf16.mxu0 0
      %594 = vmatmul.mubr.bf16.gmra.mrb[0].mxu0 %v449
      %v595 = vpop.f32.mrb[0].mxu0
      %v596 = vadd.f32 %v463, %v595
      %v597 = vpop.f32.mrb[0].mxu0
      %v598 = vpop.f32.mrb[0].mxu0
      %v599 = vadd.f32 %v463, %v598
      %v600 = vpop.f32.mrb[0].mxu0
      %601 = vmatprep.mubr.bf16.mxu0 0
      %602 = vmatmul.mubr.bf16.gmra.mrb[0].mxu0 %v450
      %v603 = vpop.f32.mrb[0].mxu0
      %v604 = vadd.f32 %v463, %v603
      %v605 = vpop.f32.mrb[0].mxu0
      %v606 = vpop.f32.mrb[0].mxu0
      %v607 = vadd.f32 %v463, %v606
      %v608 = vpop.f32.mrb[0].mxu0
      %609 = vmatprep.mubr.bf16.mxu0 0
      %610 = vmatmul.mubr.bf16.gmra.mrb[0].mxu0 %v451
      %v611 = vpop.f32.mrb[0].mxu0
      %v612 = vadd.f32 %v463, %v611
      %v613 = vpop.f32.mrb[0].mxu0
      %v614 = vpop.f32.mrb[0].mxu0
      %v615 = vadd.f32 %v463, %v614
      %v616 = vpop.f32.mrb[0].mxu0
      %617 = vmatprep.mubr.bf16.mxu0 0
      %618 = vmatmul.mubr.bf16.gmra.mrb[0].mxu0 %v452
      %v619 = vpop.f32.mrb[0].mxu0
      %v620 = vadd.f32 %v463, %v619
      %v621 = vpop.f32.mrb[0].mxu0
      %v622 = vpop.f32.mrb[0].mxu0
      %v623 = vadd.f32 %v463, %v622
      %v624 = vpop.f32.mrb[0].mxu0
      %625 = vmatprep.mubr.bf16.mxu0 0
      %626 = vmatmul.mubr.bf16.gmra.mrb[0].mxu0 %v453
      %v627 = vpop.f32.mrb[0].mxu0
      %v628 = vadd.f32 %v463, %v627
      %v629 = vpop.f32.mrb[0].mxu0
      %v630 = vpop.f32.mrb[0].mxu0
      %v631 = vadd.f32 %v463, %v630
      %v632 = vpop.f32.mrb[0].mxu0
      %633 = vmatprep.mubr.bf16.mxu0 0
      %634 = vmatmul.mubr.bf16.gmra.mrb[0].mxu0 %v454
      %v635 = vpop.f32.mrb[0].mxu0
      %v636 = vadd.f32 %v463, %v635
      %v637 = vpop.f32.mrb[0].mxu0
      %v638 = vpop.f32.mrb[0].mxu0
      %v639 = vadd.f32 %v463, %v638
      %v640 = vpop.f32.mrb[0].mxu0
      %641 = vmatprep.mubr.bf16.mxu0 0
      %642 = vmatmul.mubr.bf16.gmra.mrb[0].mxu0 %v455
      %v643 = vpop.f32.mrb[0].mxu0
      %v644 = vadd.f32 %v463, %v643
      %v645 = vpop.f32.mrb[0].mxu0
      %v646 = vpop.f32.mrb[0].mxu0
      %v647 = vadd.f32 %v463, %v646
      %v648 = vpop.f32.mrb[0].mxu0
      %649 = vmatprep.mubr.bf16.mxu0 0
      %650 = vmatmul.mubr.bf16.gmra.mrb[0].mxu0 %v456
      %v651 = vpop.f32.mrb[0].mxu0
      %v652 = vadd.f32 %v463, %v651
      %v653 = vpop.f32.mrb[0].mxu0
      %v654 = vpop.f32.mrb[0].mxu0
      %v655 = vadd.f32 %v463, %v654
      %v656 = vpop.f32.mrb[0].mxu0
      %657 = vmatprep.mubr.bf16.mxu0 0
      %658 = vmatmul.mubr.bf16.gmra.mrb[0].mxu0 %v457
      %v659 = vpop.f32.mrb[0].mxu0
      %v660 = vadd.f32 %v463, %v659
      %v661 = vpop.f32.mrb[0].mxu0
      %v662 = vpop.f32.mrb[0].mxu0
      %v663 = vadd.f32 %v463, %v662
      %v664 = vpop.f32.mrb[0].mxu0
      %665 = vmatprep.mubr.bf16.mxu0 0
      %666 = vmatmul.mubr.bf16.gmra.mrb[0].mxu0 %v458
      %v667 = vpop.f32.mrb[0].mxu0
      %v668 = vadd.f32 %v463, %v667
      %v669 = vpop.f32.mrb[0].mxu0
      %v670 = vpop.f32.mrb[0].mxu0
      %v671 = vadd.f32 %v463, %v670
      %v672 = vpop.f32.mrb[0].mxu0
      %673 = vdwg.mxu0
      %v674 = vmax.f32 %v548, 0.0
      %v675 = vmax.f32 %v551, 0.0
      %v676 = vmax.f32 %v556, 0.0
      %v677 = vmax.f32 %v559, 0.0
      %v678 = vmax.f32 %v564, 0.0
      %v679 = vmax.f32 %v567, 0.0
      %v680 = vmax.f32 %v572, 0.0
      %v681 = vmax.f32 %v575, 0.0
      %v682 = vmax.f32 %v580, 0.0
      %v683 = vmax.f32 %v583, 0.0
      %v684 = vmax.f32 %v588, 0.0
      %v685 = vmax.f32 %v591, 0.0
      %v686 = vmax.f32 %v596, 0.0
      %v687 = vmax.f32 %v599, 0.0
      %v688 = vmax.f32 %v604, 0.0
      %v689 = vmax.f32 %v607, 0.0
      %v690 = vmax.f32 %v612, 0.0
      %v691 = vmax.f32 %v615, 0.0
      %v692 = vmax.f32 %v620, 0.0
      %v693 = vmax.f32 %v623, 0.0
      %v694 = vmax.f32 %v628, 0.0
      %v695 = vmax.f32 %v631, 0.0
      %v696 = vmax.f32 %v636, 0.0
      %v697 = vmax.f32 %v639, 0.0
      %v698 = vmax.f32 %v644, 0.0
      %v699 = vmax.f32 %v647, 0.0
      %v700 = vmax.f32 %v652, 0.0
      %v701 = vmax.f32 %v655, 0.0
      %v702 = vmax.f32 %v660, 0.0
      %v703 = vmax.f32 %v663, 0.0
      %v704 = vmax.f32 %v668, 0.0
      %v705 = vmax.f32 %v671, 0.0
      %vm706 = vcmp.ne.f32.partialorder %v548, %v548
      %vm707 = vcmp.ne.f32.partialorder %v551, %v551
      %vm708 = vcmp.ne.f32.partialorder %v556, %v556
      %vm709 = vcmp.ne.f32.partialorder %v559, %v559
      %vm710 = vcmp.ne.f32.partialorder %v564, %v564
      %vm711 = vcmp.ne.f32.partialorder %v567, %v567
      %vm712 = vcmp.ne.f32.partialorder %v572, %v572
      %vm713 = vcmp.ne.f32.partialorder %v575, %v575
      %vm714 = vcmp.ne.f32.partialorder %v580, %v580
      %vm715 = vcmp.ne.f32.partialorder %v583, %v583
      %vm716 = vcmp.ne.f32.partialorder %v588, %v588
      %vm717 = vcmp.ne.f32.partialorder %v591, %v591
      %vm718 = vcmp.ne.f32.partialorder %v596, %v596
      %vm719 = vcmp.ne.f32.partialorder %v599, %v599
      %vm720 = vcmp.ne.f32.partialorder %v604, %v604
      %vm721 = vcmp.ne.f32.partialorder %v607, %v607
      %vm722 = vcmp.ne.f32.partialorder %v612, %v612
      %vm723 = vcmp.ne.f32.partialorder %v615, %v615
      %vm724 = vcmp.ne.f32.partialorder %v620, %v620
      %vm725 = vcmp.ne.f32.partialorder %v623, %v623
      %vm726 = vcmp.ne.f32.partialorder %v628, %v628
      %vm727 = vcmp.ne.f32.partialorder %v631, %v631
      %vm728 = vcmp.ne.f32.partialorder %v636, %v636
      %vm729 = vcmp.ne.f32.partialorder %v639, %v639
      %vm730 = vcmp.ne.f32.partialorder %v644, %v644
      %vm731 = vcmp.ne.f32.partialorder %v647, %v647
      %vm732 = vcmp.ne.f32.partialorder %v652, %v652
      %vm733 = vcmp.ne.f32.partialorder %v655, %v655
      %vm734 = vcmp.ne.f32.partialorder %v660, %v660
      %vm735 = vcmp.ne.f32.partialorder %v663, %v663
      %vm736 = vcmp.ne.f32.partialorder %v668, %v668
      %vm737 = vcmp.ne.f32.partialorder %v671, %v671
      %v738 = vadd.f32 %v548, 0.0
      %v739 = vadd.f32 %v551, 0.0
      %v740 = vadd.f32 %v556, 0.0
      %v741 = vadd.f32 %v559, 0.0
      %v742 = vadd.f32 %v564, 0.0
      %v743 = vadd.f32 %v567, 0.0
      %v744 = vadd.f32 %v572, 0.0
      %v745 = vadd.f32 %v575, 0.0
      %v746 = vadd.f32 %v580, 0.0
      %v747 = vadd.f32 %v583, 0.0
      %v748 = vadd.f32 %v588, 0.0
      %v749 = vadd.f32 %v591, 0.0
      %v750 = vadd.f32 %v596, 0.0
      %v751 = vadd.f32 %v599, 0.0
      %v752 = vadd.f32 %v604, 0.0
      %v753 = vadd.f32 %v607, 0.0
      %v754 = vadd.f32 %v612, 0.0
      %v755 = vadd.f32 %v615, 0.0
      %v756 = vadd.f32 %v620, 0.0
      %v757 = vadd.f32 %v623, 0.0
      %v758 = vadd.f32 %v628, 0.0
      %v759 = vadd.f32 %v631, 0.0
      %v760 = vadd.f32 %v636, 0.0
      %v761 = vadd.f32 %v639, 0.0
      %v762 = vadd.f32 %v644, 0.0
      %v763 = vadd.f32 %v647, 0.0
      %v764 = vadd.f32 %v652, 0.0
      %v765 = vadd.f32 %v655, 0.0
      %v766 = vadd.f32 %v660, 0.0
      %v767 = vadd.f32 %v663, 0.0
      %v768 = vadd.f32 %v668, 0.0
      %v769 = vadd.f32 %v671, 0.0
      %v770 = vand.u32 2147483647, %v548
      %v771 = vand.u32 2147483647, %v551
      %v772 = vand.u32 2147483647, %v556
      %v773 = vand.u32 2147483647, %v559
      %v774 = vand.u32 2147483647, %v564
      %v775 = vand.u32 2147483647, %v567
      %v776 = vand.u32 2147483647, %v572
      %v777 = vand.u32 2147483647, %v575
      %v778 = vand.u32 2147483647, %v580
      %v779 = vand.u32 2147483647, %v583
      %v780 = vand.u32 2147483647, %v588
      %v781 = vand.u32 2147483647, %v591
      %v782 = vand.u32 2147483647, %v596
      %v783 = vand.u32 2147483647, %v599
      %v784 = vand.u32 2147483647, %v604
      %v785 = vand.u32 2147483647, %v607
      %v786 = vand.u32 2147483647, %v612
      %v787 = vand.u32 2147483647, %v615
      %v788 = vand.u32 2147483647, %v620
      %v789 = vand.u32 2147483647, %v623
      %v790 = vand.u32 2147483647, %v628
      %v791 = vand.u32 2147483647, %v631
      %v792 = vand.u32 2147483647, %v636
      %v793 = vand.u32 2147483647, %v639
      %v794 = vand.u32 2147483647, %v644
      %v795 = vand.u32 2147483647, %v647
      %v796 = vand.u32 2147483647, %v652
      %v797 = vand.u32 2147483647, %v655
      %v798 = vand.u32 2147483647, %v660
      %v799 = vand.u32 2147483647, %v663
      %v800 = vand.u32 2147483647, %v668
      %v801 = vand.u32 2147483647, %v671
      %v802 = vsub.f32 0.0, %v770
      %v803 = vsub.f32 0.0, %v771
      %v804 = vsub.f32 0.0, %v772
      %v805 = vsub.f32 0.0, %v773
      %v806 = vsub.f32 0.0, %v774
      %v807 = vsub.f32 0.0, %v775
      %v808 = vsub.f32 0.0, %v776
      %v809 = vsub.f32 0.0, %v777
      %v810 = vsub.f32 0.0, %v778
      %v811 = vsub.f32 0.0, %v779
      %v812 = vsub.f32 0.0, %v780
      %v813 = vsub.f32 0.0, %v781
      %v814 = vsub.f32 0.0, %v782
      %v815 = vsub.f32 0.0, %v783
      %v816 = vsub.f32 0.0, %v784
      %v817 = vsub.f32 0.0, %v785
      %v818 = vsub.f32 0.0, %v786
      %v819 = vsub.f32 0.0, %v787
      %v820 = vsub.f32 0.0, %v788
      %v821 = vsub.f32 0.0, %v789
      %v822 = vsub.f32 0.0, %v790
      %v823 = vsub.f32 0.0, %v791
      %v824 = vsub.f32 0.0, %v792
      %v825 = vsub.f32 0.0, %v793
      %v826 = vsub.f32 0.0, %v794
      %v827 = vsub.f32 0.0, %v795
      %v828 = vsub.f32 0.0, %v796
      %v829 = vsub.f32 0.0, %v797
      %v830 = vsub.f32 0.0, %v798
      %v831 = vsub.f32 0.0, %v799
      %v832 = vsub.f32 0.0, %v800
      %v833 = vsub.f32 0.0, %v801
      %v834 = vmul.f32 %v802, 1.442695
      %v835 = vpow.pop %v834
      %v836 = vmul.f32 %v803, 1.442695
      %v837 = vpow.pop %v836
      %v838 = vmul.f32 %v804, 1.442695
      %v839 = vpow.pop %v838
      %v840 = vmul.f32 %v805, 1.442695
      %v841 = vpow.pop %v840
      %v842 = vmul.f32 %v806, 1.442695
      %v843 = vpow.pop %v842
      %v844 = vmul.f32 %v807, 1.442695
      %v845 = vpow.pop %v844
      %v846 = vmul.f32 %v808, 1.442695
      %v847 = vpow.pop %v846
      %v848 = vmul.f32 %v809, 1.442695
      %v849 = vpow.pop %v848
      %v850 = vmul.f32 %v810, 1.442695
      %v851 = vpow.pop %v850
      %v852 = vmul.f32 %v811, 1.442695
      %v853 = vpow.pop %v852
      %v854 = vmul.f32 %v812, 1.442695
      %v855 = vpow.pop %v854
      %v856 = vmul.f32 %v813, 1.442695
      %v857 = vpow.pop %v856
      %v858 = vmul.f32 %v814, 1.442695
      %v859 = vpow.pop %v858
      %v860 = vmul.f32 %v815, 1.442695
      %v861 = vpow.pop %v860
      %v862 = vmul.f32 %v816, 1.442695
      %v863 = vpow.pop %v862
      %v864 = vmul.f32 %v817, 1.442695
      %v865 = vpow.pop %v864
      %v866 = vmul.f32 %v818, 1.442695
      %v867 = vpow.pop %v866
      %v868 = vmul.f32 %v819, 1.442695
      %v869 = vpow.pop %v868
      %v870 = vmul.f32 %v820, 1.442695
      %v871 = vpow.pop %v870
      %v872 = vmul.f32 %v821, 1.442695
      %v873 = vpow.pop %v872
      %v874 = vmul.f32 %v822, 1.442695
      %v875 = vpow.pop %v874
      %v876 = vmul.f32 %v823, 1.442695
      %v877 = vpow.pop %v876
      %v878 = vmul.f32 %v824, 1.442695
      %v879 = vpow.pop %v878
      %v880 = vmul.f32 %v825, 1.442695
      %v881 = vpow.pop %v880
      %v882 = vmul.f32 %v826, 1.442695
      %v883 = vpow.pop %v882
      %v884 = vmul.f32 %v827, 1.442695
      %v885 = vpow.pop %v884
      %v886 = vmul.f32 %v828, 1.442695
      %v887 = vpow.pop %v886
      %v888 = vmul.f32 %v829, 1.442695
      %v889 = vpow.pop %v888
      %v890 = vmul.f32 %v830, 1.442695
      %v891 = vpow.pop %v890
      %v892 = vmul.f32 %v831, 1.442695
      %v893 = vpow.pop %v892
      %v894 = vmul.f32 %v832, 1.442695
      %v895 = vpow.pop %v894
      %v896 = vmul.f32 %v833, 1.442695
      %v897 = vpow.pop %v896
      %v898 = vadd.f32 %v835, 1.0
      %v899 = vlog2.pop %v898
      %v900 = vmul.f32 %v899, 0.6931472
      %v901 = vmul.f32 -0.5, %v835
      %v902 = vadd.f32 %v901, 1.0
      %v903 = vmul.f32 %v902, %v835
      %v904 = vand.u32 2147483647, %v835
      %vm905 = vcmp.lt.f32.partialorder %v904, 0.0004427343
      %v906 = vsel %vm905, %v903, %v900
      %v907 = vadd.f32 %v837, 1.0
      %v908 = vlog2.pop %v907
      %v909 = vmul.f32 %v908, 0.6931472
      %v910 = vmul.f32 -0.5, %v837
      %v911 = vadd.f32 %v910, 1.0
      %v912 = vmul.f32 %v911, %v837
      %v913 = vand.u32 2147483647, %v837
      %vm914 = vcmp.lt.f32.partialorder %v913, 0.0004427343
      %v915 = vsel %vm914, %v912, %v909
      %v916 = vadd.f32 %v839, 1.0
      %v917 = vlog2.pop %v916
      %v918 = vmul.f32 %v917, 0.6931472
      %v919 = vmul.f32 -0.5, %v839
      %v920 = vadd.f32 %v919, 1.0
      %v921 = vmul.f32 %v920, %v839
      %v922 = vand.u32 2147483647, %v839
      %vm923 = vcmp.lt.f32.partialorder %v922, 0.0004427343
      %v924 = vsel %vm923, %v921, %v918
      %v925 = vadd.f32 %v841, 1.0
      %v926 = vlog2.pop %v925
      %v927 = vmul.f32 %v926, 0.6931472
      %v928 = vmul.f32 -0.5, %v841
      %v929 = vadd.f32 %v928, 1.0
      %v930 = vmul.f32 %v929, %v841
      %v931 = vand.u32 2147483647, %v841
      %vm932 = vcmp.lt.f32.partialorder %v931, 0.0004427343
      %v933 = vsel %vm932, %v930, %v927
      %v934 = vadd.f32 %v843, 1.0
      %v935 = vlog2.pop %v934
      %v936 = vmul.f32 %v935, 0.6931472
      %v937 = vmul.f32 -0.5, %v843
      %v938 = vadd.f32 %v937, 1.0
      %v939 = vmul.f32 %v938, %v843
      %v940 = vand.u32 2147483647, %v843
      %vm941 = vcmp.lt.f32.partialorder %v940, 0.0004427343
      %v942 = vsel %vm941, %v939, %v936
      %v943 = vadd.f32 %v845, 1.0
      %v944 = vlog2.pop %v943
      %v945 = vmul.f32 %v944, 0.6931472
      %v946 = vmul.f32 -0.5, %v845
      %v947 = vadd.f32 %v946, 1.0
      %v948 = vmul.f32 %v947, %v845
      %v949 = vand.u32 2147483647, %v845
      %vm950 = vcmp.lt.f32.partialorder %v949, 0.0004427343
      %v951 = vsel %vm950, %v948, %v945
      %v952 = vadd.f32 %v847, 1.0
      %v953 = vlog2.pop %v952
      %v954 = vmul.f32 %v953, 0.6931472
      %v955 = vmul.f32 -0.5, %v847
      %v956 = vadd.f32 %v955, 1.0
      %v957 = vmul.f32 %v956, %v847
      %v958 = vand.u32 2147483647, %v847
      %vm959 = vcmp.lt.f32.partialorder %v958, 0.0004427343
      %v960 = vsel %vm959, %v957, %v954
      %v961 = vadd.f32 %v849, 1.0
      %v962 = vlog2.pop %v961
      %v963 = vmul.f32 %v962, 0.6931472
      %v964 = vmul.f32 -0.5, %v849
      %v965 = vadd.f32 %v964, 1.0
      %v966 = vmul.f32 %v965, %v849
      %v967 = vand.u32 2147483647, %v849
      %vm968 = vcmp.lt.f32.partialorder %v967, 0.0004427343
      %v969 = vsel %vm968, %v966, %v963
      %v970 = vadd.f32 %v851, 1.0
      %v971 = vlog2.pop %v970
      %v972 = vmul.f32 %v971, 0.6931472
      %v973 = vmul.f32 -0.5, %v851
      %v974 = vadd.f32 %v973, 1.0
      %v975 = vmul.f32 %v974, %v851
      %v976 = vand.u32 2147483647, %v851
      %vm977 = vcmp.lt.f32.partialorder %v976, 0.0004427343
      %v978 = vsel %vm977, %v975, %v972
      %v979 = vadd.f32 %v853, 1.0
      %v980 = vlog2.pop %v979
      %v981 = vmul.f32 %v980, 0.6931472
      %v982 = vmul.f32 -0.5, %v853
      %v983 = vadd.f32 %v982, 1.0
      %v984 = vmul.f32 %v983, %v853
      %v985 = vand.u32 2147483647, %v853
      %vm986 = vcmp.lt.f32.partialorder %v985, 0.0004427343
      %v987 = vsel %vm986, %v984, %v981
      %v988 = vadd.f32 %v855, 1.0
      %v989 = vlog2.pop %v988
      %v990 = vmul.f32 %v989, 0.6931472
      %v991 = vmul.f32 -0.5, %v855
      %v992 = vadd.f32 %v991, 1.0
      %v993 = vmul.f32 %v992, %v855
      %v994 = vand.u32 2147483647, %v855
      %vm995 = vcmp.lt.f32.partialorder %v994, 0.0004427343
      %v996 = vsel %vm995, %v993, %v990
      %v997 = vadd.f32 %v857, 1.0
      %v998 = vlog2.pop %v997
      %v999 = vmul.f32 %v998, 0.6931472
      %v1000 = vmul.f32 -0.5, %v857
      %v1001 = vadd.f32 %v1000, 1.0
      %v1002 = vmul.f32 %v1001, %v857
      %v1003 = vand.u32 2147483647, %v857
      %vm1004 = vcmp.lt.f32.partialorder %v1003, 0.0004427343
      %v1005 = vsel %vm1004, %v1002, %v999
      %v1006 = vadd.f32 %v859, 1.0
      %v1007 = vlog2.pop %v1006
      %v1008 = vmul.f32 %v1007, 0.6931472
      %v1009 = vmul.f32 -0.5, %v859
      %v1010 = vadd.f32 %v1009, 1.0
      %v1011 = vmul.f32 %v1010, %v859
      %v1012 = vand.u32 2147483647, %v859
      %vm1013 = vcmp.lt.f32.partialorder %v1012, 0.0004427343
      %v1014 = vsel %vm1013, %v1011, %v1008
      %v1015 = vadd.f32 %v861, 1.0
      %v1016 = vlog2.pop %v1015
      %v1017 = vmul.f32 %v1016, 0.6931472
      %v1018 = vmul.f32 -0.5, %v861
      %v1019 = vadd.f32 %v1018, 1.0
      %v1020 = vmul.f32 %v1019, %v861
      %v1021 = vand.u32 2147483647, %v861
      %vm1022 = vcmp.lt.f32.partialorder %v1021, 0.0004427343
      %v1023 = vsel %vm1022, %v1020, %v1017
      %v1024 = vadd.f32 %v863, 1.0
      %v1025 = vlog2.pop %v1024
      %v1026 = vmul.f32 %v1025, 0.6931472
      %v1027 = vmul.f32 -0.5, %v863
      %v1028 = vadd.f32 %v1027, 1.0
      %v1029 = vmul.f32 %v1028, %v863
      %v1030 = vand.u32 2147483647, %v863
      %vm1031 = vcmp.lt.f32.partialorder %v1030, 0.0004427343
      %v1032 = vsel %vm1031, %v1029, %v1026
      %v1033 = vadd.f32 %v865, 1.0
      %v1034 = vlog2.pop %v1033
      %v1035 = vmul.f32 %v1034, 0.6931472
      %v1036 = vmul.f32 -0.5, %v865
      %v1037 = vadd.f32 %v1036, 1.0
      %v1038 = vmul.f32 %v1037, %v865
      %v1039 = vand.u32 2147483647, %v865
      %vm1040 = vcmp.lt.f32.partialorder %v1039, 0.0004427343
      %v1041 = vsel %vm1040, %v1038, %v1035
      %v1042 = vadd.f32 %v867, 1.0
      %v1043 = vlog2.pop %v1042
      %v1044 = vmul.f32 %v1043, 0.6931472
      %v1045 = vmul.f32 -0.5, %v867
      %v1046 = vadd.f32 %v1045, 1.0
      %v1047 = vmul.f32 %v1046, %v867
      %v1048 = vand.u32 2147483647, %v867
      %vm1049 = vcmp.lt.f32.partialorder %v1048, 0.0004427343
      %v1050 = vsel %vm1049, %v1047, %v1044
      %v1051 = vadd.f32 %v869, 1.0
      %v1052 = vlog2.pop %v1051
      %v1053 = vmul.f32 %v1052, 0.6931472
      %v1054 = vmul.f32 -0.5, %v869
      %v1055 = vadd.f32 %v1054, 1.0
      %v1056 = vmul.f32 %v1055, %v869
      %v1057 = vand.u32 2147483647, %v869
      %vm1058 = vcmp.lt.f32.partialorder %v1057, 0.0004427343
      %v1059 = vsel %vm1058, %v1056, %v1053
      %v1060 = vadd.f32 %v871, 1.0
      %v1061 = vlog2.pop %v1060
      %v1062 = vmul.f32 %v1061, 0.6931472
      %v1063 = vmul.f32 -0.5, %v871
      %v1064 = vadd.f32 %v1063, 1.0
      %v1065 = vmul.f32 %v1064, %v871
      %v1066 = vand.u32 2147483647, %v871
      %vm1067 = vcmp.lt.f32.partialorder %v1066, 0.0004427343
      %v1068 = vsel %vm1067, %v1065, %v1062
      %v1069 = vadd.f32 %v873, 1.0
      %v1070 = vlog2.pop %v1069
      %v1071 = vmul.f32 %v1070, 0.6931472
      %v1072 = vmul.f32 -0.5, %v873
      %v1073 = vadd.f32 %v1072, 1.0
      %v1074 = vmul.f32 %v1073, %v873
      %v1075 = vand.u32 2147483647, %v873
      %vm1076 = vcmp.lt.f32.partialorder %v1075, 0.0004427343
      %v1077 = vsel %vm1076, %v1074, %v1071
      %v1078 = vadd.f32 %v875, 1.0
      %v1079 = vlog2.pop %v1078
      %v1080 = vmul.f32 %v1079, 0.6931472
      %v1081 = vmul.f32 -0.5, %v875
      %v1082 = vadd.f32 %v1081, 1.0
      %v1083 = vmul.f32 %v1082, %v875
      %v1084 = vand.u32 2147483647, %v875
      %vm1085 = vcmp.lt.f32.partialorder %v1084, 0.0004427343
      %v1086 = vsel %vm1085, %v1083, %v1080
      %v1087 = vadd.f32 %v877, 1.0
      %v1088 = vlog2.pop %v1087
      %v1089 = vmul.f32 %v1088, 0.6931472
      %v1090 = vmul.f32 -0.5, %v877
      %v1091 = vadd.f32 %v1090, 1.0
      %v1092 = vmul.f32 %v1091, %v877
      %v1093 = vand.u32 2147483647, %v877
      %vm1094 = vcmp.lt.f32.partialorder %v1093, 0.0004427343
      %v1095 = vsel %vm1094, %v1092, %v1089
      %v1096 = vadd.f32 %v879, 1.0
      %v1097 = vlog2.pop %v1096
      %v1098 = vmul.f32 %v1097, 0.6931472
      %v1099 = vmul.f32 -0.5, %v879
      %v1100 = vadd.f32 %v1099, 1.0
      %v1101 = vmul.f32 %v1100, %v879
      %v1102 = vand.u32 2147483647, %v879
      %vm1103 = vcmp.lt.f32.partialorder %v1102, 0.0004427343
      %v1104 = vsel %vm1103, %v1101, %v1098
      %v1105 = vadd.f32 %v881, 1.0
      %v1106 = vlog2.pop %v1105
      %v1107 = vmul.f32 %v1106, 0.6931472
      %v1108 = vmul.f32 -0.5, %v881
      %v1109 = vadd.f32 %v1108, 1.0
      %v1110 = vmul.f32 %v1109, %v881
      %v1111 = vand.u32 2147483647, %v881
      %vm1112 = vcmp.lt.f32.partialorder %v1111, 0.0004427343
      %v1113 = vsel %vm1112, %v1110, %v1107
      %v1114 = vadd.f32 %v883, 1.0
      %v1115 = vlog2.pop %v1114
      %v1116 = vmul.f32 %v1115, 0.6931472
      %v1117 = vmul.f32 -0.5, %v883
      %v1118 = vadd.f32 %v1117, 1.0
      %v1119 = vmul.f32 %v1118, %v883
      %v1120 = vand.u32 2147483647, %v883
      %vm1121 = vcmp.lt.f32.partialorder %v1120, 0.0004427343
      %v1122 = vsel %vm1121, %v1119, %v1116
      %v1123 = vadd.f32 %v885, 1.0
      %v1124 = vlog2.pop %v1123
      %v1125 = vmul.f32 %v1124, 0.6931472
      %v1126 = vmul.f32 -0.5, %v885
      %v1127 = vadd.f32 %v1126, 1.0
      %v1128 = vmul.f32 %v1127, %v885
      %v1129 = vand.u32 2147483647, %v885
      %vm1130 = vcmp.lt.f32.partialorder %v1129, 0.0004427343
      %v1131 = vsel %vm1130, %v1128, %v1125
      %v1132 = vadd.f32 %v887, 1.0
      %v1133 = vlog2.pop %v1132
      %v1134 = vmul.f32 %v1133, 0.6931472
      %v1135 = vmul.f32 -0.5, %v887
      %v1136 = vadd.f32 %v1135, 1.0
      %v1137 = vmul.f32 %v1136, %v887
      %v1138 = vand.u32 2147483647, %v887
      %vm1139 = vcmp.lt.f32.partialorder %v1138, 0.0004427343
      %v1140 = vsel %vm1139, %v1137, %v1134
      %v1141 = vadd.f32 %v889, 1.0
      %v1142 = vlog2.pop %v1141
      %v1143 = vmul.f32 %v1142, 0.6931472
      %v1144 = vmul.f32 -0.5, %v889
      %v1145 = vadd.f32 %v1144, 1.0
      %v1146 = vmul.f32 %v1145, %v889
      %v1147 = vand.u32 2147483647, %v889
      %vm1148 = vcmp.lt.f32.partialorder %v1147, 0.0004427343
      %v1149 = vsel %vm1148, %v1146, %v1143
      %v1150 = vadd.f32 %v891, 1.0
      %v1151 = vlog2.pop %v1150
      %v1152 = vmul.f32 %v1151, 0.6931472
      %v1153 = vmul.f32 -0.5, %v891
      %v1154 = vadd.f32 %v1153, 1.0
      %v1155 = vmul.f32 %v1154, %v891
      %v1156 = vand.u32 2147483647, %v891
      %vm1157 = vcmp.lt.f32.partialorder %v1156, 0.0004427343
      %v1158 = vsel %vm1157, %v1155, %v1152
      %v1159 = vadd.f32 %v893, 1.0
      %v1160 = vlog2.pop %v1159
      %v1161 = vmul.f32 %v1160, 0.6931472
      %v1162 = vmul.f32 -0.5, %v893
      %v1163 = vadd.f32 %v1162, 1.0
      %v1164 = vmul.f32 %v1163, %v893
      %v1165 = vand.u32 2147483647, %v893
      %vm1166 = vcmp.lt.f32.partialorder %v1165, 0.0004427343
      %v1167 = vsel %vm1166, %v1164, %v1161
      %v1168 = vadd.f32 %v895, 1.0
      %v1169 = vlog2.pop %v1168
      %v1170 = vmul.f32 %v1169, 0.6931472
      %v1171 = vmul.f32 -0.5, %v895
      %v1172 = vadd.f32 %v1171, 1.0
      %v1173 = vmul.f32 %v1172, %v895
      %v1174 = vand.u32 2147483647, %v895
      %vm1175 = vcmp.lt.f32.partialorder %v1174, 0.0004427343
      %v1176 = vsel %vm1175, %v1173, %v1170
      %v1177 = vadd.f32 %v897, 1.0
      %v1178 = vlog2.pop %v1177
      %v1179 = vmul.f32 %v1178, 0.6931472
      %v1180 = vmul.f32 -0.5, %v897
      %v1181 = vadd.f32 %v1180, 1.0
      %v1182 = vmul.f32 %v1181, %v897
      %v1183 = vand.u32 2147483647, %v897
      %vm1184 = vcmp.lt.f32.partialorder %v1183, 0.0004427343
      %v1185 = vsel %vm1184, %v1182, %v1179
      %v1186 = vadd.f32 %v674, %v906
      %v1187 = vadd.f32 %v675, %v915
      %v1188 = vadd.f32 %v676, %v924
      %v1189 = vadd.f32 %v677, %v933
      %v1190 = vadd.f32 %v678, %v942
      %v1191 = vadd.f32 %v679, %v951
      %v1192 = vadd.f32 %v680, %v960
      %v1193 = vadd.f32 %v681, %v969
      %v1194 = vadd.f32 %v682, %v978
      %v1195 = vadd.f32 %v683, %v987
      %v1196 = vadd.f32 %v684, %v996
      %v1197 = vadd.f32 %v685, %v1005
      %v1198 = vadd.f32 %v686, %v1014
      %v1199 = vadd.f32 %v687, %v1023
      %v1200 = vadd.f32 %v688, %v1032
      %v1201 = vadd.f32 %v689, %v1041
      %v1202 = vadd.f32 %v690, %v1050
      %v1203 = vadd.f32 %v691, %v1059
      %v1204 = vadd.f32 %v692, %v1068
      %v1205 = vadd.f32 %v693, %v1077
      %v1206 = vadd.f32 %v694, %v1086
      %v1207 = vadd.f32 %v695, %v1095
      %v1208 = vadd.f32 %v696, %v1104
      %v1209 = vadd.f32 %v697, %v1113
      %v1210 = vadd.f32 %v698, %v1122
      %v1211 = vadd.f32 %v699, %v1131
      %v1212 = vadd.f32 %v700, %v1140
      %v1213 = vadd.f32 %v701, %v1149
      %v1214 = vadd.f32 %v702, %v1158
      %v1215 = vadd.f32 %v703, %v1167
      %v1216 = vadd.f32 %v704, %v1176
      %v1217 = vadd.f32 %v705, %v1185
      %v1218 = vsel %vm706, %v738, %v1186
      %v1219 = vsel %vm707, %v739, %v1187
      %v1220 = vsel %vm708, %v740, %v1188
      %v1221 = vsel %vm709, %v741, %v1189
      %v1222 = vsel %vm710, %v742, %v1190
      %v1223 = vsel %vm711, %v743, %v1191
      %v1224 = vsel %vm712, %v744, %v1192
      %v1225 = vsel %vm713, %v745, %v1193
      %v1226 = vsel %vm714, %v746, %v1194
      %v1227 = vsel %vm715, %v747, %v1195
      %v1228 = vsel %vm716, %v748, %v1196
      %v1229 = vsel %vm717, %v749, %v1197
      %v1230 = vsel %vm718, %v750, %v1198
      %v1231 = vsel %vm719, %v751, %v1199
      %v1232 = vsel %vm720, %v752, %v1200
      %v1233 = vsel %vm721, %v753, %v1201
      %v1234 = vsel %vm722, %v754, %v1202
      %v1235 = vsel %vm723, %v755, %v1203
      %v1236 = vsel %vm724, %v756, %v1204
      %v1237 = vsel %vm725, %v757, %v1205
      %v1238 = vsel %vm726, %v758, %v1206
      %v1239 = vsel %vm727, %v759, %v1207
      %v1240 = vsel %vm728, %v760, %v1208
      %v1241 = vsel %vm729, %v761, %v1209
      %v1242 = vsel %vm730, %v762, %v1210
      %v1243 = vsel %vm731, %v763, %v1211
      %v1244 = vsel %vm732, %v764, %v1212
      %v1245 = vsel %vm733, %v765, %v1213
      %v1246 = vsel %vm734, %v766, %v1214
      %v1247 = vsel %vm735, %v767, %v1215
      %v1248 = vsel %vm736, %v768, %v1216
      %v1249 = vsel %vm737, %v769, %v1217
      %v1250 = vpack.c.bf16 %v1219, %v1218
      %v1251 = vpack.c.bf16 %v1221, %v1220
      %v1252 = vpack.c.bf16 %v1223, %v1222
      %v1253 = vpack.c.bf16 %v1225, %v1224
      %v1254 = vpack.c.bf16 %v1227, %v1226
      %v1255 = vpack.c.bf16 %v1229, %v1228
      %v1256 = vpack.c.bf16 %v1231, %v1230
      %v1257 = vpack.c.bf16 %v1233, %v1232
      %v1258 = vpack.c.bf16 %v1235, %v1234
      %v1259 = vpack.c.bf16 %v1237, %v1236
      %v1260 = vpack.c.bf16 %v1239, %v1238
      %v1261 = vpack.c.bf16 %v1241, %v1240
      %v1262 = vpack.c.bf16 %v1243, %v1242
      %v1263 = vpack.c.bf16 %v1245, %v1244
      %v1264 = vpack.c.bf16 %v1247, %v1246
      %v1265 = vpack.c.bf16 %v1249, %v1248
      %v1267 = vlaneseq
      %v1268 = vshrl.u32 %v1267, 7
      %v1269 = vsub.s32 0, %v1268
      %v1270 = vrot.slane %v425, %v1269
      %v1288 = vunpack.c.l.b16 %v409
      %v1289 = vunpack.c.l.b16 %v410
      %v1290 = vunpack.c.l.b16 %v411
      %v1291 = vunpack.c.l.b16 %v412
      %v1292 = vunpack.c.l.b16 %v413
      %v1293 = vunpack.c.l.b16 %v414
      %v1294 = vunpack.c.l.b16 %v415
      %v1295 = vunpack.c.l.b16 %v416
      %v1296 = vunpack.c.l.b16 %v417
      %v1297 = vunpack.c.l.b16 %v418
      %v1298 = vunpack.c.l.b16 %v419
      %v1299 = vunpack.c.l.b16 %v420
      %v1300 = vunpack.c.l.b16 %v421
      %v1301 = vunpack.c.l.b16 %v422
      %v1302 = vunpack.c.l.b16 %v423
      %v1303 = vunpack.c.l.b16 %v424
      %v1304 = vpack.c.b16 %v1289, %v1288
      %v1305 = vpack.c.b16 %v1291, %v1290
      %v1306 = vpack.c.b16 %v1293, %v1292
      %v1307 = vpack.c.b16 %v1295, %v1294
      %v1308 = vpack.c.b16 %v1297, %v1296
      %v1309 = vpack.c.b16 %v1299, %v1298
      %v1310 = vpack.c.b16 %v1301, %v1300
      %v1311 = vpack.c.b16 %v1303, %v1302
      %1320 = vmatprep.subr.bf16.mxu0 0
      %1321 = vmatpush1.bf16.msra.mxu0 %v1304
      %1322 = vmatprep.subr.bf16.mxu0 0
      %1323 = vmatpush1.bf16.msra.mxu0 %v1305
      %1324 = vmatprep.subr.bf16.mxu0 0
      %1325 = vmatpush1.bf16.msra.mxu0 %v1306
      %1326 = vmatprep.subr.bf16.mxu0 0
      %1327 = vmatpush1.bf16.msra.mxu0 %v1307
      %1328 = vmatprep.subr.bf16.mxu0 0
      %1329 = vmatpush1.bf16.msra.mxu0 %v1308
      %1330 = vmatprep.subr.bf16.mxu0 0
      %1331 = vmatpush1.bf16.msra.mxu0 %v1309
      %1332 = vmatprep.subr.bf16.mxu0 0
      %1333 = vmatpush1.bf16.msra.mxu0 %v1310
      %1334 = vmatprep.subr.bf16.mxu0 0
      %1335 = vmatpush1.bf16.msra.mxu0 %v1311
      %1336 = vmatprep.subr.bf16.mxu0 0
      %1337 = vmatpush1.bf16.msra.mxu0 0
      %1338 = vmatprep.subr.bf16.mxu0 0
      %1339 = vmatpush1.bf16.msra.mxu0 0
      %1340 = vmatprep.subr.bf16.mxu0 0
      %1341 = vmatpush1.bf16.msra.mxu0 0
      %1342 = vmatprep.subr.bf16.mxu0 0
      %1343 = vmatpush1.bf16.msra.mxu0 0
      %1344 = vmatprep.subr.bf16.mxu0 0
      %1345 = vmatpush1.bf16.msra.mxu0 0
      %1346 = vmatprep.subr.bf16.mxu0 0
      %1347 = vmatpush1.bf16.msra.mxu0 0
      %1348 = vmatprep.subr.bf16.mxu0 0
      %1349 = vmatpush1.bf16.msra.mxu0 0
      %1350 = vmatprep.subr.bf16.mxu0 0
      %1351 = vmatpush1.bf16.msra.mxu0 0
      %1352 = vmatprep.mubr.bf16.mxu0 0
      %1353 = vmatmul.mubr.bf16.gmra.mrb[0].mxu0 %v1250
      %v1354 = vpop.f32.mrb[0].mxu0
      %v1355 = vadd.f32 %v1270, %v1354
      %v1356 = vpop.f32.mrb[0].mxu0
      %v1357 = vpop.f32.mrb[0].mxu0
      %v1358 = vadd.f32 %v1270, %v1357
      %v1359 = vpop.f32.mrb[0].mxu0
      %1360 = vmatprep.mubr.bf16.mxu0 0
      %1361 = vmatmul.mubr.bf16.gmra.mrb[0].mxu0 %v1251
      %v1362 = vpop.f32.mrb[0].mxu0
      %v1363 = vadd.f32 %v1270, %v1362
      %v1364 = vpop.f32.mrb[0].mxu0
      %v1365 = vpop.f32.mrb[0].mxu0
      %v1366 = vadd.f32 %v1270, %v1365
      %v1367 = vpop.f32.mrb[0].mxu0
      %1368 = vmatprep.mubr.bf16.mxu0 0
      %1369 = vmatmul.mubr.bf16.gmra.mrb[0].mxu0 %v1252
      %v1370 = vpop.f32.mrb[0].mxu0
      %v1371 = vadd.f32 %v1270, %v1370
      %v1372 = vpop.f32.mrb[0].mxu0
      %v1373 = vpop.f32.mrb[0].mxu0
      %v1374 = vadd.f32 %v1270, %v1373
      %v1375 = vpop.f32.mrb[0].mxu0
      %1376 = vmatprep.mubr.bf16.mxu0 0
      %1377 = vmatmul.mubr.bf16.gmra.mrb[0].mxu0 %v1253
      %v1378 = vpop.f32.mrb[0].mxu0
      %v1379 = vadd.f32 %v1270, %v1378
      %v1380 = vpop.f32.mrb[0].mxu0
      %v1381 = vpop.f32.mrb[0].mxu0
      %v1382 = vadd.f32 %v1270, %v1381
      %v1383 = vpop.f32.mrb[0].mxu0
      %1384 = vmatprep.mubr.bf16.mxu0 0
      %1385 = vmatmul.mubr.bf16.gmra.mrb[0].mxu0 %v1254
      %v1386 = vpop.f32.mrb[0].mxu0
      %v1387 = vadd.f32 %v1270, %v1386
      %v1388 = vpop.f32.mrb[0].mxu0
      %v1389 = vpop.f32.mrb[0].mxu0
      %v1390 = vadd.f32 %v1270, %v1389
      %v1391 = vpop.f32.mrb[0].mxu0
      %1392 = vmatprep.mubr.bf16.mxu0 0
      %1393 = vmatmul.mubr.bf16.gmra.mrb[0].mxu0 %v1255
      %v1394 = vpop.f32.mrb[0].mxu0
      %v1395 = vadd.f32 %v1270, %v1394
      %v1396 = vpop.f32.mrb[0].mxu0
      %v1397 = vpop.f32.mrb[0].mxu0
      %v1398 = vadd.f32 %v1270, %v1397
      %v1399 = vpop.f32.mrb[0].mxu0
      %1400 = vmatprep.mubr.bf16.mxu0 0
      %1401 = vmatmul.mubr.bf16.gmra.mrb[0].mxu0 %v1256
      %v1402 = vpop.f32.mrb[0].mxu0
      %v1403 = vadd.f32 %v1270, %v1402
      %v1404 = vpop.f32.mrb[0].mxu0
      %v1405 = vpop.f32.mrb[0].mxu0
      %v1406 = vadd.f32 %v1270, %v1405
      %v1407 = vpop.f32.mrb[0].mxu0
      %1408 = vmatprep.mubr.bf16.mxu0 0
      %1409 = vmatmul.mubr.bf16.gmra.mrb[0].mxu0 %v1257
      %v1410 = vpop.f32.mrb[0].mxu0
      %v1411 = vadd.f32 %v1270, %v1410
      %v1412 = vpop.f32.mrb[0].mxu0
      %v1413 = vpop.f32.mrb[0].mxu0
      %v1414 = vadd.f32 %v1270, %v1413
      %v1415 = vpop.f32.mrb[0].mxu0
      %1416 = vmatprep.mubr.bf16.mxu0 0
      %1417 = vmatmul.mubr.bf16.gmra.mrb[0].mxu0 %v1258
      %v1418 = vpop.f32.mrb[0].mxu0
      %v1419 = vadd.f32 %v1270, %v1418
      %v1420 = vpop.f32.mrb[0].mxu0
      %v1421 = vpop.f32.mrb[0].mxu0
      %v1422 = vadd.f32 %v1270, %v1421
      %v1423 = vpop.f32.mrb[0].mxu0
      %1424 = vmatprep.mubr.bf16.mxu0 0
      %1425 = vmatmul.mubr.bf16.gmra.mrb[0].mxu0 %v1259
      %v1426 = vpop.f32.mrb[0].mxu0
      %v1427 = vadd.f32 %v1270, %v1426
      %v1428 = vpop.f32.mrb[0].mxu0
      %v1429 = vpop.f32.mrb[0].mxu0
      %v1430 = vadd.f32 %v1270, %v1429
      %v1431 = vpop.f32.mrb[0].mxu0
      %1432 = vmatprep.mubr.bf16.mxu0 0
      %1433 = vmatmul.mubr.bf16.gmra.mrb[0].mxu0 %v1260
      %v1434 = vpop.f32.mrb[0].mxu0
      %v1435 = vadd.f32 %v1270, %v1434
      %v1436 = vpop.f32.mrb[0].mxu0
      %v1437 = vpop.f32.mrb[0].mxu0
      %v1438 = vadd.f32 %v1270, %v1437
      %v1439 = vpop.f32.mrb[0].mxu0
      %1440 = vmatprep.mubr.bf16.mxu0 0
      %1441 = vmatmul.mubr.bf16.gmra.mrb[0].mxu0 %v1261
      %v1442 = vpop.f32.mrb[0].mxu0
      %v1443 = vadd.f32 %v1270, %v1442
      %v1444 = vpop.f32.mrb[0].mxu0
      %v1445 = vpop.f32.mrb[0].mxu0
      %v1446 = vadd.f32 %v1270, %v1445
      %v1447 = vpop.f32.mrb[0].mxu0
      %1448 = vmatprep.mubr.bf16.mxu0 0
      %1449 = vmatmul.mubr.bf16.gmra.mrb[0].mxu0 %v1262
      %v1450 = vpop.f32.mrb[0].mxu0
      %v1451 = vadd.f32 %v1270, %v1450
      %v1452 = vpop.f32.mrb[0].mxu0
      %v1453 = vpop.f32.mrb[0].mxu0
      %v1454 = vadd.f32 %v1270, %v1453
      %v1455 = vpop.f32.mrb[0].mxu0
      %1456 = vmatprep.mubr.bf16.mxu0 0
      %1457 = vmatmul.mubr.bf16.gmra.mrb[0].mxu0 %v1263
      %v1458 = vpop.f32.mrb[0].mxu0
      %v1459 = vadd.f32 %v1270, %v1458
      %v1460 = vpop.f32.mrb[0].mxu0
      %v1461 = vpop.f32.mrb[0].mxu0
      %v1462 = vadd.f32 %v1270, %v1461
      %v1463 = vpop.f32.mrb[0].mxu0
      %1464 = vmatprep.mubr.bf16.mxu0 0
      %1465 = vmatmul.mubr.bf16.gmra.mrb[0].mxu0 %v1264
      %v1466 = vpop.f32.mrb[0].mxu0
      %v1467 = vadd.f32 %v1270, %v1466
      %v1468 = vpop.f32.mrb[0].mxu0
      %v1469 = vpop.f32.mrb[0].mxu0
      %v1470 = vadd.f32 %v1270, %v1469
      %v1471 = vpop.f32.mrb[0].mxu0
      %1472 = vmatprep.mubr.bf16.mxu0 0
      %1473 = vmatmul.mubr.bf16.gmra.mrb[0].mxu0 %v1265
      %v1474 = vpop.f32.mrb[0].mxu0
      %v1475 = vadd.f32 %v1270, %v1474
      %v1476 = vpop.f32.mrb[0].mxu0
      %v1477 = vpop.f32.mrb[0].mxu0
      %v1478 = vadd.f32 %v1270, %v1477
      %v1479 = vpop.f32.mrb[0].mxu0
      %1480 = vdwg.mxu0
      %v1481 = vmax.f32 %v1355, 0.0
      %v1482 = vmax.f32 %v1358, 0.0
      %v1483 = vmax.f32 %v1363, 0.0
      %v1484 = vmax.f32 %v1366, 0.0
      %v1485 = vmax.f32 %v1371, 0.0
      %v1486 = vmax.f32 %v1374, 0.0
      %v1487 = vmax.f32 %v1379, 0.0
      %v1488 = vmax.f32 %v1382, 0.0
      %v1489 = vmax.f32 %v1387, 0.0
      %v1490 = vmax.f32 %v1390, 0.0
      %v1491 = vmax.f32 %v1395, 0.0
      %v1492 = vmax.f32 %v1398, 0.0
      %v1493 = vmax.f32 %v1403, 0.0
      %v1494 = vmax.f32 %v1406, 0.0
      %v1495 = vmax.f32 %v1411, 0.0
      %v1496 = vmax.f32 %v1414, 0.0
      %v1497 = vmax.f32 %v1419, 0.0
      %v1498 = vmax.f32 %v1422, 0.0
      %v1499 = vmax.f32 %v1427, 0.0
      %v1500 = vmax.f32 %v1430, 0.0
      %v1501 = vmax.f32 %v1435, 0.0
      %v1502 = vmax.f32 %v1438, 0.0
      %v1503 = vmax.f32 %v1443, 0.0
      %v1504 = vmax.f32 %v1446, 0.0
      %v1505 = vmax.f32 %v1451, 0.0
      %v1506 = vmax.f32 %v1454, 0.0
      %v1507 = vmax.f32 %v1459, 0.0
      %v1508 = vmax.f32 %v1462, 0.0
      %v1509 = vmax.f32 %v1467, 0.0
      %v1510 = vmax.f32 %v1470, 0.0
      %v1511 = vmax.f32 %v1475, 0.0
      %v1512 = vmax.f32 %v1478, 0.0
      %vm1513 = vcmp.ne.f32.partialorder %v1355, %v1355
      %vm1514 = vcmp.ne.f32.partialorder %v1358, %v1358
      %vm1515 = vcmp.ne.f32.partialorder %v1363, %v1363
      %vm1516 = vcmp.ne.f32.partialorder %v1366, %v1366
      %vm1517 = vcmp.ne.f32.partialorder %v1371, %v1371
      %vm1518 = vcmp.ne.f32.partialorder %v1374, %v1374
      %vm1519 = vcmp.ne.f32.partialorder %v1379, %v1379
      %vm1520 = vcmp.ne.f32.partialorder %v1382, %v1382
      %vm1521 = vcmp.ne.f32.partialorder %v1387, %v1387
      %vm1522 = vcmp.ne.f32.partialorder %v1390, %v1390
      %vm1523 = vcmp.ne.f32.partialorder %v1395, %v1395
      %vm1524 = vcmp.ne.f32.partialorder %v1398, %v1398
      %vm1525 = vcmp.ne.f32.partialorder %v1403, %v1403
      %vm1526 = vcmp.ne.f32.partialorder %v1406, %v1406
      %vm1527 = vcmp.ne.f32.partialorder %v1411, %v1411
      %vm1528 = vcmp.ne.f32.partialorder %v1414, %v1414
      %vm1529 = vcmp.ne.f32.partialorder %v1419, %v1419
      %vm1530 = vcmp.ne.f32.partialorder %v1422, %v1422
      %vm1531 = vcmp.ne.f32.partialorder %v1427, %v1427
      %vm1532 = vcmp.ne.f32.partialorder %v1430, %v1430
      %vm1533 = vcmp.ne.f32.partialorder %v1435, %v1435
      %vm1534 = vcmp.ne.f32.partialorder %v1438, %v1438
      %vm1535 = vcmp.ne.f32.partialorder %v1443, %v1443
      %vm1536 = vcmp.ne.f32.partialorder %v1446, %v1446
      %vm1537 = vcmp.ne.f32.partialorder %v1451, %v1451
      %vm1538 = vcmp.ne.f32.partialorder %v1454, %v1454
      %vm1539 = vcmp.ne.f32.partialorder %v1459, %v1459
      %vm1540 = vcmp.ne.f32.partialorder %v1462, %v1462
      %vm1541 = vcmp.ne.f32.partialorder %v1467, %v1467
      %vm1542 = vcmp.ne.f32.partialorder %v1470, %v1470
      %vm1543 = vcmp.ne.f32.partialorder %v1475, %v1475
      %vm1544 = vcmp.ne.f32.partialorder %v1478, %v1478
      %v1545 = vadd.f32 %v1355, 0.0
      %v1546 = vadd.f32 %v1358, 0.0
      %v1547 = vadd.f32 %v1363, 0.0
      %v1548 = vadd.f32 %v1366, 0.0
      %v1549 = vadd.f32 %v1371, 0.0
      %v1550 = vadd.f32 %v1374, 0.0
      %v1551 = vadd.f32 %v1379, 0.0
      %v1552 = vadd.f32 %v1382, 0.0
      %v1553 = vadd.f32 %v1387, 0.0
      %v1554 = vadd.f32 %v1390, 0.0
      %v1555 = vadd.f32 %v1395, 0.0
      %v1556 = vadd.f32 %v1398, 0.0
      %v1557 = vadd.f32 %v1403, 0.0
      %v1558 = vadd.f32 %v1406, 0.0
      %v1559 = vadd.f32 %v1411, 0.0
      %v1560 = vadd.f32 %v1414, 0.0
      %v1561 = vadd.f32 %v1419, 0.0
      %v1562 = vadd.f32 %v1422, 0.0
      %v1563 = vadd.f32 %v1427, 0.0
      %v1564 = vadd.f32 %v1430, 0.0
      %v1565 = vadd.f32 %v1435, 0.0
      %v1566 = vadd.f32 %v1438, 0.0
      %v1567 = vadd.f32 %v1443, 0.0
      %v1568 = vadd.f32 %v1446, 0.0
      %v1569 = vadd.f32 %v1451, 0.0
      %v1570 = vadd.f32 %v1454, 0.0
      %v1571 = vadd.f32 %v1459, 0.0
      %v1572 = vadd.f32 %v1462, 0.0
      %v1573 = vadd.f32 %v1467, 0.0
      %v1574 = vadd.f32 %v1470, 0.0
      %v1575 = vadd.f32 %v1475, 0.0
      %v1576 = vadd.f32 %v1478, 0.0
      %v1577 = vand.u32 2147483647, %v1355
      %v1578 = vand.u32 2147483647, %v1358
      %v1579 = vand.u32 2147483647, %v1363
      %v1580 = vand.u32 2147483647, %v1366
      %v1581 = vand.u32 2147483647, %v1371
      %v1582 = vand.u32 2147483647, %v1374
      %v1583 = vand.u32 2147483647, %v1379
      %v1584 = vand.u32 2147483647, %v1382
      %v1585 = vand.u32 2147483647, %v1387
      %v1586 = vand.u32 2147483647, %v1390
      %v1587 = vand.u32 2147483647, %v1395
      %v1588 = vand.u32 2147483647, %v1398
      %v1589 = vand.u32 2147483647, %v1403
      %v1590 = vand.u32 2147483647, %v1406
      %v1591 = vand.u32 2147483647, %v1411
      %v1592 = vand.u32 2147483647, %v1414
      %v1593 = vand.u32 2147483647, %v1419
      %v1594 = vand.u32 2147483647, %v1422
      %v1595 = vand.u32 2147483647, %v1427
      %v1596 = vand.u32 2147483647, %v1430
      %v1597 = vand.u32 2147483647, %v1435
      %v1598 = vand.u32 2147483647, %v1438
      %v1599 = vand.u32 2147483647, %v1443
      %v1600 = vand.u32 2147483647, %v1446
      %v1601 = vand.u32 2147483647, %v1451
      %v1602 = vand.u32 2147483647, %v1454
      %v1603 = vand.u32 2147483647, %v1459
      %v1604 = vand.u32 2147483647, %v1462
      %v1605 = vand.u32 2147483647, %v1467
      %v1606 = vand.u32 2147483647, %v1470
      %v1607 = vand.u32 2147483647, %v1475
      %v1608 = vand.u32 2147483647, %v1478
      %v1609 = vsub.f32 0.0, %v1577
      %v1610 = vsub.f32 0.0, %v1578
      %v1611 = vsub.f32 0.0, %v1579
      %v1612 = vsub.f32 0.0, %v1580
      %v1613 = vsub.f32 0.0, %v1581
      %v1614 = vsub.f32 0.0, %v1582
      %v1615 = vsub.f32 0.0, %v1583
      %v1616 = vsub.f32 0.0, %v1584
      %v1617 = vsub.f32 0.0, %v1585
      %v1618 = vsub.f32 0.0, %v1586
      %v1619 = vsub.f32 0.0, %v1587
      %v1620 = vsub.f32 0.0, %v1588
      %v1621 = vsub.f32 0.0, %v1589
      %v1622 = vsub.f32 0.0, %v1590
      %v1623 = vsub.f32 0.0, %v1591
      %v1624 = vsub.f32 0.0, %v1592
      %v1625 = vsub.f32 0.0, %v1593
      %v1626 = vsub.f32 0.0, %v1594
      %v1627 = vsub.f32 0.0, %v1595
      %v1628 = vsub.f32 0.0, %v1596
      %v1629 = vsub.f32 0.0, %v1597
      %v1630 = vsub.f32 0.0, %v1598
      %v1631 = vsub.f32 0.0, %v1599
      %v1632 = vsub.f32 0.0, %v1600
      %v1633 = vsub.f32 0.0, %v1601
      %v1634 = vsub.f32 0.0, %v1602
      %v1635 = vsub.f32 0.0, %v1603
      %v1636 = vsub.f32 0.0, %v1604
      %v1637 = vsub.f32 0.0, %v1605
      %v1638 = vsub.f32 0.0, %v1606
      %v1639 = vsub.f32 0.0, %v1607
      %v1640 = vsub.f32 0.0, %v1608
      %v1641 = vmul.f32 %v1609, 1.442695
      %v1642 = vpow.pop %v1641
      %v1643 = vmul.f32 %v1610, 1.442695
      %v1644 = vpow.pop %v1643
      %v1645 = vmul.f32 %v1611, 1.442695
      %v1646 = vpow.pop %v1645
      %v1647 = vmul.f32 %v1612, 1.442695
      %v1648 = vpow.pop %v1647
      %v1649 = vmul.f32 %v1613, 1.442695
      %v1650 = vpow.pop %v1649
      %v1651 = vmul.f32 %v1614, 1.442695
      %v1652 = vpow.pop %v1651
      %v1653 = vmul.f32 %v1615, 1.442695
      %v1654 = vpow.pop %v1653
      %v1655 = vmul.f32 %v1616, 1.442695
      %v1656 = vpow.pop %v1655
      %v1657 = vmul.f32 %v1617, 1.442695
      %v1658 = vpow.pop %v1657
      %v1659 = vmul.f32 %v1618, 1.442695
      %v1660 = vpow.pop %v1659
      %v1661 = vmul.f32 %v1619, 1.442695
      %v1662 = vpow.pop %v1661
      %v1663 = vmul.f32 %v1620, 1.442695
      %v1664 = vpow.pop %v1663
      %v1665 = vmul.f32 %v1621, 1.442695
      %v1666 = vpow.pop %v1665
      %v1667 = vmul.f32 %v1622, 1.442695
      %v1668 = vpow.pop %v1667
      %v1669 = vmul.f32 %v1623, 1.442695
      %v1670 = vpow.pop %v1669
      %v1671 = vmul.f32 %v1624, 1.442695
      %v1672 = vpow.pop %v1671
      %v1673 = vmul.f32 %v1625, 1.442695
      %v1674 = vpow.pop %v1673
      %v1675 = vmul.f32 %v1626, 1.442695
      %v1676 = vpow.pop %v1675
      %v1677 = vmul.f32 %v1627, 1.442695
      %v1678 = vpow.pop %v1677
      %v1679 = vmul.f32 %v1628, 1.442695
      %v1680 = vpow.pop %v1679
      %v1681 = vmul.f32 %v1629, 1.442695
      %v1682 = vpow.pop %v1681
      %v1683 = vmul.f32 %v1630, 1.442695
      %v1684 = vpow.pop %v1683
      %v1685 = vmul.f32 %v1631, 1.442695
      %v1686 = vpow.pop %v1685
      %v1687 = vmul.f32 %v1632, 1.442695
      %v1688 = vpow.pop %v1687
      %v1689 = vmul.f32 %v1633, 1.442695
      %v1690 = vpow.pop %v1689
      %v1691 = vmul.f32 %v1634, 1.442695
      %v1692 = vpow.pop %v1691
      %v1693 = vmul.f32 %v1635, 1.442695
      %v1694 = vpow.pop %v1693
      %v1695 = vmul.f32 %v1636, 1.442695
      %v1696 = vpow.pop %v1695
      %v1697 = vmul.f32 %v1637, 1.442695
      %v1698 = vpow.pop %v1697
      %v1699 = vmul.f32 %v1638, 1.442695
      %v1700 = vpow.pop %v1699
      %v1701 = vmul.f32 %v1639, 1.442695
      %v1702 = vpow.pop %v1701
      %v1703 = vmul.f32 %v1640, 1.442695
      %v1704 = vpow.pop %v1703
      %v1705 = vadd.f32 %v1642, 1.0
      %v1706 = vlog2.pop %v1705
      %v1707 = vmul.f32 %v1706, 0.6931472
      %v1708 = vmul.f32 -0.5, %v1642
      %v1709 = vadd.f32 %v1708, 1.0
      %v1710 = vmul.f32 %v1709, %v1642
      %v1711 = vand.u32 2147483647, %v1642
      %vm1712 = vcmp.lt.f32.partialorder %v1711, 0.0004427343
      %v1713 = vsel %vm1712, %v1710, %v1707
      %v1714 = vadd.f32 %v1644, 1.0
      %v1715 = vlog2.pop %v1714
      %v1716 = vmul.f32 %v1715, 0.6931472
      %v1717 = vmul.f32 -0.5, %v1644
      %v1718 = vadd.f32 %v1717, 1.0
      %v1719 = vmul.f32 %v1718, %v1644
      %v1720 = vand.u32 2147483647, %v1644
      %vm1721 = vcmp.lt.f32.partialorder %v1720, 0.0004427343
      %v1722 = vsel %vm1721, %v1719, %v1716
      %v1723 = vadd.f32 %v1646, 1.0
      %v1724 = vlog2.pop %v1723
      %v1725 = vmul.f32 %v1724, 0.6931472
      %v1726 = vmul.f32 -0.5, %v1646
      %v1727 = vadd.f32 %v1726, 1.0
      %v1728 = vmul.f32 %v1727, %v1646
      %v1729 = vand.u32 2147483647, %v1646
      %vm1730 = vcmp.lt.f32.partialorder %v1729, 0.0004427343
      %v1731 = vsel %vm1730, %v1728, %v1725
      %v1732 = vadd.f32 %v1648, 1.0
      %v1733 = vlog2.pop %v1732
      %v1734 = vmul.f32 %v1733, 0.6931472
      %v1735 = vmul.f32 -0.5, %v1648
      %v1736 = vadd.f32 %v1735, 1.0
      %v1737 = vmul.f32 %v1736, %v1648
      %v1738 = vand.u32 2147483647, %v1648
      %vm1739 = vcmp.lt.f32.partialorder %v1738, 0.0004427343
      %v1740 = vsel %vm1739, %v1737, %v1734
      %v1741 = vadd.f32 %v1650, 1.0
      %v1742 = vlog2.pop %v1741
      %v1743 = vmul.f32 %v1742, 0.6931472
      %v1744 = vmul.f32 -0.5, %v1650
      %v1745 = vadd.f32 %v1744, 1.0
      %v1746 = vmul.f32 %v1745, %v1650
      %v1747 = vand.u32 2147483647, %v1650
      %vm1748 = vcmp.lt.f32.partialorder %v1747, 0.0004427343
      %v1749 = vsel %vm1748, %v1746, %v1743
      %v1750 = vadd.f32 %v1652, 1.0
      %v1751 = vlog2.pop %v1750
      %v1752 = vmul.f32 %v1751, 0.6931472
      %v1753 = vmul.f32 -0.5, %v1652
      %v1754 = vadd.f32 %v1753, 1.0
      %v1755 = vmul.f32 %v1754, %v1652
      %v1756 = vand.u32 2147483647, %v1652
      %vm1757 = vcmp.lt.f32.partialorder %v1756, 0.0004427343
      %v1758 = vsel %vm1757, %v1755, %v1752
      %v1759 = vadd.f32 %v1654, 1.0
      %v1760 = vlog2.pop %v1759
      %v1761 = vmul.f32 %v1760, 0.6931472
      %v1762 = vmul.f32 -0.5, %v1654
      %v1763 = vadd.f32 %v1762, 1.0
      %v1764 = vmul.f32 %v1763, %v1654
      %v1765 = vand.u32 2147483647, %v1654
      %vm1766 = vcmp.lt.f32.partialorder %v1765, 0.0004427343
      %v1767 = vsel %vm1766, %v1764, %v1761
      %v1768 = vadd.f32 %v1656, 1.0
      %v1769 = vlog2.pop %v1768
      %v1770 = vmul.f32 %v1769, 0.6931472
      %v1771 = vmul.f32 -0.5, %v1656
      %v1772 = vadd.f32 %v1771, 1.0
      %v1773 = vmul.f32 %v1772, %v1656
      %v1774 = vand.u32 2147483647, %v1656
      %vm1775 = vcmp.lt.f32.partialorder %v1774, 0.0004427343
      %v1776 = vsel %vm1775, %v1773, %v1770
      %v1777 = vadd.f32 %v1658, 1.0
      %v1778 = vlog2.pop %v1777
      %v1779 = vmul.f32 %v1778, 0.6931472
      %v1780 = vmul.f32 -0.5, %v1658
      %v1781 = vadd.f32 %v1780, 1.0
      %v1782 = vmul.f32 %v1781, %v1658
      %v1783 = vand.u32 2147483647, %v1658
      %vm1784 = vcmp.lt.f32.partialorder %v1783, 0.0004427343
      %v1785 = vsel %vm1784, %v1782, %v1779
      %v1786 = vadd.f32 %v1660, 1.0
      %v1787 = vlog2.pop %v1786
      %v1788 = vmul.f32 %v1787, 0.6931472
      %v1789 = vmul.f32 -0.5, %v1660
      %v1790 = vadd.f32 %v1789, 1.0
      %v1791 = vmul.f32 %v1790, %v1660
      %v1792 = vand.u32 2147483647, %v1660
      %vm1793 = vcmp.lt.f32.partialorder %v1792, 0.0004427343
      %v1794 = vsel %vm1793, %v1791, %v1788
      %v1795 = vadd.f32 %v1662, 1.0
      %v1796 = vlog2.pop %v1795
      %v1797 = vmul.f32 %v1796, 0.6931472
      %v1798 = vmul.f32 -0.5, %v1662
      %v1799 = vadd.f32 %v1798, 1.0
      %v1800 = vmul.f32 %v1799, %v1662
      %v1801 = vand.u32 2147483647, %v1662
      %vm1802 = vcmp.lt.f32.partialorder %v1801, 0.0004427343
      %v1803 = vsel %vm1802, %v1800, %v1797
      %v1804 = vadd.f32 %v1664, 1.0
      %v1805 = vlog2.pop %v1804
      %v1806 = vmul.f32 %v1805, 0.6931472
      %v1807 = vmul.f32 -0.5, %v1664
      %v1808 = vadd.f32 %v1807, 1.0
      %v1809 = vmul.f32 %v1808, %v1664
      %v1810 = vand.u32 2147483647, %v1664
      %vm1811 = vcmp.lt.f32.partialorder %v1810, 0.0004427343
      %v1812 = vsel %vm1811, %v1809, %v1806
      %v1813 = vadd.f32 %v1666, 1.0
      %v1814 = vlog2.pop %v1813
      %v1815 = vmul.f32 %v1814, 0.6931472
      %v1816 = vmul.f32 -0.5, %v1666
      %v1817 = vadd.f32 %v1816, 1.0
      %v1818 = vmul.f32 %v1817, %v1666
      %v1819 = vand.u32 2147483647, %v1666
      %vm1820 = vcmp.lt.f32.partialorder %v1819, 0.0004427343
      %v1821 = vsel %vm1820, %v1818, %v1815
      %v1822 = vadd.f32 %v1668, 1.0
      %v1823 = vlog2.pop %v1822
      %v1824 = vmul.f32 %v1823, 0.6931472
      %v1825 = vmul.f32 -0.5, %v1668
      %v1826 = vadd.f32 %v1825, 1.0
      %v1827 = vmul.f32 %v1826, %v1668
      %v1828 = vand.u32 2147483647, %v1668
      %vm1829 = vcmp.lt.f32.partialorder %v1828, 0.0004427343
      %v1830 = vsel %vm1829, %v1827, %v1824
      %v1831 = vadd.f32 %v1670, 1.0
      %v1832 = vlog2.pop %v1831
      %v1833 = vmul.f32 %v1832, 0.6931472
      %v1834 = vmul.f32 -0.5, %v1670
      %v1835 = vadd.f32 %v1834, 1.0
      %v1836 = vmul.f32 %v1835, %v1670
      %v1837 = vand.u32 2147483647, %v1670
      %vm1838 = vcmp.lt.f32.partialorder %v1837, 0.0004427343
      %v1839 = vsel %vm1838, %v1836, %v1833
      %v1840 = vadd.f32 %v1672, 1.0
      %v1841 = vlog2.pop %v1840
      %v1842 = vmul.f32 %v1841, 0.6931472
      %v1843 = vmul.f32 -0.5, %v1672
      %v1844 = vadd.f32 %v1843, 1.0
      %v1845 = vmul.f32 %v1844, %v1672
      %v1846 = vand.u32 2147483647, %v1672
      %vm1847 = vcmp.lt.f32.partialorder %v1846, 0.0004427343
      %v1848 = vsel %vm1847, %v1845, %v1842
      %v1849 = vadd.f32 %v1674, 1.0
      %v1850 = vlog2.pop %v1849
      %v1851 = vmul.f32 %v1850, 0.6931472
      %v1852 = vmul.f32 -0.5, %v1674
      %v1853 = vadd.f32 %v1852, 1.0
      %v1854 = vmul.f32 %v1853, %v1674
      %v1855 = vand.u32 2147483647, %v1674
      %vm1856 = vcmp.lt.f32.partialorder %v1855, 0.0004427343
      %v1857 = vsel %vm1856, %v1854, %v1851
      %v1858 = vadd.f32 %v1676, 1.0
      %v1859 = vlog2.pop %v1858
      %v1860 = vmul.f32 %v1859, 0.6931472
      %v1861 = vmul.f32 -0.5, %v1676
      %v1862 = vadd.f32 %v1861, 1.0
      %v1863 = vmul.f32 %v1862, %v1676
      %v1864 = vand.u32 2147483647, %v1676
      %vm1865 = vcmp.lt.f32.partialorder %v1864, 0.0004427343
      %v1866 = vsel %vm1865, %v1863, %v1860
      %v1867 = vadd.f32 %v1678, 1.0
      %v1868 = vlog2.pop %v1867
      %v1869 = vmul.f32 %v1868, 0.6931472
      %v1870 = vmul.f32 -0.5, %v1678
      %v1871 = vadd.f32 %v1870, 1.0
      %v1872 = vmul.f32 %v1871, %v1678
      %v1873 = vand.u32 2147483647, %v1678
      %vm1874 = vcmp.lt.f32.partialorder %v1873, 0.0004427343
      %v1875 = vsel %vm1874, %v1872, %v1869
      %v1876 = vadd.f32 %v1680, 1.0
      %v1877 = vlog2.pop %v1876
      %v1878 = vmul.f32 %v1877, 0.6931472
      %v1879 = vmul.f32 -0.5, %v1680
      %v1880 = vadd.f32 %v1879, 1.0
      %v1881 = vmul.f32 %v1880, %v1680
      %v1882 = vand.u32 2147483647, %v1680
      %vm1883 = vcmp.lt.f32.partialorder %v1882, 0.0004427343
      %v1884 = vsel %vm1883, %v1881, %v1878
      %v1885 = vadd.f32 %v1682, 1.0
      %v1886 = vlog2.pop %v1885
      %v1887 = vmul.f32 %v1886, 0.6931472
      %v1888 = vmul.f32 -0.5, %v1682
      %v1889 = vadd.f32 %v1888, 1.0
      %v1890 = vmul.f32 %v1889, %v1682
      %v1891 = vand.u32 2147483647, %v1682
      %vm1892 = vcmp.lt.f32.partialorder %v1891, 0.0004427343
      %v1893 = vsel %vm1892, %v1890, %v1887
      %v1894 = vadd.f32 %v1684, 1.0
      %v1895 = vlog2.pop %v1894
      %v1896 = vmul.f32 %v1895, 0.6931472
      %v1897 = vmul.f32 -0.5, %v1684
      %v1898 = vadd.f32 %v1897, 1.0
      %v1899 = vmul.f32 %v1898, %v1684
      %v1900 = vand.u32 2147483647, %v1684
      %vm1901 = vcmp.lt.f32.partialorder %v1900, 0.0004427343
      %v1902 = vsel %vm1901, %v1899, %v1896
      %v1903 = vadd.f32 %v1686, 1.0
      %v1904 = vlog2.pop %v1903
      %v1905 = vmul.f32 %v1904, 0.6931472
      %v1906 = vmul.f32 -0.5, %v1686
      %v1907 = vadd.f32 %v1906, 1.0
      %v1908 = vmul.f32 %v1907, %v1686
      %v1909 = vand.u32 2147483647, %v1686
      %vm1910 = vcmp.lt.f32.partialorder %v1909, 0.0004427343
      %v1911 = vsel %vm1910, %v1908, %v1905
      %v1912 = vadd.f32 %v1688, 1.0
      %v1913 = vlog2.pop %v1912
      %v1914 = vmul.f32 %v1913, 0.6931472
      %v1915 = vmul.f32 -0.5, %v1688
      %v1916 = vadd.f32 %v1915, 1.0
      %v1917 = vmul.f32 %v1916, %v1688
      %v1918 = vand.u32 2147483647, %v1688
      %vm1919 = vcmp.lt.f32.partialorder %v1918, 0.0004427343
      %v1920 = vsel %vm1919, %v1917, %v1914
      %v1921 = vadd.f32 %v1690, 1.0
      %v1922 = vlog2.pop %v1921
      %v1923 = vmul.f32 %v1922, 0.6931472
      %v1924 = vmul.f32 -0.5, %v1690
      %v1925 = vadd.f32 %v1924, 1.0
      %v1926 = vmul.f32 %v1925, %v1690
      %v1927 = vand.u32 2147483647, %v1690
      %vm1928 = vcmp.lt.f32.partialorder %v1927, 0.0004427343
      %v1929 = vsel %vm1928, %v1926, %v1923
      %v1930 = vadd.f32 %v1692, 1.0
      %v1931 = vlog2.pop %v1930
      %v1932 = vmul.f32 %v1931, 0.6931472
      %v1933 = vmul.f32 -0.5, %v1692
      %v1934 = vadd.f32 %v1933, 1.0
      %v1935 = vmul.f32 %v1934, %v1692
      %v1936 = vand.u32 2147483647, %v1692
      %vm1937 = vcmp.lt.f32.partialorder %v1936, 0.0004427343
      %v1938 = vsel %vm1937, %v1935, %v1932
      %v1939 = vadd.f32 %v1694, 1.0
      %v1940 = vlog2.pop %v1939
      %v1941 = vmul.f32 %v1940, 0.6931472
      %v1942 = vmul.f32 -0.5, %v1694
      %v1943 = vadd.f32 %v1942, 1.0
      %v1944 = vmul.f32 %v1943, %v1694
      %v1945 = vand.u32 2147483647, %v1694
      %vm1946 = vcmp.lt.f32.partialorder %v1945, 0.0004427343
      %v1947 = vsel %vm1946, %v1944, %v1941
      %v1948 = vadd.f32 %v1696, 1.0
      %v1949 = vlog2.pop %v1948
      %v1950 = vmul.f32 %v1949, 0.6931472
      %v1951 = vmul.f32 -0.5, %v1696
      %v1952 = vadd.f32 %v1951, 1.0
      %v1953 = vmul.f32 %v1952, %v1696
      %v1954 = vand.u32 2147483647, %v1696
      %vm1955 = vcmp.lt.f32.partialorder %v1954, 0.0004427343
      %v1956 = vsel %vm1955, %v1953, %v1950
      %v1957 = vadd.f32 %v1698, 1.0
      %v1958 = vlog2.pop %v1957
      %v1959 = vmul.f32 %v1958, 0.6931472
      %v1960 = vmul.f32 -0.5, %v1698
      %v1961 = vadd.f32 %v1960, 1.0
      %v1962 = vmul.f32 %v1961, %v1698
      %v1963 = vand.u32 2147483647, %v1698
      %vm1964 = vcmp.lt.f32.partialorder %v1963, 0.0004427343
      %v1965 = vsel %vm1964, %v1962, %v1959
      %v1966 = vadd.f32 %v1700, 1.0
      %v1967 = vlog2.pop %v1966
      %v1968 = vmul.f32 %v1967, 0.6931472
      %v1969 = vmul.f32 -0.5, %v1700
      %v1970 = vadd.f32 %v1969, 1.0
      %v1971 = vmul.f32 %v1970, %v1700
      %v1972 = vand.u32 2147483647, %v1700
      %vm1973 = vcmp.lt.f32.partialorder %v1972, 0.0004427343
      %v1974 = vsel %vm1973, %v1971, %v1968
      %v1975 = vadd.f32 %v1702, 1.0
      %v1976 = vlog2.pop %v1975
      %v1977 = vmul.f32 %v1976, 0.6931472
      %v1978 = vmul.f32 -0.5, %v1702
      %v1979 = vadd.f32 %v1978, 1.0
      %v1980 = vmul.f32 %v1979, %v1702
      %v1981 = vand.u32 2147483647, %v1702
      %vm1982 = vcmp.lt.f32.partialorder %v1981, 0.0004427343
      %v1983 = vsel %vm1982, %v1980, %v1977
      %v1984 = vadd.f32 %v1704, 1.0
      %v1985 = vlog2.pop %v1984
      %v1986 = vmul.f32 %v1985, 0.6931472
      %v1987 = vmul.f32 -0.5, %v1704
      %v1988 = vadd.f32 %v1987, 1.0
      %v1989 = vmul.f32 %v1988, %v1704
      %v1990 = vand.u32 2147483647, %v1704
      %vm1991 = vcmp.lt.f32.partialorder %v1990, 0.0004427343
      %v1992 = vsel %vm1991, %v1989, %v1986
      %v1993 = vadd.f32 %v1481, %v1713
      %v1994 = vadd.f32 %v1482, %v1722
      %v1995 = vadd.f32 %v1483, %v1731
      %v1996 = vadd.f32 %v1484, %v1740
      %v1997 = vadd.f32 %v1485, %v1749
      %v1998 = vadd.f32 %v1486, %v1758
      %v1999 = vadd.f32 %v1487, %v1767
      %v2000 = vadd.f32 %v1488, %v1776
      %v2001 = vadd.f32 %v1489, %v1785
      %v2002 = vadd.f32 %v1490, %v1794
      %v2003 = vadd.f32 %v1491, %v1803
      %v2004 = vadd.f32 %v1492, %v1812
      %v2005 = vadd.f32 %v1493, %v1821
      %v2006 = vadd.f32 %v1494, %v1830
      %v2007 = vadd.f32 %v1495, %v1839
      %v2008 = vadd.f32 %v1496, %v1848
      %v2009 = vadd.f32 %v1497, %v1857
      %v2010 = vadd.f32 %v1498, %v1866
      %v2011 = vadd.f32 %v1499, %v1875
      %v2012 = vadd.f32 %v1500, %v1884
      %v2013 = vadd.f32 %v1501, %v1893
      %v2014 = vadd.f32 %v1502, %v1902
      %v2015 = vadd.f32 %v1503, %v1911
      %v2016 = vadd.f32 %v1504, %v1920
      %v2017 = vadd.f32 %v1505, %v1929
      %v2018 = vadd.f32 %v1506, %v1938
      %v2019 = vadd.f32 %v1507, %v1947
      %v2020 = vadd.f32 %v1508, %v1956
      %v2021 = vadd.f32 %v1509, %v1965
      %v2022 = vadd.f32 %v1510, %v1974
      %v2023 = vadd.f32 %v1511, %v1983
      %v2024 = vadd.f32 %v1512, %v1992
      %v2025 = vsel %vm1513, %v1545, %v1993
      %v2026 = vsel %vm1514, %v1546, %v1994
      %v2027 = vsel %vm1515, %v1547, %v1995
      %v2028 = vsel %vm1516, %v1548, %v1996
      %v2029 = vsel %vm1517, %v1549, %v1997
      %v2030 = vsel %vm1518, %v1550, %v1998
      %v2031 = vsel %vm1519, %v1551, %v1999
      %v2032 = vsel %vm1520, %v1552, %v2000
      %v2033 = vsel %vm1521, %v1553, %v2001
      %v2034 = vsel %vm1522, %v1554, %v2002
      %v2035 = vsel %vm1523, %v1555, %v2003
      %v2036 = vsel %vm1524, %v1556, %v2004
      %v2037 = vsel %vm1525, %v1557, %v2005
      %v2038 = vsel %vm1526, %v1558, %v2006
      %v2039 = vsel %vm1527, %v1559, %v2007
      %v2040 = vsel %vm1528, %v1560, %v2008
      %v2041 = vsel %vm1529, %v1561, %v2009
      %v2042 = vsel %vm1530, %v1562, %v2010
      %v2043 = vsel %vm1531, %v1563, %v2011
      %v2044 = vsel %vm1532, %v1564, %v2012
      %v2045 = vsel %vm1533, %v1565, %v2013
      %v2046 = vsel %vm1534, %v1566, %v2014
      %v2047 = vsel %vm1535, %v1567, %v2015
      %v2048 = vsel %vm1536, %v1568, %v2016
      %v2049 = vsel %vm1537, %v1569, %v2017
      %v2050 = vsel %vm1538, %v1570, %v2018
      %v2051 = vsel %vm1539, %v1571, %v2019
      %v2052 = vsel %vm1540, %v1572, %v2020
      %v2053 = vsel %vm1541, %v1573, %v2021
      %v2054 = vsel %vm1542, %v1574, %v2022
      %v2055 = vsel %vm1543, %v1575, %v2023
      %v2056 = vsel %vm1544, %v1576, %v2024
      %v2057 = vpack.c.bf16 %v2026, %v2025
      %v2058 = vpack.c.bf16 %v2028, %v2027
      %v2059 = vpack.c.bf16 %v2030, %v2029
      %v2060 = vpack.c.bf16 %v2032, %v2031
      %v2061 = vpack.c.bf16 %v2034, %v2033
      %v2062 = vpack.c.bf16 %v2036, %v2035
      %v2063 = vpack.c.bf16 %v2038, %v2037
      %v2064 = vpack.c.bf16 %v2040, %v2039
      %v2065 = vpack.c.bf16 %v2042, %v2041
      %v2066 = vpack.c.bf16 %v2044, %v2043
      %v2067 = vpack.c.bf16 %v2046, %v2045
      %v2068 = vpack.c.bf16 %v2048, %v2047
      %v2069 = vpack.c.bf16 %v2050, %v2049
      %v2070 = vpack.c.bf16 %v2052, %v2051
      %v2071 = vpack.c.bf16 %v2054, %v2053
      %v2072 = vpack.c.bf16 %v2056, %v2055
      %v2074 = vlaneseq
      %v2075 = vshrl.u32 %v2074, 7
      %v2076 = vsub.s32 0, %v2075
      %v2077 = vrot.slane %v442, %v2076
      %v2078 = vlaneseq
      %v2079 = vshrl.u32 %v2078, 7
      %v2080 = vsub.s32 1, %v2079
      %v2081 = vrot.slane %v442, %v2080
      %v2100 = vunpack.c.l.b16 %v426
      %v2101 = vunpack.c.h.b16 %v426
      %v2102 = vunpack.c.l.b16 %v427
      %v2103 = vunpack.c.h.b16 %v427
      %v2104 = vunpack.c.l.b16 %v428
      %v2105 = vunpack.c.h.b16 %v428
      %v2106 = vunpack.c.l.b16 %v429
      %v2107 = vunpack.c.h.b16 %v429
      %v2108 = vunpack.c.l.b16 %v430
      %v2109 = vunpack.c.h.b16 %v430
      %v2110 = vunpack.c.l.b16 %v431
      %v2111 = vunpack.c.h.b16 %v431
      %v2112 = vunpack.c.l.b16 %v432
      %v2113 = vunpack.c.h.b16 %v432
      %v2114 = vunpack.c.l.b16 %v433
      %v2115 = vunpack.c.h.b16 %v433
      %v2116 = vunpack.c.l.b16 %v434
      %v2117 = vunpack.c.h.b16 %v434
      %v2118 = vunpack.c.l.b16 %v435
      %v2119 = vunpack.c.h.b16 %v435
      %v2120 = vunpack.c.l.b16 %v436
      %v2121 = vunpack.c.h.b16 %v436
      %v2122 = vunpack.c.l.b16 %v437
      %v2123 = vunpack.c.h.b16 %v437
      %v2124 = vunpack.c.l.b16 %v438
      %v2125 = vunpack.c.h.b16 %v438
      %v2126 = vunpack.c.l.b16 %v439
      %v2127 = vunpack.c.h.b16 %v439
      %v2128 = vunpack.c.l.b16 %v440
      %v2129 = vunpack.c.h.b16 %v440
      %v2130 = vunpack.c.l.b16 %v441
      %v2131 = vunpack.c.h.b16 %v441
      %v2132 = vpack.c.b16 %v2102, %v2100
      %v2133 = vpack.c.b16 %v2103, %v2101
      %v2134 = vpack.c.b16 %v2106, %v2104
      %v2135 = vpack.c.b16 %v2107, %v2105
      %v2136 = vpack.c.b16 %v2110, %v2108
      %v2137 = vpack.c.b16 %v2111, %v2109
      %v2138 = vpack.c.b16 %v2114, %v2112
      %v2139 = vpack.c.b16 %v2115, %v2113
      %v2140 = vpack.c.b16 %v2118, %v2116
      %v2141 = vpack.c.b16 %v2119, %v2117
      %v2142 = vpack.c.b16 %v2122, %v2120
      %v2143 = vpack.c.b16 %v2123, %v2121
      %v2144 = vpack.c.b16 %v2126, %v2124
      %v2145 = vpack.c.b16 %v2127, %v2125
      %v2146 = vpack.c.b16 %v2130, %v2128
      %v2147 = vpack.c.b16 %v2131, %v2129
      %2164 = vmatprep.subr.bf16.mxu0 %v2133
      %2165 = vmatpush1.bf16.msra.mxu0 %v2132
      %2166 = vmatprep.subr.bf16.mxu0 %v2135
      %2167 = vmatpush1.bf16.msra.mxu0 %v2134
      %2168 = vmatprep.subr.bf16.mxu0 %v2137
      %2169 = vmatpush1.bf16.msra.mxu0 %v2136
      %2170 = vmatprep.subr.bf16.mxu0 %v2139
      %2171 = vmatpush1.bf16.msra.mxu0 %v2138
      %2172 = vmatprep.subr.bf16.mxu0 %v2141
      %2173 = vmatpush1.bf16.msra.mxu0 %v2140
      %2174 = vmatprep.subr.bf16.mxu0 %v2143
      %2175 = vmatpush1.bf16.msra.mxu0 %v2142
      %2176 = vmatprep.subr.bf16.mxu0 %v2145
      %2177 = vmatpush1.bf16.msra.mxu0 %v2144
      %2178 = vmatprep.subr.bf16.mxu0 %v2147
      %2179 = vmatpush1.bf16.msra.mxu0 %v2146
      %2180 = vmatprep.subr.bf16.mxu0 0
      %2181 = vmatpush1.bf16.msra.mxu0 0
      %2182 = vmatprep.subr.bf16.mxu0 0
      %2183 = vmatpush1.bf16.msra.mxu0 0
      %2184 = vmatprep.subr.bf16.mxu0 0
      %2185 = vmatpush1.bf16.msra.mxu0 0
      %2186 = vmatprep.subr.bf16.mxu0 0
      %2187 = vmatpush1.bf16.msra.mxu0 0
      %2188 = vmatprep.subr.bf16.mxu0 0
      %2189 = vmatpush1.bf16.msra.mxu0 0
      %2190 = vmatprep.subr.bf16.mxu0 0
      %2191 = vmatpush1.bf16.msra.mxu0 0
      %2192 = vmatprep.subr.bf16.mxu0 0
      %2193 = vmatpush1.bf16.msra.mxu0 0
      %2194 = vmatprep.subr.bf16.mxu0 0
      %2195 = vmatpush1.bf16.msra.mxu0 0
      %2196 = vmatprep.mubr.bf16.mxu0 0
      %2197 = vmatmul.mubr.bf16.gmra.mrb[0].mxu0 %v2057
      %v2198 = vpop.f32.mrb[0].mxu0
      %v2199 = vadd.f32 %v2077, %v2198
      %v2200 = vpop.f32.mrb[0].mxu0
      %v2201 = vadd.f32 %v2081, %v2200
      %v2202 = vpop.f32.mrb[0].mxu0
      %v2203 = vadd.f32 %v2077, %v2202
      %v2204 = vpop.f32.mrb[0].mxu0
      %v2205 = vadd.f32 %v2081, %v2204
      %2206 = vmatprep.mubr.bf16.mxu0 0
      %2207 = vmatmul.mubr.bf16.gmra.mrb[0].mxu0 %v2058
      %v2208 = vpop.f32.mrb[0].mxu0
      %v2209 = vadd.f32 %v2077, %v2208
      %v2210 = vpop.f32.mrb[0].mxu0
      %v2211 = vadd.f32 %v2081, %v2210
      %v2212 = vpop.f32.mrb[0].mxu0
      %v2213 = vadd.f32 %v2077, %v2212
      %v2214 = vpop.f32.mrb[0].mxu0
      %v2215 = vadd.f32 %v2081, %v2214
      %2216 = vmatprep.mubr.bf16.mxu0 0
      %2217 = vmatmul.mubr.bf16.gmra.mrb[0].mxu0 %v2059
      %v2218 = vpop.f32.mrb[0].mxu0
      %v2219 = vadd.f32 %v2077, %v2218
      %v2220 = vpop.f32.mrb[0].mxu0
      %v2221 = vadd.f32 %v2081, %v2220
      %v2222 = vpop.f32.mrb[0].mxu0
      %v2223 = vadd.f32 %v2077, %v2222
      %v2224 = vpop.f32.mrb[0].mxu0
      %v2225 = vadd.f32 %v2081, %v2224
      %2226 = vmatprep.mubr.bf16.mxu0 0
      %2227 = vmatmul.mubr.bf16.gmra.mrb[0].mxu0 %v2060
      %v2228 = vpop.f32.mrb[0].mxu0
      %v2229 = vadd.f32 %v2077, %v2228
      %v2230 = vpop.f32.mrb[0].mxu0
      %v2231 = vadd.f32 %v2081, %v2230
      %v2232 = vpop.f32.mrb[0].mxu0
      %v2233 = vadd.f32 %v2077, %v2232
      %v2234 = vpop.f32.mrb[0].mxu0
      %v2235 = vadd.f32 %v2081, %v2234
      %2236 = vmatprep.mubr.bf16.mxu0 0
      %2237 = vmatmul.mubr.bf16.gmra.mrb[0].mxu0 %v2061
      %v2238 = vpop.f32.mrb[0].mxu0
      %v2239 = vadd.f32 %v2077, %v2238
      %v2240 = vpop.f32.mrb[0].mxu0
      %v2241 = vadd.f32 %v2081, %v2240
      %v2242 = vpop.f32.mrb[0].mxu0
      %v2243 = vadd.f32 %v2077, %v2242
      %v2244 = vpop.f32.mrb[0].mxu0
      %v2245 = vadd.f32 %v2081, %v2244
      %2246 = vmatprep.mubr.bf16.mxu0 0
      %2247 = vmatmul.mubr.bf16.gmra.mrb[0].mxu0 %v2062
      %v2248 = vpop.f32.mrb[0].mxu0
      %v2249 = vadd.f32 %v2077, %v2248
      %v2250 = vpop.f32.mrb[0].mxu0
      %v2251 = vadd.f32 %v2081, %v2250
      %v2252 = vpop.f32.mrb[0].mxu0
      %v2253 = vadd.f32 %v2077, %v2252
      %v2254 = vpop.f32.mrb[0].mxu0
      %v2255 = vadd.f32 %v2081, %v2254
      %2256 = vmatprep.mubr.bf16.mxu0 0
      %2257 = vmatmul.mubr.bf16.gmra.mrb[0].mxu0 %v2063
      %v2258 = vpop.f32.mrb[0].mxu0
      %v2259 = vadd.f32 %v2077, %v2258
      %v2260 = vpop.f32.mrb[0].mxu0
      %v2261 = vadd.f32 %v2081, %v2260
      %v2262 = vpop.f32.mrb[0].mxu0
      %v2263 = vadd.f32 %v2077, %v2262
      %v2264 = vpop.f32.mrb[0].mxu0
      %v2265 = vadd.f32 %v2081, %v2264
      %2266 = vmatprep.mubr.bf16.mxu0 0
      %2267 = vmatmul.mubr.bf16.gmra.mrb[0].mxu0 %v2064
      %v2268 = vpop.f32.mrb[0].mxu0
      %v2269 = vadd.f32 %v2077, %v2268
      %v2270 = vpop.f32.mrb[0].mxu0
      %v2271 = vadd.f32 %v2081, %v2270
      %v2272 = vpop.f32.mrb[0].mxu0
      %v2273 = vadd.f32 %v2077, %v2272
      %v2274 = vpop.f32.mrb[0].mxu0
      %v2275 = vadd.f32 %v2081, %v2274
      %2276 = vmatprep.mubr.bf16.mxu0 0
      %2277 = vmatmul.mubr.bf16.gmra.mrb[0].mxu0 %v2065
      %v2278 = vpop.f32.mrb[0].mxu0
      %v2279 = vadd.f32 %v2077, %v2278
      %v2280 = vpop.f32.mrb[0].mxu0
      %v2281 = vadd.f32 %v2081, %v2280
      %v2282 = vpop.f32.mrb[0].mxu0
      %v2283 = vadd.f32 %v2077, %v2282
      %v2284 = vpop.f32.mrb[0].mxu0
      %v2285 = vadd.f32 %v2081, %v2284
      %2286 = vmatprep.mubr.bf16.mxu0 0
      %2287 = vmatmul.mubr.bf16.gmra.mrb[0].mxu0 %v2066
      %v2288 = vpop.f32.mrb[0].mxu0
      %v2289 = vadd.f32 %v2077, %v2288
      %v2290 = vpop.f32.mrb[0].mxu0
      %v2291 = vadd.f32 %v2081, %v2290
      %v2292 = vpop.f32.mrb[0].mxu0
      %v2293 = vadd.f32 %v2077, %v2292
      %v2294 = vpop.f32.mrb[0].mxu0
      %v2295 = vadd.f32 %v2081, %v2294
      %2296 = vmatprep.mubr.bf16.mxu0 0
      %2297 = vmatmul.mubr.bf16.gmra.mrb[0].mxu0 %v2067
      %v2298 = vpop.f32.mrb[0].mxu0
      %v2299 = vadd.f32 %v2077, %v2298
      %v2300 = vpop.f32.mrb[0].mxu0
      %v2301 = vadd.f32 %v2081, %v2300
      %v2302 = vpop.f32.mrb[0].mxu0
      %v2303 = vadd.f32 %v2077, %v2302
      %v2304 = vpop.f32.mrb[0].mxu0
      %v2305 = vadd.f32 %v2081, %v2304
      %2306 = vmatprep.mubr.bf16.mxu0 0
      %2307 = vmatmul.mubr.bf16.gmra.mrb[0].mxu0 %v2068
      %v2308 = vpop.f32.mrb[0].mxu0
      %v2309 = vadd.f32 %v2077, %v2308
      %v2310 = vpop.f32.mrb[0].mxu0
      %v2311 = vadd.f32 %v2081, %v2310
      %v2312 = vpop.f32.mrb[0].mxu0
      %v2313 = vadd.f32 %v2077, %v2312
      %v2314 = vpop.f32.mrb[0].mxu0
      %v2315 = vadd.f32 %v2081, %v2314
      %2316 = vmatprep.mubr.bf16.mxu0 0
      %2317 = vmatmul.mubr.bf16.gmra.mrb[0].mxu0 %v2069
      %v2318 = vpop.f32.mrb[0].mxu0
      %v2319 = vadd.f32 %v2077, %v2318
      %v2320 = vpop.f32.mrb[0].mxu0
      %v2321 = vadd.f32 %v2081, %v2320
      %v2322 = vpop.f32.mrb[0].mxu0
      %v2323 = vadd.f32 %v2077, %v2322
      %v2324 = vpop.f32.mrb[0].mxu0
      %v2325 = vadd.f32 %v2081, %v2324
      %2326 = vmatprep.mubr.bf16.mxu0 0
      %2327 = vmatmul.mubr.bf16.gmra.mrb[0].mxu0 %v2070
      %v2328 = vpop.f32.mrb[0].mxu0
      %v2329 = vadd.f32 %v2077, %v2328
      %v2330 = vpop.f32.mrb[0].mxu0
      %v2331 = vadd.f32 %v2081, %v2330
      %v2332 = vpop.f32.mrb[0].mxu0
      %v2333 = vadd.f32 %v2077, %v2332
      %v2334 = vpop.f32.mrb[0].mxu0
      %v2335 = vadd.f32 %v2081, %v2334
      %2336 = vmatprep.mubr.bf16.mxu0 0
      %2337 = vmatmul.mubr.bf16.gmra.mrb[0].mxu0 %v2071
      %v2338 = vpop.f32.mrb[0].mxu0
      %v2339 = vadd.f32 %v2077, %v2338
      %v2340 = vpop.f32.mrb[0].mxu0
      %v2341 = vadd.f32 %v2081, %v2340
      %v2342 = vpop.f32.mrb[0].mxu0
      %v2343 = vadd.f32 %v2077, %v2342
      %v2344 = vpop.f32.mrb[0].mxu0
      %v2345 = vadd.f32 %v2081, %v2344
      %2346 = vmatprep.mubr.bf16.mxu0 0
      %2347 = vmatmul.mubr.bf16.gmra.mrb[0].mxu0 %v2072
      %v2348 = vpop.f32.mrb[0].mxu0
      %v2349 = vadd.f32 %v2077, %v2348
      %v2350 = vpop.f32.mrb[0].mxu0
      %v2351 = vadd.f32 %v2081, %v2350
      %v2352 = vpop.f32.mrb[0].mxu0
      %v2353 = vadd.f32 %v2077, %v2352
      %v2354 = vpop.f32.mrb[0].mxu0
      %v2355 = vadd.f32 %v2081, %v2354
      %2356 = vdwg.mxu0
      %2357 = vst [vmem:[%s349] sm:$0xff] %v2199
      %2358 = vst [vmem:[%s349 + $0x8] sm:$0xff] %v2201
      %2359 = vst [vmem:[%s349 + $0x10] sm:$0xff] %v2203
      %2360 = vst [vmem:[%s349 + $0x18] sm:$0xff] %v2205
      %2361 = vst [vmem:[%s349 + $0x20] sm:$0xff] %v2209
      %2362 = vst [vmem:[%s349 + $0x28] sm:$0xff] %v2211
      %2363 = vst [vmem:[%s349 + $0x30] sm:$0xff] %v2213
      %2364 = vst [vmem:[%s349 + $0x38] sm:$0xff] %v2215
      %2365 = vst [vmem:[%s349 + $0x40] sm:$0xff] %v2219
      %2366 = vst [vmem:[%s349 + $0x48] sm:$0xff] %v2221
      %2367 = vst [vmem:[%s349 + $0x50] sm:$0xff] %v2223
      %2368 = vst [vmem:[%s349 + $0x58] sm:$0xff] %v2225
      %2369 = vst [vmem:[%s349 + $0x60] sm:$0xff] %v2229
      %2370 = vst [vmem:[%s349 + $0x68] sm:$0xff] %v2231
      %2371 = vst [vmem:[%s349 + $0x70] sm:$0xff] %v2233
      %2372 = vst [vmem:[%s349 + $0x78] sm:$0xff] %v2235
      %2373 = vst [vmem:[%s349 + $0x80] sm:$0xff] %v2239
      %2374 = vst [vmem:[%s349 + $0x88] sm:$0xff] %v2241
      %2375 = vst [vmem:[%s349 + $0x90] sm:$0xff] %v2243
      %2376 = vst [vmem:[%s349 + $0x98] sm:$0xff] %v2245
      %2377 = vst [vmem:[%s349 + $0xa0] sm:$0xff] %v2249
      %2378 = vst [vmem:[%s349 + $0xa8] sm:$0xff] %v2251
      %2379 = vst [vmem:[%s349 + $0xb0] sm:$0xff] %v2253
      %2380 = vst [vmem:[%s349 + $0xb8] sm:$0xff] %v2255
      %2381 = vst [vmem:[%s349 + $0xc0] sm:$0xff] %v2259
      %2382 = vst [vmem:[%s349 + $0xc8] sm:$0xff] %v2261
      %2383 = vst [vmem:[%s349 + $0xd0] sm:$0xff] %v2263
      %2384 = vst [vmem:[%s349 + $0xd8] sm:$0xff] %v2265
      %2385 = vst [vmem:[%s349 + $0xe0] sm:$0xff] %v2269
      %2386 = vst [vmem:[%s349 + $0xe8] sm:$0xff] %v2271
      %2387 = vst [vmem:[%s349 + $0xf0] sm:$0xff] %v2273
      %2388 = vst [vmem:[%s349 + $0xf8] sm:$0xff] %v2275
      %2389 = vst [vmem:[%s349 + $0x100] sm:$0xff] %v2279
      %2390 = vst [vmem:[%s349 + $0x108] sm:$0xff] %v2281
      %2391 = vst [vmem:[%s349 + $0x110] sm:$0xff] %v2283
      %2392 = vst [vmem:[%s349 + $0x118] sm:$0xff] %v2285
      %2393 = vst [vmem:[%s349 + $0x120] sm:$0xff] %v2289
      %2394 = vst [vmem:[%s349 + $0x128] sm:$0xff] %v2291
      %2395 = vst [vmem:[%s349 + $0x130] sm:$0xff] %v2293
      %2396 = vst [vmem:[%s349 + $0x138] sm:$0xff] %v2295
      %2397 = vst [vmem:[%s349 + $0x140] sm:$0xff] %v2299
      %2398 = vst [vmem:[%s349 + $0x148] sm:$0xff] %v2301
      %2399 = vst [vmem:[%s349 + $0x150] sm:$0xff] %v2303
      %2400 = vst [vmem:[%s349 + $0x158] sm:$0xff] %v2305
      %2401 = vst [vmem:[%s349 + $0x160] sm:$0xff] %v2309
      %2402 = vst [vmem:[%s349 + $0x168] sm:$0xff] %v2311
      %2403 = vst [vmem:[%s349 + $0x170] sm:$0xff] %v2313
      %2404 = vst [vmem:[%s349 + $0x178] sm:$0xff] %v2315
      %2405 = vst [vmem:[%s349 + $0x180] sm:$0xff] %v2319
      %2406 = vst [vmem:[%s349 + $0x188] sm:$0xff] %v2321
      %2407 = vst [vmem:[%s349 + $0x190] sm:$0xff] %v2323
      %2408 = vst [vmem:[%s349 + $0x198] sm:$0xff] %v2325
      %2409 = vst [vmem:[%s349 + $0x1a0] sm:$0xff] %v2329
      %2410 = vst [vmem:[%s349 + $0x1a8] sm:$0xff] %v2331
      %2411 = vst [vmem:[%s349 + $0x1b0] sm:$0xff] %v2333
      %2412 = vst [vmem:[%s349 + $0x1b8] sm:$0xff] %v2335
      %2413 = vst [vmem:[%s349 + $0x1c0] sm:$0xff] %v2339
      %2414 = vst [vmem:[%s349 + $0x1c8] sm:$0xff] %v2341
      %2415 = vst [vmem:[%s349 + $0x1d0] sm:$0xff] %v2343
      %2416 = vst [vmem:[%s349 + $0x1d8] sm:$0xff] %v2345
      %2417 = vst [vmem:[%s349 + $0x1e0] sm:$0xff] %v2349
      %2418 = vst [vmem:[%s349 + $0x1e8] sm:$0xff] %v2351
      %2419 = vst [vmem:[%s349 + $0x1f0] sm:$0xff] %v2353
      %2420 = vst [vmem:[%s349 + $0x1f8] sm:$0xff] %v2355
      %s2421 = smul.u32 %s21, 256
      %v2422 = vlaneseq
      %v2423 = vshrl.u32 %v2422, 7
      %v2424 = vadd.s32 %v2423, 8
      %v2425 = vadd.s32 %v2423, 16
      %v2426 = vadd.s32 %v2423, 24
      %v2427 = vadd.s32 %v2423, 32
      %v2428 = vadd.s32 %v2423, 40
      %v2429 = vadd.s32 %v2423, 48
      %v2430 = vadd.s32 %v2423, 56
      %v2431 = vadd.s32 %v2423, 64
      %v2432 = vadd.s32 %v2423, 72
      %v2433 = vadd.s32 %v2423, 80
      %v2434 = vadd.s32 %v2423, 88
      %v2435 = vadd.s32 %v2423, 96
      %v2436 = vadd.s32 %v2423, 104
      %v2437 = vadd.s32 %v2423, 112
      %v2438 = vadd.s32 %v2423, 120
      %v2439 = vadd.s32 %v2423, 128
      %v2440 = vadd.s32 %v2423, 136
      %v2441 = vadd.s32 %v2423, 144
      %v2442 = vadd.s32 %v2423, 152
      %v2443 = vadd.s32 %v2423, 160
      %v2444 = vadd.s32 %v2423, 168
      %v2445 = vadd.s32 %v2423, 176
      %v2446 = vadd.s32 %v2423, 184
      %v2447 = vadd.s32 %v2423, 192
      %v2448 = vadd.s32 %v2423, 200
      %v2449 = vadd.s32 %v2423, 208
      %v2450 = vadd.s32 %v2423, 216
      %v2451 = vadd.s32 %v2423, 224
      %v2452 = vadd.s32 %v2423, 232
      %v2453 = vadd.s32 %v2423, 240
      %v2454 = vadd.s32 %v2423, 248
      %v2455 = vstv %s2421
      %v2456 = vadd.s32 %v2455, %v2423
      %v2457 = vadd.s32 %v2455, %v2424
      %v2458 = vadd.s32 %v2455, %v2425
      %v2459 = vadd.s32 %v2455, %v2426
      %v2460 = vadd.s32 %v2455, %v2427
      %v2461 = vadd.s32 %v2455, %v2428
      %v2462 = vadd.s32 %v2455, %v2429
      %v2463 = vadd.s32 %v2455, %v2430
      %v2464 = vadd.s32 %v2455, %v2431
      %v2465 = vadd.s32 %v2455, %v2432
      %v2466 = vadd.s32 %v2455, %v2433
      %v2467 = vadd.s32 %v2455, %v2434
      %v2468 = vadd.s32 %v2455, %v2435
      %v2469 = vadd.s32 %v2455, %v2436
      %v2470 = vadd.s32 %v2455, %v2437
      %v2471 = vadd.s32 %v2455, %v2438
      %v2472 = vadd.s32 %v2455, %v2439
      %v2473 = vadd.s32 %v2455, %v2440
      %v2474 = vadd.s32 %v2455, %v2441
      %v2475 = vadd.s32 %v2455, %v2442
      %v2476 = vadd.s32 %v2455, %v2443
      %v2477 = vadd.s32 %v2455, %v2444
      %v2478 = vadd.s32 %v2455, %v2445
      %v2479 = vadd.s32 %v2455, %v2446
      %v2480 = vadd.s32 %v2455, %v2447
      %v2481 = vadd.s32 %v2455, %v2448
      %v2482 = vadd.s32 %v2455, %v2449
      %v2483 = vadd.s32 %v2455, %v2450
      %v2484 = vadd.s32 %v2455, %v2451
      %v2485 = vadd.s32 %v2455, %v2452
      %v2486 = vadd.s32 %v2455, %v2453
      %v2487 = vadd.s32 %v2455, %v2454
      %vm2488 = vcmp.lt.s32.totalorder %v2456, 1000
      %vm2489 = vcmp.lt.s32.totalorder %v2457, 1000
      %vm2490 = vcmp.lt.s32.totalorder %v2458, 1000
      %vm2491 = vcmp.lt.s32.totalorder %v2459, 1000
      %vm2492 = vcmp.lt.s32.totalorder %v2460, 1000
      %vm2493 = vcmp.lt.s32.totalorder %v2461, 1000
      %vm2494 = vcmp.lt.s32.totalorder %v2462, 1000
      %vm2495 = vcmp.lt.s32.totalorder %v2463, 1000
      %vm2496 = vcmp.lt.s32.totalorder %v2464, 1000
      %vm2497 = vcmp.lt.s32.totalorder %v2465, 1000
      %vm2498 = vcmp.lt.s32.totalorder %v2466, 1000
      %vm2499 = vcmp.lt.s32.totalorder %v2467, 1000
      %vm2500 = vcmp.lt.s32.totalorder %v2468, 1000
      %vm2501 = vcmp.lt.s32.totalorder %v2469, 1000
      %vm2502 = vcmp.lt.s32.totalorder %v2470, 1000
      %vm2503 = vcmp.lt.s32.totalorder %v2471, 1000
      %vm2504 = vcmp.lt.s32.totalorder %v2472, 1000
      %vm2505 = vcmp.lt.s32.totalorder %v2473, 1000
      %vm2506 = vcmp.lt.s32.totalorder %v2474, 1000
      %vm2507 = vcmp.lt.s32.totalorder %v2475, 1000
      %vm2508 = vcmp.lt.s32.totalorder %v2476, 1000
      %vm2509 = vcmp.lt.s32.totalorder %v2477, 1000
      %vm2510 = vcmp.lt.s32.totalorder %v2478, 1000
      %vm2511 = vcmp.lt.s32.totalorder %v2479, 1000
      %vm2512 = vcmp.lt.s32.totalorder %v2480, 1000
      %vm2513 = vcmp.lt.s32.totalorder %v2481, 1000
      %vm2514 = vcmp.lt.s32.totalorder %v2482, 1000
      %vm2515 = vcmp.lt.s32.totalorder %v2483, 1000
      %vm2516 = vcmp.lt.s32.totalorder %v2484, 1000
      %vm2517 = vcmp.lt.s32.totalorder %v2485, 1000
      %vm2518 = vcmp.lt.s32.totalorder %v2486, 1000
      %vm2519 = vcmp.lt.s32.totalorder %v2487, 1000
      %v2520 = vsel %vm2488, 1, 0
      %v2521 = vsel %vm2489, 1, 0
      %v2522 = vsel %vm2490, 1, 0
      %v2523 = vsel %vm2491, 1, 0
      %v2524 = vsel %vm2492, 1, 0
      %v2525 = vsel %vm2493, 1, 0
      %v2526 = vsel %vm2494, 1, 0
      %v2527 = vsel %vm2495, 1, 0
      %v2528 = vsel %vm2496, 1, 0
      %v2529 = vsel %vm2497, 1, 0
      %v2530 = vsel %vm2498, 1, 0
      %v2531 = vsel %vm2499, 1, 0
      %v2532 = vsel %vm2500, 1, 0
      %v2533 = vsel %vm2501, 1, 0
      %v2534 = vsel %vm2502, 1, 0
      %v2535 = vsel %vm2503, 1, 0
      %v2536 = vsel %vm2504, 1, 0
      %v2537 = vsel %vm2505, 1, 0
      %v2538 = vsel %vm2506, 1, 0
      %v2539 = vsel %vm2507, 1, 0
      %v2540 = vsel %vm2508, 1, 0
      %v2541 = vsel %vm2509, 1, 0
      %v2542 = vsel %vm2510, 1, 0
      %v2543 = vsel %vm2511, 1, 0
      %v2544 = vsel %vm2512, 1, 0
      %v2545 = vsel %vm2513, 1, 0
      %v2546 = vsel %vm2514, 1, 0
      %v2547 = vsel %vm2515, 1, 0
      %v2548 = vsel %vm2516, 1, 0
      %v2549 = vsel %vm2517, 1, 0
      %v2550 = vsel %vm2518, 1, 0
      %v2551 = vsel %vm2519, 1, 0
      %vm2552 = vcmp.eq.s32.totalorder %v2520, 1
      %vm2553 = vcmp.eq.s32.totalorder %v2521, 1
      %vm2554 = vcmp.eq.s32.totalorder %v2522, 1
      %vm2555 = vcmp.eq.s32.totalorder %v2523, 1
      %vm2556 = vcmp.eq.s32.totalorder %v2524, 1
      %vm2557 = vcmp.eq.s32.totalorder %v2525, 1
      %vm2558 = vcmp.eq.s32.totalorder %v2526, 1
      %vm2559 = vcmp.eq.s32.totalorder %v2527, 1
      %vm2560 = vcmp.eq.s32.totalorder %v2528, 1
      %vm2561 = vcmp.eq.s32.totalorder %v2529, 1
      %vm2562 = vcmp.eq.s32.totalorder %v2530, 1
      %vm2563 = vcmp.eq.s32.totalorder %v2531, 1
      %vm2564 = vcmp.eq.s32.totalorder %v2532, 1
      %vm2565 = vcmp.eq.s32.totalorder %v2533, 1
      %vm2566 = vcmp.eq.s32.totalorder %v2534, 1
      %vm2567 = vcmp.eq.s32.totalorder %v2535, 1
      %vm2568 = vcmp.eq.s32.totalorder %v2536, 1
      %vm2569 = vcmp.eq.s32.totalorder %v2537, 1
      %vm2570 = vcmp.eq.s32.totalorder %v2538, 1
      %vm2571 = vcmp.eq.s32.totalorder %v2539, 1
      %vm2572 = vcmp.eq.s32.totalorder %v2540, 1
      %vm2573 = vcmp.eq.s32.totalorder %v2541, 1
      %vm2574 = vcmp.eq.s32.totalorder %v2542, 1
      %vm2575 = vcmp.eq.s32.totalorder %v2543, 1
      %vm2576 = vcmp.eq.s32.totalorder %v2544, 1
      %vm2577 = vcmp.eq.s32.totalorder %v2545, 1
      %vm2578 = vcmp.eq.s32.totalorder %v2546, 1
      %vm2579 = vcmp.eq.s32.totalorder %v2547, 1
      %vm2580 = vcmp.eq.s32.totalorder %v2548, 1
      %vm2581 = vcmp.eq.s32.totalorder %v2549, 1
      %vm2582 = vcmp.eq.s32.totalorder %v2550, 1
      %vm2583 = vcmp.eq.s32.totalorder %v2551, 1
      %v2584 = vsel %vm2552, %v2199, 0.0
      %v2585 = vsel %vm2552, %v2201, 0.0
      %v2586 = vsel %vm2553, %v2203, 0.0
      %v2587 = vsel %vm2553, %v2205, 0.0
      %v2588 = vsel %vm2554, %v2209, 0.0
      %v2589 = vsel %vm2554, %v2211, 0.0
      %v2590 = vsel %vm2555, %v2213, 0.0
      %v2591 = vsel %vm2555, %v2215, 0.0
      %v2592 = vsel %vm2556, %v2219, 0.0
      %v2593 = vsel %vm2556, %v2221, 0.0
      %v2594 = vsel %vm2557, %v2223, 0.0
      %v2595 = vsel %vm2557, %v2225, 0.0
      %v2596 = vsel %vm2558, %v2229, 0.0
      %v2597 = vsel %vm2558, %v2231, 0.0
      %v2598 = vsel %vm2559, %v2233, 0.0
      %v2599 = vsel %vm2559, %v2235, 0.0
      %v2600 = vsel %vm2560, %v2239, 0.0
      %v2601 = vsel %vm2560, %v2241, 0.0
      %v2602 = vsel %vm2561, %v2243, 0.0
      %v2603 = vsel %vm2561, %v2245, 0.0
      %v2604 = vsel %vm2562, %v2249, 0.0
      %v2605 = vsel %vm2562, %v2251, 0.0
      %v2606 = vsel %vm2563, %v2253, 0.0
      %v2607 = vsel %vm2563, %v2255, 0.0
      %v2608 = vsel %vm2564, %v2259, 0.0
      %v2609 = vsel %vm2564, %v2261, 0.0
      %v2610 = vsel %vm2565, %v2263, 0.0
      %v2611 = vsel %vm2565, %v2265, 0.0
      %v2612 = vsel %vm2566, %v2269, 0.0
      %v2613 = vsel %vm2566, %v2271, 0.0
      %v2614 = vsel %vm2567, %v2273, 0.0
      %v2615 = vsel %vm2567, %v2275, 0.0
      %v2616 = vsel %vm2568, %v2279, 0.0
      %v2617 = vsel %vm2568, %v2281, 0.0
      %v2618 = vsel %vm2569, %v2283, 0.0
      %v2619 = vsel %vm2569, %v2285, 0.0
      %v2620 = vsel %vm2570, %v2289, 0.0
      %v2621 = vsel %vm2570, %v2291, 0.0
      %v2622 = vsel %vm2571, %v2293, 0.0
      %v2623 = vsel %vm2571, %v2295, 0.0
      %v2624 = vsel %vm2572, %v2299, 0.0
      %v2625 = vsel %vm2572, %v2301, 0.0
      %v2626 = vsel %vm2573, %v2303, 0.0
      %v2627 = vsel %vm2573, %v2305, 0.0
      %v2628 = vsel %vm2574, %v2309, 0.0
      %v2629 = vsel %vm2574, %v2311, 0.0
      %v2630 = vsel %vm2575, %v2313, 0.0
      %v2631 = vsel %vm2575, %v2315, 0.0
      %v2632 = vsel %vm2576, %v2319, 0.0
      %v2633 = vsel %vm2576, %v2321, 0.0
      %v2634 = vsel %vm2577, %v2323, 0.0
      %v2635 = vsel %vm2577, %v2325, 0.0
      %v2636 = vsel %vm2578, %v2329, 0.0
      %v2637 = vsel %vm2578, %v2331, 0.0
      %v2638 = vsel %vm2579, %v2333, 0.0
      %v2639 = vsel %vm2579, %v2335, 0.0
      %v2640 = vsel %vm2580, %v2339, 0.0
      %v2641 = vsel %vm2580, %v2341, 0.0
      %v2642 = vsel %vm2581, %v2343, 0.0
      %v2643 = vsel %vm2581, %v2345, 0.0
      %v2644 = vsel %vm2582, %v2349, 0.0
      %v2645 = vsel %vm2582, %v2351, 0.0
      %v2646 = vsel %vm2583, %v2353, 0.0
      %v2647 = vsel %vm2583, %v2355, 0.0
      %v2648 = vadd.f32 %v2584, %v2586
      %v2649 = vadd.f32 %v2648, %v2588
      %v2650 = vadd.f32 %v2649, %v2590
      %v2651 = vadd.f32 %v2650, %v2592
      %v2652 = vadd.f32 %v2651, %v2594
      %v2653 = vadd.f32 %v2652, %v2596
      %v2654 = vadd.f32 %v2653, %v2598
      %v2655 = vadd.f32 %v2654, %v2600
      %v2656 = vadd.f32 %v2655, %v2602
      %v2657 = vadd.f32 %v2656, %v2604
      %v2658 = vadd.f32 %v2657, %v2606
      %v2659 = vadd.f32 %v2658, %v2608
      %v2660 = vadd.f32 %v2659, %v2610
      %v2661 = vadd.f32 %v2660, %v2612
      %v2662 = vadd.f32 %v2661, %v2614
      %v2663 = vadd.f32 %v2662, %v2616
      %v2664 = vadd.f32 %v2663, %v2618
      %v2665 = vadd.f32 %v2664, %v2620
      %v2666 = vadd.f32 %v2665, %v2622
      %v2667 = vadd.f32 %v2666, %v2624
      %v2668 = vadd.f32 %v2667, %v2626
      %v2669 = vadd.f32 %v2668, %v2628
      %v2670 = vadd.f32 %v2669, %v2630
      %v2671 = vadd.f32 %v2670, %v2632
      %v2672 = vadd.f32 %v2671, %v2634
      %v2673 = vadd.f32 %v2672, %v2636
      %v2674 = vadd.f32 %v2673, %v2638
      %v2675 = vadd.f32 %v2674, %v2640
      %v2676 = vadd.f32 %v2675, %v2642
      %v2677 = vadd.f32 %v2676, %v2644
      %v2678 = vadd.f32 %v2677, %v2646
      %v2679 = vrot.slane %v2678, 4
      %v2680 = vadd.f32 %v2678, %v2679
      %v2681 = vrot.slane %v2680, 2
      %v2682 = vadd.f32 %v2680, %v2681
      %v2683 = vrot.slane %v2682, 1
      %v2684 = vadd.f32 %v2682, %v2683
      %v2685 = vadd.f32 %v2585, %v2587
      %v2686 = vadd.f32 %v2685, %v2589
      %v2687 = vadd.f32 %v2686, %v2591
      %v2688 = vadd.f32 %v2687, %v2593
      %v2689 = vadd.f32 %v2688, %v2595
      %v2690 = vadd.f32 %v2689, %v2597
      %v2691 = vadd.f32 %v2690, %v2599
      %v2692 = vadd.f32 %v2691, %v2601
      %v2693 = vadd.f32 %v2692, %v2603
      %v2694 = vadd.f32 %v2693, %v2605
      %v2695 = vadd.f32 %v2694, %v2607
      %v2696 = vadd.f32 %v2695, %v2609
      %v2697 = vadd.f32 %v2696, %v2611
      %v2698 = vadd.f32 %v2697, %v2613
      %v2699 = vadd.f32 %v2698, %v2615
      %v2700 = vadd.f32 %v2699, %v2617
      %v2701 = vadd.f32 %v2700, %v2619
      %v2702 = vadd.f32 %v2701, %v2621
      %v2703 = vadd.f32 %v2702, %v2623
      %v2704 = vadd.f32 %v2703, %v2625
      %v2705 = vadd.f32 %v2704, %v2627
      %v2706 = vadd.f32 %v2705, %v2629
      %v2707 = vadd.f32 %v2706, %v2631
      %v2708 = vadd.f32 %v2707, %v2633
      %v2709 = vadd.f32 %v2708, %v2635
      %v2710 = vadd.f32 %v2709, %v2637
      %v2711 = vadd.f32 %v2710, %v2639
      %v2712 = vadd.f32 %v2711, %v2641
      %v2713 = vadd.f32 %v2712, %v2643
      %v2714 = vadd.f32 %v2713, %v2645
      %v2715 = vadd.f32 %v2714, %v2647
      %v2716 = vrot.slane %v2715, 4
      %v2717 = vadd.f32 %v2715, %v2716
      %v2718 = vrot.slane %v2717, 2
      %v2719 = vadd.f32 %v2717, %v2718
      %v2720 = vrot.slane %v2719, 1
      %v2721 = vadd.f32 %v2719, %v2720
      %v2724 = vcombine.low %v2684, %v2721
      %v2726 = vunpack.c.l.s4 1966171168
      %v2727 = vunpack.c.0.s8 %v2726
      %v2728 = vlaneseq
      %v2729 = vshrl.u32 %v2728, 7
      %v2730 = vsub.s32 %v2727, %v2729
      %v2731 = vrot.slane %v2724, %v2730
      %v2733 = vunpack.c.l.s4 1966171168
      %v2734 = vunpack.c.0.s8 %v2733
      %v2735 = vlaneseq
      %v2736 = vshrl.u32 %v2735, 7
      %v2737 = vsub.s32 %v2734, %v2736
      %v2738 = vrot.slane %v2731, %v2737
      %v2740 = vlaneseq
      %vm2741 = vcmp.ge.s32.totalorder %v2740, 0
      %vm2742 = vcmp.lt.s32.totalorder %v2740, 256
      %vm2743 = vmand %vm2741, %vm2742
      %2744 = vst.msk [vmem:[%s354] sm:$0x3] %vm2743, %v2738
      %v2745 = vmul.f32 %v2584, %v2584
      %v2746 = vmul.f32 %v2585, %v2585
      %v2747 = vmul.f32 %v2586, %v2586
      %v2748 = vmul.f32 %v2587, %v2587
      %v2749 = vmul.f32 %v2588, %v2588
      %v2750 = vmul.f32 %v2589, %v2589
      %v2751 = vmul.f32 %v2590, %v2590
      %v2752 = vmul.f32 %v2591, %v2591
      %v2753 = vmul.f32 %v2592, %v2592
      %v2754 = vmul.f32 %v2593, %v2593
      %v2755 = vmul.f32 %v2594, %v2594
      %v2756 = vmul.f32 %v2595, %v2595
      %v2757 = vmul.f32 %v2596, %v2596
      %v2758 = vmul.f32 %v2597, %v2597
      %v2759 = vmul.f32 %v2598, %v2598
      %v2760 = vmul.f32 %v2599, %v2599
      %v2761 = vmul.f32 %v2600, %v2600
      %v2762 = vmul.f32 %v2601, %v2601
      %v2763 = vmul.f32 %v2602, %v2602
      %v2764 = vmul.f32 %v2603, %v2603
      %v2765 = vmul.f32 %v2604, %v2604
      %v2766 = vmul.f32 %v2605, %v2605
      %v2767 = vmul.f32 %v2606, %v2606
      %v2768 = vmul.f32 %v2607, %v2607
      %v2769 = vmul.f32 %v2608, %v2608
      %v2770 = vmul.f32 %v2609, %v2609
      %v2771 = vmul.f32 %v2610, %v2610
      %v2772 = vmul.f32 %v2611, %v2611
      %v2773 = vmul.f32 %v2612, %v2612
      %v2774 = vmul.f32 %v2613, %v2613
      %v2775 = vmul.f32 %v2614, %v2614
      %v2776 = vmul.f32 %v2615, %v2615
      %v2777 = vmul.f32 %v2616, %v2616
      %v2778 = vmul.f32 %v2617, %v2617
      %v2779 = vmul.f32 %v2618, %v2618
      %v2780 = vmul.f32 %v2619, %v2619
      %v2781 = vmul.f32 %v2620, %v2620
      %v2782 = vmul.f32 %v2621, %v2621
      %v2783 = vmul.f32 %v2622, %v2622
      %v2784 = vmul.f32 %v2623, %v2623
      %v2785 = vmul.f32 %v2624, %v2624
      %v2786 = vmul.f32 %v2625, %v2625
      %v2787 = vmul.f32 %v2626, %v2626
      %v2788 = vmul.f32 %v2627, %v2627
      %v2789 = vmul.f32 %v2628, %v2628
      %v2790 = vmul.f32 %v2629, %v2629
      %v2791 = vmul.f32 %v2630, %v2630
      %v2792 = vmul.f32 %v2631, %v2631
      %v2793 = vmul.f32 %v2632, %v2632
      %v2794 = vmul.f32 %v2633, %v2633
      %v2795 = vmul.f32 %v2634, %v2634
      %v2796 = vmul.f32 %v2635, %v2635
      %v2797 = vmul.f32 %v2636, %v2636
      %v2798 = vmul.f32 %v2637, %v2637
      %v2799 = vmul.f32 %v2638, %v2638
      %v2800 = vmul.f32 %v2639, %v2639
      %v2801 = vmul.f32 %v2640, %v2640
      %v2802 = vmul.f32 %v2641, %v2641
      %v2803 = vmul.f32 %v2642, %v2642
      %v2804 = vmul.f32 %v2643, %v2643
      %v2805 = vmul.f32 %v2644, %v2644
      %v2806 = vmul.f32 %v2645, %v2645
      %v2807 = vmul.f32 %v2646, %v2646
      %v2808 = vmul.f32 %v2647, %v2647
      %v2809 = vadd.f32 %v2745, %v2747
      %v2810 = vadd.f32 %v2809, %v2749
      %v2811 = vadd.f32 %v2810, %v2751
      %v2812 = vadd.f32 %v2811, %v2753
      %v2813 = vadd.f32 %v2812, %v2755
      %v2814 = vadd.f32 %v2813, %v2757
      %v2815 = vadd.f32 %v2814, %v2759
      %v2816 = vadd.f32 %v2815, %v2761
      %v2817 = vadd.f32 %v2816, %v2763
      %v2818 = vadd.f32 %v2817, %v2765
      %v2819 = vadd.f32 %v2818, %v2767
      %v2820 = vadd.f32 %v2819, %v2769
      %v2821 = vadd.f32 %v2820, %v2771
      %v2822 = vadd.f32 %v2821, %v2773
      %v2823 = vadd.f32 %v2822, %v2775
      %v2824 = vadd.f32 %v2823, %v2777
      %v2825 = vadd.f32 %v2824, %v2779
      %v2826 = vadd.f32 %v2825, %v2781
      %v2827 = vadd.f32 %v2826, %v2783
      %v2828 = vadd.f32 %v2827, %v2785
      %v2829 = vadd.f32 %v2828, %v2787
      %v2830 = vadd.f32 %v2829, %v2789
      %v2831 = vadd.f32 %v2830, %v2791
      %v2832 = vadd.f32 %v2831, %v2793
      %v2833 = vadd.f32 %v2832, %v2795
      %v2834 = vadd.f32 %v2833, %v2797
      %v2835 = vadd.f32 %v2834, %v2799
      %v2836 = vadd.f32 %v2835, %v2801
      %v2837 = vadd.f32 %v2836, %v2803
      %v2838 = vadd.f32 %v2837, %v2805
      %v2839 = vadd.f32 %v2838, %v2807
      %v2840 = vrot.slane %v2839, 4
      %v2841 = vadd.f32 %v2839, %v2840
      %v2842 = vrot.slane %v2841, 2
      %v2843 = vadd.f32 %v2841, %v2842
      %v2844 = vrot.slane %v2843, 1
      %v2845 = vadd.f32 %v2843, %v2844
      %v2846 = vadd.f32 %v2746, %v2748
      %v2847 = vadd.f32 %v2846, %v2750
      %v2848 = vadd.f32 %v2847, %v2752
      %v2849 = vadd.f32 %v2848, %v2754
      %v2850 = vadd.f32 %v2849, %v2756
      %v2851 = vadd.f32 %v2850, %v2758
      %v2852 = vadd.f32 %v2851, %v2760
      %v2853 = vadd.f32 %v2852, %v2762
      %v2854 = vadd.f32 %v2853, %v2764
      %v2855 = vadd.f32 %v2854, %v2766
      %v2856 = vadd.f32 %v2855, %v2768
      %v2857 = vadd.f32 %v2856, %v2770
      %v2858 = vadd.f32 %v2857, %v2772
      %v2859 = vadd.f32 %v2858, %v2774
      %v2860 = vadd.f32 %v2859, %v2776
      %v2861 = vadd.f32 %v2860, %v2778
      %v2862 = vadd.f32 %v2861, %v2780
      %v2863 = vadd.f32 %v2862, %v2782
      %v2864 = vadd.f32 %v2863, %v2784
      %v2865 = vadd.f32 %v2864, %v2786
      %v2866 = vadd.f32 %v2865, %v2788
      %v2867 = vadd.f32 %v2866, %v2790
      %v2868 = vadd.f32 %v2867, %v2792
      %v2869 = vadd.f32 %v2868, %v2794
      %v2870 = vadd.f32 %v2869, %v2796
      %v2871 = vadd.f32 %v2870, %v2798
      %v2872 = vadd.f32 %v2871, %v2800
      %v2873 = vadd.f32 %v2872, %v2802
      %v2874 = vadd.f32 %v2873, %v2804
      %v2875 = vadd.f32 %v2874, %v2806
      %v2876 = vadd.f32 %v2875, %v2808
      %v2877 = vrot.slane %v2876, 4
      %v2878 = vadd.f32 %v2876, %v2877
      %v2879 = vrot.slane %v2878, 2
      %v2880 = vadd.f32 %v2878, %v2879
      %v2881 = vrot.slane %v2880, 1
      %v2882 = vadd.f32 %v2880, %v2881
      %v2885 = vcombine.low %v2845, %v2882
      %v2887 = vunpack.c.l.s4 1966171168
      %v2888 = vunpack.c.0.s8 %v2887
      %v2889 = vlaneseq
      %v2890 = vshrl.u32 %v2889, 7
      %v2891 = vsub.s32 %v2888, %v2890
      %v2892 = vrot.slane %v2885, %v2891
      %v2894 = vunpack.c.l.s4 1966171168
      %v2895 = vunpack.c.0.s8 %v2894
      %v2896 = vlaneseq
      %v2897 = vshrl.u32 %v2896, 7
      %v2898 = vsub.s32 %v2895, %v2897
      %v2899 = vrot.slane %v2892, %v2898
      %2901 = vst.msk [vmem:[%s358] sm:$0x3] %vm2743, %v2899
      %s2902 = smul.u32 32, %s21
      %p2903 = scmp.lt.s32.totalorder %s2902, 127
      %s2904 = scalar_select %p2903, %s2902, 127
      %s2905 = smul.addr %s2904, 2
      %s2906 = smul.addr %s2905, 8
      %s2907 = scalar_lea.vmem %s7, %s2906
      %p2908 = scmp.lt.s32.totalorder %s21, 3
      %s2909 = scalar_select %p2908, %s21, 3
      %s2910 = smul.addr %s2909, 2
      %s2911 = scalar_lea.vmem %s8, %s2910
      %p2912 = scmp.lt.s32.totalorder %s21, 3
      %s2913 = scalar_select %p2912, %s21, 3
      %s2914 = smul.addr %s2913, 2
      %s2915 = scalar_lea.vmem %s9, %s2914
      // Predicated region
      $region49: #{encoder_forward.2} parent=47 // pred_check
        %p2916 = pneg %p191
      $region50: #{encoder_forward.2} parent=47 // pred_check_branch
        %2918 = sbr.rel (%p2916) target = $region52
      $region51: #{encoder_forward.2} parent=47 // pred_region
        %s2919 = smul.u32 32, %s21
      $region52: #{encoder_forward.2} parent=47 // pred_fallthru
        _
      // Predicated region
      $region53: #{encoder_forward.2} parent=47 // pred_check
        %p2920 = pneg %p217
      $region54: #{encoder_forward.2} parent=47 // pred_check_branch
        %2922 = sbr.rel (%p2920) target = $region56
      $region55: #{encoder_forward.2} parent=47 // pred_region
        _
      $region56: #{encoder_forward.2} parent=47 // pred_fallthru
        _
      // Predicated region
      $region57: #{encoder_forward.2} parent=47 // pred_check
        %p2923 = pneg %p243
      $region58: #{encoder_forward.2} parent=47 // pred_check_branch
        %2925 = sbr.rel (%p2923) target = $region60
      $region59: #{encoder_forward.2} parent=47 // pred_region
        _
      $region60: #{encoder_forward.2} parent=47 // pred_fallthru
        _
    $region48: #{encoder_forward.2} parent=5 // pred_fallthru
      _
    %p2926 = scmp.le.s32.totalorder 2, %s16
    // Predicated region
    $region61: #{encoder_forward.2} parent=5 // pred_check
      %p2927 = pneg %p2926
    $region62: #{encoder_forward.2} parent=5 // pred_check_branch
      %2929 = sbr.rel (%p2927) target = $region64
    $region63: #{encoder_forward.2} parent=5 // pred_region
      %s2930 = ssub.s32 %s16, 2
      // Predicated region
      $region65: #{encoder_forward.2} parent=63 // pred_check
        %p2931 = pneg %p197
      $region66: #{encoder_forward.2} parent=63 // pred_check_branch
        %2933 = sbr.rel (%p2931) target = $region68
      $region67: #{encoder_forward.2} parent=63 // pred_region
        %s2934 = smul.u32 32, %s22
        %p2935 = scmp.lt.s32.totalorder %s2934, 127
        %s2936 = scalar_select %p2935, %s2934, 127
        %s2937 = smul.addr %s2936, 2
        %s2938 = smul.addr %s2937, 8
        %s2939 = scalar_lea.vmem %s7, %s2938
      $region68: #{encoder_forward.2} parent=63 // pred_fallthru
        _
      // Predicated region
      $region69: #{encoder_forward.2} parent=63 // pred_check
        %p2940 = pneg %p223
      $region70: #{encoder_forward.2} parent=63 // pred_check_branch
        %2942 = sbr.rel (%p2940) target = $region72
      $region71: #{encoder_forward.2} parent=63 // pred_region
        %p2943 = scmp.lt.s32.totalorder %s22, 3
        %s2944 = scalar_select %p2943, %s22, 3
        %s2945 = smul.addr %s2944, 2
        %s2946 = scalar_lea.vmem %s8, %s2945
      $region72: #{encoder_forward.2} parent=63 // pred_fallthru
        _
      // Predicated region
      $region73: #{encoder_forward.2} parent=63 // pred_check
        %p2947 = pneg %p249
      $region74: #{encoder_forward.2} parent=63 // pred_check_branch
        %2949 = sbr.rel (%p2947) target = $region76
      $region75: #{encoder_forward.2} parent=63 // pred_region
        %p2950 = scmp.lt.s32.totalorder %s22, 3
        %s2951 = scalar_select %p2950, %s22, 3
        %s2952 = smul.addr %s2951, 2
        %s2953 = scalar_lea.vmem %s9, %s2952
      $region76: #{encoder_forward.2} parent=63 // pred_fallthru
        _
    $region64: #{encoder_forward.2} parent=5 // pred_fallthru
      _
  $region6: #{encoder_forward.2} parent=0 // loop_footer
    %s20 = sadd.s32 1, %s16
  $region7: #{encoder_forward.2} parent=0 // loop_footer_branch
    %15 = sbr.rel target = $region3
  $region8: #{encoder_forward.2} parent=0 // loop_exit
    _

</llo_original>
